<compile_context>
chip_gen: v7x
topology: tpu7x:2x2x1
jax: 0.10.0
libtpu: 0.0.40
codegen_flags: <defaults>
</compile_context>

<pallas_src>
import numpy as np
import jax
import jax.numpy as jnp
from jax.experimental import pallas as pl
from jax.experimental.pallas import tpu as pltpu

cfg = {
    "data_shape": (3, 16, 16),
    "cnn_hidden_size": (8, 16, 32),
    "basis_in_ratio": 0.5,
    "basis_out_ratio": 0.5,
    "classes_size": 10,
}
MODEL_RATIO = 1.0

VMEM_SPEC = pl.BlockSpec(memory_space=pltpu.MemorySpace.VMEM)


# --------------------------------------------------------------------------
# In-kernel helpers (traced inline; operate on values in the (C, M) layout
# where lane index m = (i*W + j)*N + n  -- spatial-major, batch-minor)
# --------------------------------------------------------------------------

def _lane_shift(x, d):
    """y[:, m] = x[:, (m + d) % M].  Wrapped lanes are zeroed by the caller's mask."""
    M = x.shape[-1]
    d = d % M
    if d == 0:
        return x
    xx = jnp.concatenate([x, x], axis=1)       # aligned concat: M is a multiple of 128
    return xx[:, d:d + M]


def _im2col(x, masks, W, Nb):
    """x (Cin, M) -> (9*Cin, M): 9 shifted + boundary-masked copies (tap-major)."""
    pieces = []
    for k in range(9):
        a, b = k // 3 - 1, k % 3 - 1
        d = (a * W + b) * Nb
        pieces.append(_lane_shift(x, d) * masks[k])
    return jnp.concatenate(pieces, axis=0)


def _decom_relu(x, wb, wc, masks, W, Nb, G):
    """DecomBlock (shared 3x3 basis conv per group + dense 1x1 coeff) fused with ReLU."""
    Cin, M = x.shape
    bin_ch = Cin // G
    # basis conv batched over groups along the lane axis
    cols = jnp.concatenate(
        [_im2col(x[g * bin_ch:(g + 1) * bin_ch, :], masks, W, Nb) for g in range(G)],
        axis=1)                                                     # (9*bin, G*M)
    h = jnp.dot(wb, cols, preferred_element_type=jnp.float32)       # (bout, G*M)
    h = jnp.concatenate([h[:, g * M:(g + 1) * M] for g in range(G)], axis=0)  # (G*bout, M)
    y = jnp.dot(wc, h, preferred_element_type=jnp.float32)          # (Cout, M)
    return jnp.maximum(y, 0.0)


def _maxpool2x2(x, sel, W, Nb):
    """2x2/2 max-pool: max of 4 shifted copies, then 0/1 lane-decimation matmul."""
    q = x
    for d in (Nb, W * Nb, W * Nb + Nb):
        q = jnp.maximum(q, _lane_shift(x, d))
    return jnp.dot(q, sel, preferred_element_type=jnp.float32)      # (C, M // 4)


# --------------------------------------------------------------------------
# The single fused kernel
# --------------------------------------------------------------------------

def cnn_flanc_kernel(x_ref, w0_ref, b0_ref, m1_ref, wb1_ref, wc1_ref, s1_ref,
                     m2_ref, wb2_ref, wc2_ref, s2_ref, wl_ref, bl_ref, o_ref):
    H1 = W1 = 16          # input lattice
    W2 = 8                # lattice after first pool
    SP2 = 16              # spatial positions per image after second pool (4*4)

    x0 = x_ref[...]                                   # (3, M1)
    Nb = x0.shape[1] // (H1 * W1)                     # batch size (static)

    # layer 0: Conv2d(3, 8, 3, pad=1) + bias (no ReLU in the torch module here)
    a0 = jnp.dot(w0_ref[...], _im2col(x0, m1_ref[...], W1, Nb),
                 preferred_element_type=jnp.float32) + b0_ref[...]             # (8, 512)

    # DecomBlock 1 + ReLU, 2x2 max-pool
    a1 = _decom_relu(a0, wb1_ref[...], wc1_ref[...], m1_ref[...], W1, Nb, G=2)  # (16, 512)
    p1 = _maxpool2x2(a1, s1_ref[...], W1, Nb)                                   # (16, 128)

    # DecomBlock 2 + ReLU, 2x2 max-pool
    a2 = _decom_relu(p1, wb2_ref[...], wc2_ref[...], m2_ref[...], W2, Nb, G=2)  # (32, 128)
    p2 = _maxpool2x2(a2, s2_ref[...], W2, Nb)                                   # (32, 32)

    # classifier: stack per-image features (row order (s, c), matching the
    # pre-permuted classifier weight) and do one K=512 matmul.
    feats = jnp.concatenate([p2[:, s * Nb:(s + 1) * Nb] for s in range(SP2)],
                            axis=0)                                             # (512, Nb)
    o_ref[...] = (jnp.dot(wl_ref[...], feats, preferred_element_type=jnp.float32)
                  + bl_ref[...])                                                # (10, Nb)


# --------------------------------------------------------------------------
# One-time host-side preparation (weight relayout, masks, pool selections)
# --------------------------------------------------------------------------

def _make_masks(H, W, Nb):
    # (9, 1, M) f32: 1 where the tap (a, b) stays inside the zero-padded image.
    M = H * W * Nb
    s = np.arange(M) // Nb
    i, j = s // W, s % W
    m = np.zeros((9, 1, M), np.float32)
    for k in range(9):
        a, b = k // 3 - 1, k % 3 - 1
        ok = (i + a >= 0) & (i + a < H) & (j + b >= 0) & (j + b < W)
        m[k, 0, :] = ok.astype(np.float32)
    return m


def _make_pool_select(H, W, Nb):
    # (M, M/4) 0/1 matrix selecting the top-left lane of every 2x2 window.
    M = H * W * Nb
    Ho, Wo = H // 2, W // 2
    sel = np.zeros((M, Ho * Wo * Nb), np.float32)
    for io in range(Ho):
        for jo in range(Wo):
            for n in range(Nb):
                mo = (io * Wo + jo) * Nb + n
                mi = ((2 * io) * W + (2 * jo)) * Nb + n
                sel[mi, mo] = 1.0
    return sel


def prepare_params(p, Nb=2):
    """Re-layout torch-convention params to kernel-ready arrays (done once)."""
    def conv_w(w):  # (Cout, Cin, 3, 3) -> (Cout, 9*Cin), tap-major / channel-minor
        Cout, Cin = w.shape[0], w.shape[1]
        return jnp.transpose(w, (0, 2, 3, 1)).reshape(Cout, 9 * Cin)

    C2, SP2 = 32, 16
    wl = p["wl_t"].reshape(10, C2, SP2).transpose(0, 2, 1).reshape(10, C2 * SP2)
    return {
        "w0": conv_w(p["w0_t"]), "b0": p["b0"].reshape(8, 1),
        "wb1": conv_w(p["wb1_t"]), "wc1": p["wc1_t"][:, :, 0, 0],
        "wb2": conv_w(p["wb2_t"]), "wc2": p["wc2_t"][:, :, 0, 0],
        "wl": wl, "bl": p["bl"].reshape(10, 1),
        "m1": jnp.asarray(_make_masks(16, 16, Nb)),
        "s1": jnp.asarray(_make_pool_select(16, 16, Nb)),
        "m2": jnp.asarray(_make_masks(8, 8, Nb)),
        "s2": jnp.asarray(_make_pool_select(8, 8, Nb)),
    }


# --------------------------------------------------------------------------
# Forward pass: one pallas_call
# --------------------------------------------------------------------------

def cnn_flanc_forward(x_nchw, q):
    N, C, H, W = x_nchw.shape
    # NCHW -> (C, M) with lane index m = (i*W + j)*N + n
    xt = jnp.transpose(x_nchw, (1, 2, 3, 0)).reshape(C, H * W * N)
    out_t = pl.pallas_call(
        cnn_flanc_kernel,
        out_shape=jax.ShapeDtypeStruct((10, N), jnp.float32),
        in_specs=[VMEM_SPEC] * 13,
        out_specs=VMEM_SPEC,
    )(xt, q["w0"], q["b0"], q["m1"], q["wb1"], q["wc1"], q["s1"],
      q["m2"], q["wb2"], q["wc2"], q["s2"], q["wl"], q["bl"])
    return out_t.T          # (N, 10); 80-byte relayout left to XLA


# --------------------------------------------------------------------------
# Pure-JAX reference (NCHW, mirrors the PyTorch module exactly)
# --------------------------------------------------------------------------

def _conv_ref(x, w, b=None, pad=1):
    out = jax.lax.conv_general_dilated(
        x, w, (1, 1), [(pad, pad), (pad, pad)],
        dimension_numbers=("NCHW", "OIHW", "NCHW"))
    if b is not None:
        out = out + b[None, :, None, None]
    return out


def _decom_ref(h, wb_t, wc_t, bin_ch):
    G = h.shape[1] // bin_ch
    parts = [_conv_ref(h[:, g * bin_ch:(g + 1) * bin_ch], wb_t) for g in range(G)]
    h2 = jnp.concatenate(parts, axis=1)
    return _conv_ref(h2, wc_t, pad=0)


def _pool_ref(h):
    return jax.lax.reduce_window(h, -jnp.inf, jax.lax.max,
                                 (1, 1, 2, 2), (1, 1, 2, 2), "VALID")


def ref_forward(x, p):
    h = _conv_ref(x, p["w0_t"], p["b0"])
    h = _pool_ref(jax.nn.relu(_decom_ref(h, p["wb1_t"], p["wc1_t"], bin_ch=4)))
    h = _pool_ref(jax.nn.relu(_decom_ref(h, p["wb2_t"], p["wc2_t"], bin_ch=8)))
    h = h.reshape(h.shape[0], -1)
    return h @ p["wl_t"].T + p["bl"]


# --------------------------------------------------------------------------

def init_params(key):
    ks = jax.random.split(key, 8)
    def nrm(k, shape, fan_in):
        return (jax.random.normal(k, shape, jnp.float32) / np.sqrt(fan_in)).astype(jnp.float32)
    p = {}
    p["w0_t"] = nrm(ks[0], (8, 3, 3, 3), 3 * 9)           # Conv2d(3, 8, 3, pad=1)
    p["b0"] = 0.01 * jax.random.normal(ks[1], (8,), jnp.float32)
    # TODO(synk): torch uses orthogonal_ init for basis convs; plain Gaussian used here.
    p["wb1_t"] = nrm(ks[2], (8, 4, 3, 3), 4 * 9)          # basis conv 1
    p["wc1_t"] = nrm(ks[3], (16, 16, 1, 1), 16)           # coeff conv 1
    p["wb2_t"] = nrm(ks[4], (16, 8, 3, 3), 8 * 9)         # basis conv 2
    p["wc2_t"] = nrm(ks[5], (32, 32, 1, 1), 32)           # coeff conv 2
    p["wl_t"] = nrm(ks[6], (10, 512), 512)                # Linear(512, 10)
    p["bl"] = 0.01 * jax.random.normal(ks[7], (10,), jnp.float32)
    return p


if __name__ == "__main__":
    key = jax.random.PRNGKey(0)
    kx, kp = jax.random.split(key)
    x = jax.random.normal(kx, (2, 3, 16, 16), jnp.float32)   # NCHW, like torch
    params = init_params(kp)
    prepped = prepare_params(params, Nb=x.shape[0])          # one-time relayout, outside jit

    fwd = jax.jit(cnn_flanc_forward)
    out = jax.block_until_ready(fwd(x, prepped))

    ref = jax.block_until_ready(ref_forward(x, params))
    # Tolerance covers MXU f32 pass-count differences between the matmul-based
    # pooling/decimation in the kernel and the exact reduce_window reference.
    np.testing.assert_allclose(np.asarray(out), np.asarray(ref),
                               rtol=1e-2, atol=1e-2)
    assert out.shape == (2, 10)
    print("KERNEL_OK")
</pallas_src>

<mosaic_0001>
module attributes {stable_mosaic.version = 11 : i64} {
  func.func @cnn_flanc_kernel(%arg0: memref<3x512xf32, #tpu.memory_space<vmem>>, %arg1: memref<8x27xf32, #tpu.memory_space<vmem>>, %arg2: memref<8x1xf32, #tpu.memory_space<vmem>>, %arg3: memref<9x1x512xf32, #tpu.memory_space<vmem>>, %arg4: memref<8x36xf32, #tpu.memory_space<vmem>>, %arg5: memref<16x16xf32, #tpu.memory_space<vmem>>, %arg6: memref<512x128xf32, #tpu.memory_space<vmem>>, %arg7: memref<9x1x128xf32, #tpu.memory_space<vmem>>, %arg8: memref<16x72xf32, #tpu.memory_space<vmem>>, %arg9: memref<32x32xf32, #tpu.memory_space<vmem>>, %arg10: memref<128x32xf32, #tpu.memory_space<vmem>>, %arg11: memref<10x512xf32, #tpu.memory_space<vmem>>, %arg12: memref<10x1xf32, #tpu.memory_space<vmem>>, %arg13: memref<10x2xf32, #tpu.memory_space<vmem>>) attributes {dimension_semantics = [], scalar_prefetch = 0 : i64, scratch_operands = 0 : i64, tpu.core_type = #tpu.core_type<tc>} {
    %c0 = arith.constant 0 : index
    %c0_0 = arith.constant 0 : index
    %0 = vector.load %arg0[%c0, %c0_0] : memref<3x512xf32, #tpu.memory_space<vmem>>, vector<3x512xf32>
    %c0_1 = arith.constant 0 : index
    %c0_2 = arith.constant 0 : index
    %1 = vector.load %arg1[%c0_1, %c0_2] : memref<8x27xf32, #tpu.memory_space<vmem>>, vector<8x27xf32>
    %c0_3 = arith.constant 0 : index
    %c0_4 = arith.constant 0 : index
    %c0_5 = arith.constant 0 : index
    %2 = vector.load %arg3[%c0_3, %c0_4, %c0_5] : memref<9x1x512xf32, #tpu.memory_space<vmem>>, vector<9x1x512xf32>
    %3 = tpu.concatenate %0, %0 in 1 : vector<3x512xf32>, vector<3x512xf32> -> vector<3x1024xf32>
    %4 = vector.extract_strided_slice %3 {offsets = [0, 478], sizes = [3, 512], strides = [1, 1]} : vector<3x1024xf32> to vector<3x512xf32>
    %5 = vector.extract_strided_slice %2 {offsets = [0, 0, 0], sizes = [1, 1, 512], strides = [1, 1, 1]} : vector<9x1x512xf32> to vector<1x1x512xf32>
    %6 = vector.shape_cast %5 : vector<1x1x512xf32> to vector<1x512xf32>
    %7 = vector.broadcast %6 : vector<1x512xf32> to vector<3x512xf32>
    %8 = arith.mulf %4, %7 : vector<3x512xf32>
    %9 = tpu.concatenate %0, %0 in 1 : vector<3x512xf32>, vector<3x512xf32> -> vector<3x1024xf32>
    %10 = vector.extract_strided_slice %9 {offsets = [0, 480], sizes = [3, 512], strides = [1, 1]} : vector<3x1024xf32> to vector<3x512xf32>
    %11 = vector.extract_strided_slice %2 {offsets = [1, 0, 0], sizes = [1, 1, 512], strides = [1, 1, 1]} : vector<9x1x512xf32> to vector<1x1x512xf32>
    %12 = vector.shape_cast %11 : vector<1x1x512xf32> to vector<1x512xf32>
    %13 = vector.broadcast %12 : vector<1x512xf32> to vector<3x512xf32>
    %14 = arith.mulf %10, %13 : vector<3x512xf32>
    %15 = tpu.concatenate %0, %0 in 1 : vector<3x512xf32>, vector<3x512xf32> -> vector<3x1024xf32>
    %16 = vector.extract_strided_slice %15 {offsets = [0, 482], sizes = [3, 512], strides = [1, 1]} : vector<3x1024xf32> to vector<3x512xf32>
    %17 = vector.extract_strided_slice %2 {offsets = [2, 0, 0], sizes = [1, 1, 512], strides = [1, 1, 1]} : vector<9x1x512xf32> to vector<1x1x512xf32>
    %18 = vector.shape_cast %17 : vector<1x1x512xf32> to vector<1x512xf32>
    %19 = vector.broadcast %18 : vector<1x512xf32> to vector<3x512xf32>
    %20 = arith.mulf %16, %19 : vector<3x512xf32>
    %21 = tpu.concatenate %0, %0 in 1 : vector<3x512xf32>, vector<3x512xf32> -> vector<3x1024xf32>
    %22 = vector.extract_strided_slice %21 {offsets = [0, 510], sizes = [3, 512], strides = [1, 1]} : vector<3x1024xf32> to vector<3x512xf32>
    %23 = vector.extract_strided_slice %2 {offsets = [3, 0, 0], sizes = [1, 1, 512], strides = [1, 1, 1]} : vector<9x1x512xf32> to vector<1x1x512xf32>
    %24 = vector.shape_cast %23 : vector<1x1x512xf32> to vector<1x512xf32>
    %25 = vector.broadcast %24 : vector<1x512xf32> to vector<3x512xf32>
    %26 = arith.mulf %22, %25 : vector<3x512xf32>
    %27 = vector.extract_strided_slice %2 {offsets = [4, 0, 0], sizes = [1, 1, 512], strides = [1, 1, 1]} : vector<9x1x512xf32> to vector<1x1x512xf32>
    %28 = vector.shape_cast %27 : vector<1x1x512xf32> to vector<1x512xf32>
    %29 = vector.broadcast %28 : vector<1x512xf32> to vector<3x512xf32>
    %30 = arith.mulf %0, %29 : vector<3x512xf32>
    %31 = tpu.concatenate %0, %0 in 1 : vector<3x512xf32>, vector<3x512xf32> -> vector<3x1024xf32>
    %32 = vector.extract_strided_slice %31 {offsets = [0, 2], sizes = [3, 512], strides = [1, 1]} : vector<3x1024xf32> to vector<3x512xf32>
    %33 = vector.extract_strided_slice %2 {offsets = [5, 0, 0], sizes = [1, 1, 512], strides = [1, 1, 1]} : vector<9x1x512xf32> to vector<1x1x512xf32>
    %34 = vector.shape_cast %33 : vector<1x1x512xf32> to vector<1x512xf32>
    %35 = vector.broadcast %34 : vector<1x512xf32> to vector<3x512xf32>
    %36 = arith.mulf %32, %35 : vector<3x512xf32>
    %37 = tpu.concatenate %0, %0 in 1 : vector<3x512xf32>, vector<3x512xf32> -> vector<3x1024xf32>
    %38 = vector.extract_strided_slice %37 {offsets = [0, 30], sizes = [3, 512], strides = [1, 1]} : vector<3x1024xf32> to vector<3x512xf32>
    %39 = vector.extract_strided_slice %2 {offsets = [6, 0, 0], sizes = [1, 1, 512], strides = [1, 1, 1]} : vector<9x1x512xf32> to vector<1x1x512xf32>
    %40 = vector.shape_cast %39 : vector<1x1x512xf32> to vector<1x512xf32>
    %41 = vector.broadcast %40 : vector<1x512xf32> to vector<3x512xf32>
    %42 = arith.mulf %38, %41 : vector<3x512xf32>
    %43 = tpu.concatenate %0, %0 in 1 : vector<3x512xf32>, vector<3x512xf32> -> vector<3x1024xf32>
    %44 = vector.extract_strided_slice %43 {offsets = [0, 32], sizes = [3, 512], strides = [1, 1]} : vector<3x1024xf32> to vector<3x512xf32>
    %45 = vector.extract_strided_slice %2 {offsets = [7, 0, 0], sizes = [1, 1, 512], strides = [1, 1, 1]} : vector<9x1x512xf32> to vector<1x1x512xf32>
    %46 = vector.shape_cast %45 : vector<1x1x512xf32> to vector<1x512xf32>
    %47 = vector.broadcast %46 : vector<1x512xf32> to vector<3x512xf32>
    %48 = arith.mulf %44, %47 : vector<3x512xf32>
    %49 = tpu.concatenate %0, %0 in 1 : vector<3x512xf32>, vector<3x512xf32> -> vector<3x1024xf32>
    %50 = vector.extract_strided_slice %49 {offsets = [0, 34], sizes = [3, 512], strides = [1, 1]} : vector<3x1024xf32> to vector<3x512xf32>
    %51 = vector.extract_strided_slice %2 {offsets = [8, 0, 0], sizes = [1, 1, 512], strides = [1, 1, 1]} : vector<9x1x512xf32> to vector<1x1x512xf32>
    %52 = vector.shape_cast %51 : vector<1x1x512xf32> to vector<1x512xf32>
    %53 = vector.broadcast %52 : vector<1x512xf32> to vector<3x512xf32>
    %54 = arith.mulf %50, %53 : vector<3x512xf32>
    %55 = tpu.concatenate %8, %14, %20, %26, %30, %36, %42, %48, %54 in 0 : vector<3x512xf32>, vector<3x512xf32>, vector<3x512xf32>, vector<3x512xf32>, vector<3x512xf32>, vector<3x512xf32>, vector<3x512xf32>, vector<3x512xf32>, vector<3x512xf32> -> vector<27x512xf32>
    %cst = arith.constant dense<0.000000e+00> : vector<8x512xf32>
    %56 = tpu.matmul %1, %55, %cst {dimension_numbers = #tpu.dot_dimension_numbers<[1], [0], [0], [1], [0, 0, 1, 1], [], []>} : vector<8x27xf32>, vector<27x512xf32>, vector<8x512xf32> -> vector<8x512xf32>
    %c0_6 = arith.constant 0 : index
    %c0_7 = arith.constant 0 : index
    %57 = vector.load %arg2[%c0_6, %c0_7] : memref<8x1xf32, #tpu.memory_space<vmem>>, vector<8x1xf32>
    %58 = vector.broadcast %57 : vector<8x1xf32> to vector<8x512xf32>
    %59 = arith.addf %56, %58 : vector<8x512xf32>
    %c0_8 = arith.constant 0 : index
    %c0_9 = arith.constant 0 : index
    %60 = vector.load %arg4[%c0_8, %c0_9] : memref<8x36xf32, #tpu.memory_space<vmem>>, vector<8x36xf32>
    %c0_10 = arith.constant 0 : index
    %c0_11 = arith.constant 0 : index
    %61 = vector.load %arg5[%c0_10, %c0_11] : memref<16x16xf32, #tpu.memory_space<vmem>>, vector<16x16xf32>
    %c0_12 = arith.constant 0 : index
    %c0_13 = arith.constant 0 : index
    %c0_14 = arith.constant 0 : index
    %62 = vector.load %arg3[%c0_12, %c0_13, %c0_14] : memref<9x1x512xf32, #tpu.memory_space<vmem>>, vector<9x1x512xf32>
    %63 = vector.extract_strided_slice %59 {offsets = [0, 0], sizes = [4, 512], strides = [1, 1]} : vector<8x512xf32> to vector<4x512xf32>
    %64 = tpu.concatenate %63, %63 in 1 : vector<4x512xf32>, vector<4x512xf32> -> vector<4x1024xf32>
    %65 = vector.extract_strided_slice %64 {offsets = [0, 478], sizes = [4, 512], strides = [1, 1]} : vector<4x1024xf32> to vector<4x512xf32>
    %66 = vector.extract_strided_slice %62 {offsets = [0, 0, 0], sizes = [1, 1, 512], strides = [1, 1, 1]} : vector<9x1x512xf32> to vector<1x1x512xf32>
    %67 = vector.shape_cast %66 : vector<1x1x512xf32> to vector<1x512xf32>
    %68 = vector.broadcast %67 : vector<1x512xf32> to vector<4x512xf32>
    %69 = arith.mulf %65, %68 : vector<4x512xf32>
    %70 = tpu.concatenate %63, %63 in 1 : vector<4x512xf32>, vector<4x512xf32> -> vector<4x1024xf32>
    %71 = vector.extract_strided_slice %70 {offsets = [0, 480], sizes = [4, 512], strides = [1, 1]} : vector<4x1024xf32> to vector<4x512xf32>
    %72 = vector.extract_strided_slice %62 {offsets = [1, 0, 0], sizes = [1, 1, 512], strides = [1, 1, 1]} : vector<9x1x512xf32> to vector<1x1x512xf32>
    %73 = vector.shape_cast %72 : vector<1x1x512xf32> to vector<1x512xf32>
    %74 = vector.broadcast %73 : vector<1x512xf32> to vector<4x512xf32>
    %75 = arith.mulf %71, %74 : vector<4x512xf32>
    %76 = tpu.concatenate %63, %63 in 1 : vector<4x512xf32>, vector<4x512xf32> -> vector<4x1024xf32>
    %77 = vector.extract_strided_slice %76 {offsets = [0, 482], sizes = [4, 512], strides = [1, 1]} : vector<4x1024xf32> to vector<4x512xf32>
    %78 = vector.extract_strided_slice %62 {offsets = [2, 0, 0], sizes = [1, 1, 512], strides = [1, 1, 1]} : vector<9x1x512xf32> to vector<1x1x512xf32>
    %79 = vector.shape_cast %78 : vector<1x1x512xf32> to vector<1x512xf32>
    %80 = vector.broadcast %79 : vector<1x512xf32> to vector<4x512xf32>
    %81 = arith.mulf %77, %80 : vector<4x512xf32>
    %82 = tpu.concatenate %63, %63 in 1 : vector<4x512xf32>, vector<4x512xf32> -> vector<4x1024xf32>
    %83 = vector.extract_strided_slice %82 {offsets = [0, 510], sizes = [4, 512], strides = [1, 1]} : vector<4x1024xf32> to vector<4x512xf32>
    %84 = vector.extract_strided_slice %62 {offsets = [3, 0, 0], sizes = [1, 1, 512], strides = [1, 1, 1]} : vector<9x1x512xf32> to vector<1x1x512xf32>
    %85 = vector.shape_cast %84 : vector<1x1x512xf32> to vector<1x512xf32>
    %86 = vector.broadcast %85 : vector<1x512xf32> to vector<4x512xf32>
    %87 = arith.mulf %83, %86 : vector<4x512xf32>
    %88 = vector.extract_strided_slice %62 {offsets = [4, 0, 0], sizes = [1, 1, 512], strides = [1, 1, 1]} : vector<9x1x512xf32> to vector<1x1x512xf32>
    %89 = vector.shape_cast %88 : vector<1x1x512xf32> to vector<1x512xf32>
    %90 = vector.broadcast %89 : vector<1x512xf32> to vector<4x512xf32>
    %91 = arith.mulf %63, %90 : vector<4x512xf32>
    %92 = tpu.concatenate %63, %63 in 1 : vector<4x512xf32>, vector<4x512xf32> -> vector<4x1024xf32>
    %93 = vector.extract_strided_slice %92 {offsets = [0, 2], sizes = [4, 512], strides = [1, 1]} : vector<4x1024xf32> to vector<4x512xf32>
    %94 = vector.extract_strided_slice %62 {offsets = [5, 0, 0], sizes = [1, 1, 512], strides = [1, 1, 1]} : vector<9x1x512xf32> to vector<1x1x512xf32>
    %95 = vector.shape_cast %94 : vector<1x1x512xf32> to vector<1x512xf32>
    %96 = vector.broadcast %95 : vector<1x512xf32> to vector<4x512xf32>
    %97 = arith.mulf %93, %96 : vector<4x512xf32>
    %98 = tpu.concatenate %63, %63 in 1 : vector<4x512xf32>, vector<4x512xf32> -> vector<4x1024xf32>
    %99 = vector.extract_strided_slice %98 {offsets = [0, 30], sizes = [4, 512], strides = [1, 1]} : vector<4x1024xf32> to vector<4x512xf32>
    %100 = vector.extract_strided_slice %62 {offsets = [6, 0, 0], sizes = [1, 1, 512], strides = [1, 1, 1]} : vector<9x1x512xf32> to vector<1x1x512xf32>
    %101 = vector.shape_cast %100 : vector<1x1x512xf32> to vector<1x512xf32>
    %102 = vector.broadcast %101 : vector<1x512xf32> to vector<4x512xf32>
    %103 = arith.mulf %99, %102 : vector<4x512xf32>
    %104 = tpu.concatenate %63, %63 in 1 : vector<4x512xf32>, vector<4x512xf32> -> vector<4x1024xf32>
    %105 = vector.extract_strided_slice %104 {offsets = [0, 32], sizes = [4, 512], strides = [1, 1]} : vector<4x1024xf32> to vector<4x512xf32>
    %106 = vector.extract_strided_slice %62 {offsets = [7, 0, 0], sizes = [1, 1, 512], strides = [1, 1, 1]} : vector<9x1x512xf32> to vector<1x1x512xf32>
    %107 = vector.shape_cast %106 : vector<1x1x512xf32> to vector<1x512xf32>
    %108 = vector.broadcast %107 : vector<1x512xf32> to vector<4x512xf32>
    %109 = arith.mulf %105, %108 : vector<4x512xf32>
    %110 = tpu.concatenate %63, %63 in 1 : vector<4x512xf32>, vector<4x512xf32> -> vector<4x1024xf32>
    %111 = vector.extract_strided_slice %110 {offsets = [0, 34], sizes = [4, 512], strides = [1, 1]} : vector<4x1024xf32> to vector<4x512xf32>
    %112 = vector.extract_strided_slice %62 {offsets = [8, 0, 0], sizes = [1, 1, 512], strides = [1, 1, 1]} : vector<9x1x512xf32> to vector<1x1x512xf32>
    %113 = vector.shape_cast %112 : vector<1x1x512xf32> to vector<1x512xf32>
    %114 = vector.broadcast %113 : vector<1x512xf32> to vector<4x512xf32>
    %115 = arith.mulf %111, %114 : vector<4x512xf32>
    %116 = tpu.concatenate %69, %75, %81, %87, %91, %97, %103, %109, %115 in 0 : vector<4x512xf32>, vector<4x512xf32>, vector<4x512xf32>, vector<4x512xf32>, vector<4x512xf32>, vector<4x512xf32>, vector<4x512xf32>, vector<4x512xf32>, vector<4x512xf32> -> vector<36x512xf32>
    %117 = vector.extract_strided_slice %59 {offsets = [4, 0], sizes = [4, 512], strides = [1, 1]} : vector<8x512xf32> to vector<4x512xf32>
    %118 = tpu.concatenate %117, %117 in 1 : vector<4x512xf32>, vector<4x512xf32> -> vector<4x1024xf32>
    %119 = vector.extract_strided_slice %118 {offsets = [0, 478], sizes = [4, 512], strides = [1, 1]} : vector<4x1024xf32> to vector<4x512xf32>
    %120 = vector.extract_strided_slice %62 {offsets = [0, 0, 0], sizes = [1, 1, 512], strides = [1, 1, 1]} : vector<9x1x512xf32> to vector<1x1x512xf32>
    %121 = vector.shape_cast %120 : vector<1x1x512xf32> to vector<1x512xf32>
    %122 = vector.broadcast %121 : vector<1x512xf32> to vector<4x512xf32>
    %123 = arith.mulf %119, %122 : vector<4x512xf32>
    %124 = tpu.concatenate %117, %117 in 1 : vector<4x512xf32>, vector<4x512xf32> -> vector<4x1024xf32>
    %125 = vector.extract_strided_slice %124 {offsets = [0, 480], sizes = [4, 512], strides = [1, 1]} : vector<4x1024xf32> to vector<4x512xf32>
    %126 = vector.extract_strided_slice %62 {offsets = [1, 0, 0], sizes = [1, 1, 512], strides = [1, 1, 1]} : vector<9x1x512xf32> to vector<1x1x512xf32>
    %127 = vector.shape_cast %126 : vector<1x1x512xf32> to vector<1x512xf32>
    %128 = vector.broadcast %127 : vector<1x512xf32> to vector<4x512xf32>
    %129 = arith.mulf %125, %128 : vector<4x512xf32>
    %130 = tpu.concatenate %117, %117 in 1 : vector<4x512xf32>, vector<4x512xf32> -> vector<4x1024xf32>
    %131 = vector.extract_strided_slice %130 {offsets = [0, 482], sizes = [4, 512], strides = [1, 1]} : vector<4x1024xf32> to vector<4x512xf32>
    %132 = vector.extract_strided_slice %62 {offsets = [2, 0, 0], sizes = [1, 1, 512], strides = [1, 1, 1]} : vector<9x1x512xf32> to vector<1x1x512xf32>
    %133 = vector.shape_cast %132 : vector<1x1x512xf32> to vector<1x512xf32>
    %134 = vector.broadcast %133 : vector<1x512xf32> to vector<4x512xf32>
    %135 = arith.mulf %131, %134 : vector<4x512xf32>
    %136 = tpu.concatenate %117, %117 in 1 : vector<4x512xf32>, vector<4x512xf32> -> vector<4x1024xf32>
    %137 = vector.extract_strided_slice %136 {offsets = [0, 510], sizes = [4, 512], strides = [1, 1]} : vector<4x1024xf32> to vector<4x512xf32>
    %138 = vector.extract_strided_slice %62 {offsets = [3, 0, 0], sizes = [1, 1, 512], strides = [1, 1, 1]} : vector<9x1x512xf32> to vector<1x1x512xf32>
    %139 = vector.shape_cast %138 : vector<1x1x512xf32> to vector<1x512xf32>
    %140 = vector.broadcast %139 : vector<1x512xf32> to vector<4x512xf32>
    %141 = arith.mulf %137, %140 : vector<4x512xf32>
    %142 = vector.extract_strided_slice %62 {offsets = [4, 0, 0], sizes = [1, 1, 512], strides = [1, 1, 1]} : vector<9x1x512xf32> to vector<1x1x512xf32>
    %143 = vector.shape_cast %142 : vector<1x1x512xf32> to vector<1x512xf32>
    %144 = vector.broadcast %143 : vector<1x512xf32> to vector<4x512xf32>
    %145 = arith.mulf %117, %144 : vector<4x512xf32>
    %146 = tpu.concatenate %117, %117 in 1 : vector<4x512xf32>, vector<4x512xf32> -> vector<4x1024xf32>
    %147 = vector.extract_strided_slice %146 {offsets = [0, 2], sizes = [4, 512], strides = [1, 1]} : vector<4x1024xf32> to vector<4x512xf32>
    %148 = vector.extract_strided_slice %62 {offsets = [5, 0, 0], sizes = [1, 1, 512], strides = [1, 1, 1]} : vector<9x1x512xf32> to vector<1x1x512xf32>
    %149 = vector.shape_cast %148 : vector<1x1x512xf32> to vector<1x512xf32>
    %150 = vector.broadcast %149 : vector<1x512xf32> to vector<4x512xf32>
    %151 = arith.mulf %147, %150 : vector<4x512xf32>
    %152 = tpu.concatenate %117, %117 in 1 : vector<4x512xf32>, vector<4x512xf32> -> vector<4x1024xf32>
    %153 = vector.extract_strided_slice %152 {offsets = [0, 30], sizes = [4, 512], strides = [1, 1]} : vector<4x1024xf32> to vector<4x512xf32>
    %154 = vector.extract_strided_slice %62 {offsets = [6, 0, 0], sizes = [1, 1, 512], strides = [1, 1, 1]} : vector<9x1x512xf32> to vector<1x1x512xf32>
    %155 = vector.shape_cast %154 : vector<1x1x512xf32> to vector<1x512xf32>
    %156 = vector.broadcast %155 : vector<1x512xf32> to vector<4x512xf32>
    %157 = arith.mulf %153, %156 : vector<4x512xf32>
    %158 = tpu.concatenate %117, %117 in 1 : vector<4x512xf32>, vector<4x512xf32> -> vector<4x1024xf32>
    %159 = vector.extract_strided_slice %158 {offsets = [0, 32], sizes = [4, 512], strides = [1, 1]} : vector<4x1024xf32> to vector<4x512xf32>
    %160 = vector.extract_strided_slice %62 {offsets = [7, 0, 0], sizes = [1, 1, 512], strides = [1, 1, 1]} : vector<9x1x512xf32> to vector<1x1x512xf32>
    %161 = vector.shape_cast %160 : vector<1x1x512xf32> to vector<1x512xf32>
    %162 = vector.broadcast %161 : vector<1x512xf32> to vector<4x512xf32>
    %163 = arith.mulf %159, %162 : vector<4x512xf32>
    %164 = tpu.concatenate %117, %117 in 1 : vector<4x512xf32>, vector<4x512xf32> -> vector<4x1024xf32>
    %165 = vector.extract_strided_slice %164 {offsets = [0, 34], sizes = [4, 512], strides = [1, 1]} : vector<4x1024xf32> to vector<4x512xf32>
    %166 = vector.extract_strided_slice %62 {offsets = [8, 0, 0], sizes = [1, 1, 512], strides = [1, 1, 1]} : vector<9x1x512xf32> to vector<1x1x512xf32>
    %167 = vector.shape_cast %166 : vector<1x1x512xf32> to vector<1x512xf32>
    %168 = vector.broadcast %167 : vector<1x512xf32> to vector<4x512xf32>
    %169 = arith.mulf %165, %168 : vector<4x512xf32>
    %170 = tpu.concatenate %123, %129, %135, %141, %145, %151, %157, %163, %169 in 0 : vector<4x512xf32>, vector<4x512xf32>, vector<4x512xf32>, vector<4x512xf32>, vector<4x512xf32>, vector<4x512xf32>, vector<4x512xf32>, vector<4x512xf32>, vector<4x512xf32> -> vector<36x512xf32>
    %171 = tpu.concatenate %116, %170 in 1 : vector<36x512xf32>, vector<36x512xf32> -> vector<36x1024xf32>
    %cst_15 = arith.constant dense<0.000000e+00> : vector<8x1024xf32>
    %172 = tpu.matmul %60, %171, %cst_15 {dimension_numbers = #tpu.dot_dimension_numbers<[1], [0], [0], [1], [0, 0, 1, 1], [], []>} : vector<8x36xf32>, vector<36x1024xf32>, vector<8x1024xf32> -> vector<8x1024xf32>
    %173 = vector.extract_strided_slice %172 {offsets = [0, 0], sizes = [8, 512], strides = [1, 1]} : vector<8x1024xf32> to vector<8x512xf32>
    %174 = vector.extract_strided_slice %172 {offsets = [0, 512], sizes = [8, 512], strides = [1, 1]} : vector<8x1024xf32> to vector<8x512xf32>
    %175 = tpu.concatenate %173, %174 in 0 : vector<8x512xf32>, vector<8x512xf32> -> vector<16x512xf32>
    %cst_16 = arith.constant dense<0.000000e+00> : vector<16x512xf32>
    %176 = tpu.matmul %61, %175, %cst_16 {dimension_numbers = #tpu.dot_dimension_numbers<[1], [0], [0], [1], [0, 0, 1, 1], [], []>} : vector<16x16xf32>, vector<16x512xf32>, vector<16x512xf32> -> vector<16x512xf32>
    %cst_17 = arith.constant 0.000000e+00 : f32
    %177 = vector.broadcast %cst_17 : f32 to vector<16x512xf32>
    %178 = arith.maximumf %176, %177 : vector<16x512xf32>
    %c0_18 = arith.constant 0 : index
    %c0_19 = arith.constant 0 : index
    %179 = vector.load %arg6[%c0_18, %c0_19] : memref<512x128xf32, #tpu.memory_space<vmem>>, vector<512x128xf32>
    %180 = tpu.concatenate %178, %178 in 1 : vector<16x512xf32>, vector<16x512xf32> -> vector<16x1024xf32>
    %181 = vector.extract_strided_slice %180 {offsets = [0, 2], sizes = [16, 512], strides = [1, 1]} : vector<16x1024xf32> to vector<16x512xf32>
    %182 = arith.maximumf %178, %181 : vector<16x512xf32>
    %183 = tpu.concatenate %178, %178 in 1 : vector<16x512xf32>, vector<16x512xf32> -> vector<16x1024xf32>
    %184 = vector.extract_strided_slice %183 {offsets = [0, 32], sizes = [16, 512], strides = [1, 1]} : vector<16x1024xf32> to vector<16x512xf32>
    %185 = arith.maximumf %182, %184 : vector<16x512xf32>
    %186 = tpu.concatenate %178, %178 in 1 : vector<16x512xf32>, vector<16x512xf32> -> vector<16x1024xf32>
    %187 = vector.extract_strided_slice %186 {offsets = [0, 34], sizes = [16, 512], strides = [1, 1]} : vector<16x1024xf32> to vector<16x512xf32>
    %188 = arith.maximumf %185, %187 : vector<16x512xf32>
    %cst_20 = arith.constant dense<0.000000e+00> : vector<16x128xf32>
    %189 = tpu.matmul %188, %179, %cst_20 {dimension_numbers = #tpu.dot_dimension_numbers<[1], [0], [0], [1], [0, 0, 1, 1], [], []>} : vector<16x512xf32>, vector<512x128xf32>, vector<16x128xf32> -> vector<16x128xf32>
    %c0_21 = arith.constant 0 : index
    %c0_22 = arith.constant 0 : index
    %190 = vector.load %arg8[%c0_21, %c0_22] : memref<16x72xf32, #tpu.memory_space<vmem>>, vector<16x72xf32>
    %c0_23 = arith.constant 0 : index
    %c0_24 = arith.constant 0 : index
    %191 = vector.load %arg9[%c0_23, %c0_24] : memref<32x32xf32, #tpu.memory_space<vmem>>, vector<32x32xf32>
    %c0_25 = arith.constant 0 : index
    %c0_26 = arith.constant 0 : index
    %c0_27 = arith.constant 0 : index
    %192 = vector.load %arg7[%c0_25, %c0_26, %c0_27] : memref<9x1x128xf32, #tpu.memory_space<vmem>>, vector<9x1x128xf32>
    %193 = vector.extract_strided_slice %189 {offsets = [0, 0], sizes = [8, 128], strides = [1, 1]} : vector<16x128xf32> to vector<8x128xf32>
    %194 = tpu.concatenate %193, %193 in 1 : vector<8x128xf32>, vector<8x128xf32> -> vector<8x256xf32>
    %195 = vector.extract_strided_slice %194 {offsets = [0, 110], sizes = [8, 128], strides = [1, 1]} : vector<8x256xf32> to vector<8x128xf32>
    %196 = vector.extract_strided_slice %192 {offsets = [0, 0, 0], sizes = [1, 1, 128], strides = [1, 1, 1]} : vector<9x1x128xf32> to vector<1x1x128xf32>
    %197 = vector.shape_cast %196 : vector<1x1x128xf32> to vector<1x128xf32>
    %198 = vector.broadcast %197 : vector<1x128xf32> to vector<8x128xf32>
    %199 = arith.mulf %195, %198 : vector<8x128xf32>
    %200 = tpu.concatenate %193, %193 in 1 : vector<8x128xf32>, vector<8x128xf32> -> vector<8x256xf32>
    %201 = vector.extract_strided_slice %200 {offsets = [0, 112], sizes = [8, 128], strides = [1, 1]} : vector<8x256xf32> to vector<8x128xf32>
    %202 = vector.extract_strided_slice %192 {offsets = [1, 0, 0], sizes = [1, 1, 128], strides = [1, 1, 1]} : vector<9x1x128xf32> to vector<1x1x128xf32>
    %203 = vector.shape_cast %202 : vector<1x1x128xf32> to vector<1x128xf32>
    %204 = vector.broadcast %203 : vector<1x128xf32> to vector<8x128xf32>
    %205 = arith.mulf %201, %204 : vector<8x128xf32>
    %206 = tpu.concatenate %193, %193 in 1 : vector<8x128xf32>, vector<8x128xf32> -> vector<8x256xf32>
    %207 = vector.extract_strided_slice %206 {offsets = [0, 114], sizes = [8, 128], strides = [1, 1]} : vector<8x256xf32> to vector<8x128xf32>
    %208 = vector.extract_strided_slice %192 {offsets = [2, 0, 0], sizes = [1, 1, 128], strides = [1, 1, 1]} : vector<9x1x128xf32> to vector<1x1x128xf32>
    %209 = vector.shape_cast %208 : vector<1x1x128xf32> to vector<1x128xf32>
    %210 = vector.broadcast %209 : vector<1x128xf32> to vector<8x128xf32>
    %211 = arith.mulf %207, %210 : vector<8x128xf32>
    %212 = tpu.concatenate %193, %193 in 1 : vector<8x128xf32>, vector<8x128xf32> -> vector<8x256xf32>
    %213 = vector.extract_strided_slice %212 {offsets = [0, 126], sizes = [8, 128], strides = [1, 1]} : vector<8x256xf32> to vector<8x128xf32>
    %214 = vector.extract_strided_slice %192 {offsets = [3, 0, 0], sizes = [1, 1, 128], strides = [1, 1, 1]} : vector<9x1x128xf32> to vector<1x1x128xf32>
    %215 = vector.shape_cast %214 : vector<1x1x128xf32> to vector<1x128xf32>
    %216 = vector.broadcast %215 : vector<1x128xf32> to vector<8x128xf32>
    %217 = arith.mulf %213, %216 : vector<8x128xf32>
    %218 = vector.extract_strided_slice %192 {offsets = [4, 0, 0], sizes = [1, 1, 128], strides = [1, 1, 1]} : vector<9x1x128xf32> to vector<1x1x128xf32>
    %219 = vector.shape_cast %218 : vector<1x1x128xf32> to vector<1x128xf32>
    %220 = vector.broadcast %219 : vector<1x128xf32> to vector<8x128xf32>
    %221 = arith.mulf %193, %220 : vector<8x128xf32>
    %222 = tpu.concatenate %193, %193 in 1 : vector<8x128xf32>, vector<8x128xf32> -> vector<8x256xf32>
    %223 = vector.extract_strided_slice %222 {offsets = [0, 2], sizes = [8, 128], strides = [1, 1]} : vector<8x256xf32> to vector<8x128xf32>
    %224 = vector.extract_strided_slice %192 {offsets = [5, 0, 0], sizes = [1, 1, 128], strides = [1, 1, 1]} : vector<9x1x128xf32> to vector<1x1x128xf32>
    %225 = vector.shape_cast %224 : vector<1x1x128xf32> to vector<1x128xf32>
    %226 = vector.broadcast %225 : vector<1x128xf32> to vector<8x128xf32>
    %227 = arith.mulf %223, %226 : vector<8x128xf32>
    %228 = tpu.concatenate %193, %193 in 1 : vector<8x128xf32>, vector<8x128xf32> -> vector<8x256xf32>
    %229 = vector.extract_strided_slice %228 {offsets = [0, 14], sizes = [8, 128], strides = [1, 1]} : vector<8x256xf32> to vector<8x128xf32>
    %230 = vector.extract_strided_slice %192 {offsets = [6, 0, 0], sizes = [1, 1, 128], strides = [1, 1, 1]} : vector<9x1x128xf32> to vector<1x1x128xf32>
    %231 = vector.shape_cast %230 : vector<1x1x128xf32> to vector<1x128xf32>
    %232 = vector.broadcast %231 : vector<1x128xf32> to vector<8x128xf32>
    %233 = arith.mulf %229, %232 : vector<8x128xf32>
    %234 = tpu.concatenate %193, %193 in 1 : vector<8x128xf32>, vector<8x128xf32> -> vector<8x256xf32>
    %235 = vector.extract_strided_slice %234 {offsets = [0, 16], sizes = [8, 128], strides = [1, 1]} : vector<8x256xf32> to vector<8x128xf32>
    %236 = vector.extract_strided_slice %192 {offsets = [7, 0, 0], sizes = [1, 1, 128], strides = [1, 1, 1]} : vector<9x1x128xf32> to vector<1x1x128xf32>
    %237 = vector.shape_cast %236 : vector<1x1x128xf32> to vector<1x128xf32>
    %238 = vector.broadcast %237 : vector<1x128xf32> to vector<8x128xf32>
    %239 = arith.mulf %235, %238 : vector<8x128xf32>
    %240 = tpu.concatenate %193, %193 in 1 : vector<8x128xf32>, vector<8x128xf32> -> vector<8x256xf32>
    %241 = vector.extract_strided_slice %240 {offsets = [0, 18], sizes = [8, 128], strides = [1, 1]} : vector<8x256xf32> to vector<8x128xf32>
    %242 = vector.extract_strided_slice %192 {offsets = [8, 0, 0], sizes = [1, 1, 128], strides = [1, 1, 1]} : vector<9x1x128xf32> to vector<1x1x128xf32>
    %243 = vector.shape_cast %242 : vector<1x1x128xf32> to vector<1x128xf32>
    %244 = vector.broadcast %243 : vector<1x128xf32> to vector<8x128xf32>
    %245 = arith.mulf %241, %244 : vector<8x128xf32>
    %246 = tpu.concatenate %199, %205, %211, %217, %221, %227, %233, %239, %245 in 0 : vector<8x128xf32>, vector<8x128xf32>, vector<8x128xf32>, vector<8x128xf32>, vector<8x128xf32>, vector<8x128xf32>, vector<8x128xf32>, vector<8x128xf32>, vector<8x128xf32> -> vector<72x128xf32>
    %247 = vector.extract_strided_slice %189 {offsets = [8, 0], sizes = [8, 128], strides = [1, 1]} : vector<16x128xf32> to vector<8x128xf32>
    %248 = tpu.concatenate %247, %247 in 1 : vector<8x128xf32>, vector<8x128xf32> -> vector<8x256xf32>
    %249 = vector.extract_strided_slice %248 {offsets = [0, 110], sizes = [8, 128], strides = [1, 1]} : vector<8x256xf32> to vector<8x128xf32>
    %250 = vector.extract_strided_slice %192 {offsets = [0, 0, 0], sizes = [1, 1, 128], strides = [1, 1, 1]} : vector<9x1x128xf32> to vector<1x1x128xf32>
    %251 = vector.shape_cast %250 : vector<1x1x128xf32> to vector<1x128xf32>
    %252 = vector.broadcast %251 : vector<1x128xf32> to vector<8x128xf32>
    %253 = arith.mulf %249, %252 : vector<8x128xf32>
    %254 = tpu.concatenate %247, %247 in 1 : vector<8x128xf32>, vector<8x128xf32> -> vector<8x256xf32>
    %255 = vector.extract_strided_slice %254 {offsets = [0, 112], sizes = [8, 128], strides = [1, 1]} : vector<8x256xf32> to vector<8x128xf32>
    %256 = vector.extract_strided_slice %192 {offsets = [1, 0, 0], sizes = [1, 1, 128], strides = [1, 1, 1]} : vector<9x1x128xf32> to vector<1x1x128xf32>
    %257 = vector.shape_cast %256 : vector<1x1x128xf32> to vector<1x128xf32>
    %258 = vector.broadcast %257 : vector<1x128xf32> to vector<8x128xf32>
    %259 = arith.mulf %255, %258 : vector<8x128xf32>
    %260 = tpu.concatenate %247, %247 in 1 : vector<8x128xf32>, vector<8x128xf32> -> vector<8x256xf32>
    %261 = vector.extract_strided_slice %260 {offsets = [0, 114], sizes = [8, 128], strides = [1, 1]} : vector<8x256xf32> to vector<8x128xf32>
    %262 = vector.extract_strided_slice %192 {offsets = [2, 0, 0], sizes = [1, 1, 128], strides = [1, 1, 1]} : vector<9x1x128xf32> to vector<1x1x128xf32>
    %263 = vector.shape_cast %262 : vector<1x1x128xf32> to vector<1x128xf32>
    %264 = vector.broadcast %263 : vector<1x128xf32> to vector<8x128xf32>
    %265 = arith.mulf %261, %264 : vector<8x128xf32>
    %266 = tpu.concatenate %247, %247 in 1 : vector<8x128xf32>, vector<8x128xf32> -> vector<8x256xf32>
    %267 = vector.extract_strided_slice %266 {offsets = [0, 126], sizes = [8, 128], strides = [1, 1]} : vector<8x256xf32> to vector<8x128xf32>
    %268 = vector.extract_strided_slice %192 {offsets = [3, 0, 0], sizes = [1, 1, 128], strides = [1, 1, 1]} : vector<9x1x128xf32> to vector<1x1x128xf32>
    %269 = vector.shape_cast %268 : vector<1x1x128xf32> to vector<1x128xf32>
    %270 = vector.broadcast %269 : vector<1x128xf32> to vector<8x128xf32>
    %271 = arith.mulf %267, %270 : vector<8x128xf32>
    %272 = vector.extract_strided_slice %192 {offsets = [4, 0, 0], sizes = [1, 1, 128], strides = [1, 1, 1]} : vector<9x1x128xf32> to vector<1x1x128xf32>
    %273 = vector.shape_cast %272 : vector<1x1x128xf32> to vector<1x128xf32>
    %274 = vector.broadcast %273 : vector<1x128xf32> to vector<8x128xf32>
    %275 = arith.mulf %247, %274 : vector<8x128xf32>
    %276 = tpu.concatenate %247, %247 in 1 : vector<8x128xf32>, vector<8x128xf32> -> vector<8x256xf32>
    %277 = vector.extract_strided_slice %276 {offsets = [0, 2], sizes = [8, 128], strides = [1, 1]} : vector<8x256xf32> to vector<8x128xf32>
    %278 = vector.extract_strided_slice %192 {offsets = [5, 0, 0], sizes = [1, 1, 128], strides = [1, 1, 1]} : vector<9x1x128xf32> to vector<1x1x128xf32>
    %279 = vector.shape_cast %278 : vector<1x1x128xf32> to vector<1x128xf32>
    %280 = vector.broadcast %279 : vector<1x128xf32> to vector<8x128xf32>
    %281 = arith.mulf %277, %280 : vector<8x128xf32>
    %282 = tpu.concatenate %247, %247 in 1 : vector<8x128xf32>, vector<8x128xf32> -> vector<8x256xf32>
    %283 = vector.extract_strided_slice %282 {offsets = [0, 14], sizes = [8, 128], strides = [1, 1]} : vector<8x256xf32> to vector<8x128xf32>
    %284 = vector.extract_strided_slice %192 {offsets = [6, 0, 0], sizes = [1, 1, 128], strides = [1, 1, 1]} : vector<9x1x128xf32> to vector<1x1x128xf32>
    %285 = vector.shape_cast %284 : vector<1x1x128xf32> to vector<1x128xf32>
    %286 = vector.broadcast %285 : vector<1x128xf32> to vector<8x128xf32>
    %287 = arith.mulf %283, %286 : vector<8x128xf32>
    %288 = tpu.concatenate %247, %247 in 1 : vector<8x128xf32>, vector<8x128xf32> -> vector<8x256xf32>
    %289 = vector.extract_strided_slice %288 {offsets = [0, 16], sizes = [8, 128], strides = [1, 1]} : vector<8x256xf32> to vector<8x128xf32>
    %290 = vector.extract_strided_slice %192 {offsets = [7, 0, 0], sizes = [1, 1, 128], strides = [1, 1, 1]} : vector<9x1x128xf32> to vector<1x1x128xf32>
    %291 = vector.shape_cast %290 : vector<1x1x128xf32> to vector<1x128xf32>
    %292 = vector.broadcast %291 : vector<1x128xf32> to vector<8x128xf32>
    %293 = arith.mulf %289, %292 : vector<8x128xf32>
    %294 = tpu.concatenate %247, %247 in 1 : vector<8x128xf32>, vector<8x128xf32> -> vector<8x256xf32>
    %295 = vector.extract_strided_slice %294 {offsets = [0, 18], sizes = [8, 128], strides = [1, 1]} : vector<8x256xf32> to vector<8x128xf32>
    %296 = vector.extract_strided_slice %192 {offsets = [8, 0, 0], sizes = [1, 1, 128], strides = [1, 1, 1]} : vector<9x1x128xf32> to vector<1x1x128xf32>
    %297 = vector.shape_cast %296 : vector<1x1x128xf32> to vector<1x128xf32>
    %298 = vector.broadcast %297 : vector<1x128xf32> to vector<8x128xf32>
    %299 = arith.mulf %295, %298 : vector<8x128xf32>
    %300 = tpu.concatenate %253, %259, %265, %271, %275, %281, %287, %293, %299 in 0 : vector<8x128xf32>, vector<8x128xf32>, vector<8x128xf32>, vector<8x128xf32>, vector<8x128xf32>, vector<8x128xf32>, vector<8x128xf32>, vector<8x128xf32>, vector<8x128xf32> -> vector<72x128xf32>
    %301 = tpu.concatenate %246, %300 in 1 : vector<72x128xf32>, vector<72x128xf32> -> vector<72x256xf32>
    %cst_28 = arith.constant dense<0.000000e+00> : vector<16x256xf32>
    %302 = tpu.matmul %190, %301, %cst_28 {dimension_numbers = #tpu.dot_dimension_numbers<[1], [0], [0], [1], [0, 0, 1, 1], [], []>} : vector<16x72xf32>, vector<72x256xf32>, vector<16x256xf32> -> vector<16x256xf32>
    %303 = vector.extract_strided_slice %302 {offsets = [0, 0], sizes = [16, 128], strides = [1, 1]} : vector<16x256xf32> to vector<16x128xf32>
    %304 = vector.extract_strided_slice %302 {offsets = [0, 128], sizes = [16, 128], strides = [1, 1]} : vector<16x256xf32> to vector<16x128xf32>
    %305 = tpu.concatenate %303, %304 in 0 : vector<16x128xf32>, vector<16x128xf32> -> vector<32x128xf32>
    %cst_29 = arith.constant dense<0.000000e+00> : vector<32x128xf32>
    %306 = tpu.matmul %191, %305, %cst_29 {dimension_numbers = #tpu.dot_dimension_numbers<[1], [0], [0], [1], [0, 0, 1, 1], [], []>} : vector<32x32xf32>, vector<32x128xf32>, vector<32x128xf32> -> vector<32x128xf32>
    %cst_30 = arith.constant 0.000000e+00 : f32
    %307 = vector.broadcast %cst_30 : f32 to vector<32x128xf32>
    %308 = arith.maximumf %306, %307 : vector<32x128xf32>
    %c0_31 = arith.constant 0 : index
    %c0_32 = arith.constant 0 : index
    %309 = vector.load %arg10[%c0_31, %c0_32] : memref<128x32xf32, #tpu.memory_space<vmem>>, vector<128x32xf32>
    %310 = tpu.concatenate %308, %308 in 1 : vector<32x128xf32>, vector<32x128xf32> -> vector<32x256xf32>
    %311 = vector.extract_strided_slice %310 {offsets = [0, 2], sizes = [32, 128], strides = [1, 1]} : vector<32x256xf32> to vector<32x128xf32>
    %312 = arith.maximumf %308, %311 : vector<32x128xf32>
    %313 = tpu.concatenate %308, %308 in 1 : vector<32x128xf32>, vector<32x128xf32> -> vector<32x256xf32>
    %314 = vector.extract_strided_slice %313 {offsets = [0, 16], sizes = [32, 128], strides = [1, 1]} : vector<32x256xf32> to vector<32x128xf32>
    %315 = arith.maximumf %312, %314 : vector<32x128xf32>
    %316 = tpu.concatenate %308, %308 in 1 : vector<32x128xf32>, vector<32x128xf32> -> vector<32x256xf32>
    %317 = vector.extract_strided_slice %316 {offsets = [0, 18], sizes = [32, 128], strides = [1, 1]} : vector<32x256xf32> to vector<32x128xf32>
    %318 = arith.maximumf %315, %317 : vector<32x128xf32>
    %cst_33 = arith.constant dense<0.000000e+00> : vector<32x32xf32>
    %319 = tpu.matmul %318, %309, %cst_33 {dimension_numbers = #tpu.dot_dimension_numbers<[1], [0], [0], [1], [0, 0, 1, 1], [], []>} : vector<32x128xf32>, vector<128x32xf32>, vector<32x32xf32> -> vector<32x32xf32>
    %320 = vector.extract_strided_slice %319 {offsets = [0, 0], sizes = [32, 2], strides = [1, 1]} : vector<32x32xf32> to vector<32x2xf32>
    %321 = vector.extract_strided_slice %319 {offsets = [0, 2], sizes = [32, 2], strides = [1, 1]} : vector<32x32xf32> to vector<32x2xf32>
    %322 = vector.extract_strided_slice %319 {offsets = [0, 4], sizes = [32, 2], strides = [1, 1]} : vector<32x32xf32> to vector<32x2xf32>
    %323 = vector.extract_strided_slice %319 {offsets = [0, 6], sizes = [32, 2], strides = [1, 1]} : vector<32x32xf32> to vector<32x2xf32>
    %324 = vector.extract_strided_slice %319 {offsets = [0, 8], sizes = [32, 2], strides = [1, 1]} : vector<32x32xf32> to vector<32x2xf32>
    %325 = vector.extract_strided_slice %319 {offsets = [0, 10], sizes = [32, 2], strides = [1, 1]} : vector<32x32xf32> to vector<32x2xf32>
    %326 = vector.extract_strided_slice %319 {offsets = [0, 12], sizes = [32, 2], strides = [1, 1]} : vector<32x32xf32> to vector<32x2xf32>
    %327 = vector.extract_strided_slice %319 {offsets = [0, 14], sizes = [32, 2], strides = [1, 1]} : vector<32x32xf32> to vector<32x2xf32>
    %328 = vector.extract_strided_slice %319 {offsets = [0, 16], sizes = [32, 2], strides = [1, 1]} : vector<32x32xf32> to vector<32x2xf32>
    %329 = vector.extract_strided_slice %319 {offsets = [0, 18], sizes = [32, 2], strides = [1, 1]} : vector<32x32xf32> to vector<32x2xf32>
    %330 = vector.extract_strided_slice %319 {offsets = [0, 20], sizes = [32, 2], strides = [1, 1]} : vector<32x32xf32> to vector<32x2xf32>
    %331 = vector.extract_strided_slice %319 {offsets = [0, 22], sizes = [32, 2], strides = [1, 1]} : vector<32x32xf32> to vector<32x2xf32>
    %332 = vector.extract_strided_slice %319 {offsets = [0, 24], sizes = [32, 2], strides = [1, 1]} : vector<32x32xf32> to vector<32x2xf32>
    %333 = vector.extract_strided_slice %319 {offsets = [0, 26], sizes = [32, 2], strides = [1, 1]} : vector<32x32xf32> to vector<32x2xf32>
    %334 = vector.extract_strided_slice %319 {offsets = [0, 28], sizes = [32, 2], strides = [1, 1]} : vector<32x32xf32> to vector<32x2xf32>
    %335 = vector.extract_strided_slice %319 {offsets = [0, 30], sizes = [32, 2], strides = [1, 1]} : vector<32x32xf32> to vector<32x2xf32>
    %336 = tpu.concatenate %320, %321, %322, %323, %324, %325, %326, %327, %328, %329, %330, %331, %332, %333, %334, %335 in 0 : vector<32x2xf32>, vector<32x2xf32>, vector<32x2xf32>, vector<32x2xf32>, vector<32x2xf32>, vector<32x2xf32>, vector<32x2xf32>, vector<32x2xf32>, vector<32x2xf32>, vector<32x2xf32>, vector<32x2xf32>, vector<32x2xf32>, vector<32x2xf32>, vector<32x2xf32>, vector<32x2xf32>, vector<32x2xf32> -> vector<512x2xf32>
    %c0_34 = arith.constant 0 : index
    %c0_35 = arith.constant 0 : index
    %337 = vector.load %arg11[%c0_34, %c0_35] : memref<10x512xf32, #tpu.memory_space<vmem>>, vector<10x512xf32>
    %cst_36 = arith.constant dense<0.000000e+00> : vector<10x2xf32>
    %338 = tpu.matmul %337, %336, %cst_36 {dimension_numbers = #tpu.dot_dimension_numbers<[1], [0], [0], [1], [0, 0, 1, 1], [], []>} : vector<10x512xf32>, vector<512x2xf32>, vector<10x2xf32> -> vector<10x2xf32>
    %c0_37 = arith.constant 0 : index
    %c0_38 = arith.constant 0 : index
    %339 = vector.load %arg12[%c0_37, %c0_38] : memref<10x1xf32, #tpu.memory_space<vmem>>, vector<10x1xf32>
    %340 = vector.broadcast %339 : vector<10x1xf32> to vector<10x2xf32>
    %341 = arith.addf %338, %340 : vector<10x2xf32>
    %c0_39 = arith.constant 0 : index
    %c0_40 = arith.constant 0 : index
    %342 = vector.load %arg13[%c0_39, %c0_40] : memref<10x2xf32, #tpu.memory_space<vmem>>, vector<10x2xf32>
    tpu.vector_store %arg13[%c0_39, %c0_40], %341 {strides = array<i32>} : memref<10x2xf32, #tpu.memory_space<vmem>>, vector<10x2xf32>,
    return
  }
}

</mosaic_0001>

<llo_original>
// kernel: cnn_flanc_forward.1
$region0: #{cnn_flanc_forward.1}
  #allocation0 [shape = 'u32[]', space=smem, size = 0x4, offset = 0x4, fixed_abs, tag = 'smem constant byte address 0x4 - core index']
  #allocation1 [shape = 'u32[144,128]{1,0:T(1,128)}', space=vmem, size = 0x12000, scoped, tag = 'internal scratch']
  %s0 = inlined_call_operand.vmem [shape: f32[3,512], index: 0, kind: input, shape index: {}]
  %s1 = inlined_call_operand.vmem [shape: f32[8,27], index: 1, kind: input, shape index: {}]
  %s2 = inlined_call_operand.vmem [shape: f32[8,1], index: 2, kind: input, shape index: {}]
  %s3 = inlined_call_operand.vmem [shape: f32[9,1,512], index: 3, kind: input, shape index: {}]
  %s4 = inlined_call_operand.vmem [shape: f32[8,36], index: 4, kind: input, shape index: {}]
  %s5 = inlined_call_operand.vmem [shape: f32[16,16], index: 5, kind: input, shape index: {}]
  %s6 = inlined_call_operand.vmem [shape: f32[512,128], index: 6, kind: input, shape index: {}]
  %s7 = inlined_call_operand.vmem [shape: f32[9,1,128], index: 7, kind: input, shape index: {}]
  %s8 = inlined_call_operand.vmem [shape: f32[16,72], index: 8, kind: input, shape index: {}]
  %s9 = inlined_call_operand.vmem [shape: f32[32,32], index: 9, kind: input, shape index: {}]
  %s10 = inlined_call_operand.vmem [shape: f32[128,32], index: 10, kind: input, shape index: {}]
  %s11 = inlined_call_operand.vmem [shape: f32[10,512], index: 11, kind: input, shape index: {}]
  %s12 = inlined_call_operand.vmem [shape: f32[10,1], index: 12, kind: input, shape index: {}]
  %s13 = inlined_call_operand.vmem [shape: f32[10,2], index: 13, kind: output, shape index: {}]
  %s14 = sld [smem:[#allocation0]]
  $region62: #{cnn_flanc_forward.1} parent=0
    _
  %s16 = ssub.s32 1, %s14
  %s17 = scalar_select 0, %s16, %s14
  // Predicated region
  $region2: #{cnn_flanc_forward.1} parent=0 // pred_check
    _
  $region3: #{cnn_flanc_forward.1} parent=0 // pred_check_branch
    %19 = sbr.rel (0) target = $region5
  $region4: #{cnn_flanc_forward.1} parent=0 // pred_region
    _
  $region5: #{cnn_flanc_forward.1} parent=0 // pred_fallthru
    _
  // Predicated region
  $region6: #{cnn_flanc_forward.1} parent=0 // pred_check
    _
  $region7: #{cnn_flanc_forward.1} parent=0 // pred_check_branch
    %21 = sbr.rel (0) target = $region9
  $region8: #{cnn_flanc_forward.1} parent=0 // pred_region
    _
  $region9: #{cnn_flanc_forward.1} parent=0 // pred_fallthru
    _
  // Predicated region
  $region10: #{cnn_flanc_forward.1} parent=0 // pred_check
    _
  $region11: #{cnn_flanc_forward.1} parent=0 // pred_check_branch
    %23 = sbr.rel (0) target = $region13
  $region12: #{cnn_flanc_forward.1} parent=0 // pred_region
    _
  $region13: #{cnn_flanc_forward.1} parent=0 // pred_fallthru
    _
  // Predicated region
  $region14: #{cnn_flanc_forward.1} parent=0 // pred_check
    _
  $region15: #{cnn_flanc_forward.1} parent=0 // pred_check_branch
    %25 = sbr.rel (0) target = $region17
  $region16: #{cnn_flanc_forward.1} parent=0 // pred_region
    _
  $region17: #{cnn_flanc_forward.1} parent=0 // pred_fallthru
    _
  // Predicated region
  $region18: #{cnn_flanc_forward.1} parent=0 // pred_check
    _
  $region19: #{cnn_flanc_forward.1} parent=0 // pred_check_branch
    %27 = sbr.rel (0) target = $region21
  $region20: #{cnn_flanc_forward.1} parent=0 // pred_region
    _
  $region21: #{cnn_flanc_forward.1} parent=0 // pred_fallthru
    _
  // Predicated region
  $region22: #{cnn_flanc_forward.1} parent=0 // pred_check
    _
  $region23: #{cnn_flanc_forward.1} parent=0 // pred_check_branch
    %29 = sbr.rel (0) target = $region25
  $region24: #{cnn_flanc_forward.1} parent=0 // pred_region
    _
  $region25: #{cnn_flanc_forward.1} parent=0 // pred_fallthru
    _
  // Predicated region
  $region26: #{cnn_flanc_forward.1} parent=0 // pred_check
    _
  $region27: #{cnn_flanc_forward.1} parent=0 // pred_check_branch
    %31 = sbr.rel (0) target = $region29
  $region28: #{cnn_flanc_forward.1} parent=0 // pred_region
    _
  $region29: #{cnn_flanc_forward.1} parent=0 // pred_fallthru
    _
  // Predicated region
  $region30: #{cnn_flanc_forward.1} parent=0 // pred_check
    _
  $region31: #{cnn_flanc_forward.1} parent=0 // pred_check_branch
    %33 = sbr.rel (0) target = $region33
  $region32: #{cnn_flanc_forward.1} parent=0 // pred_region
    _
  $region33: #{cnn_flanc_forward.1} parent=0 // pred_fallthru
    _
  // Predicated region
  $region34: #{cnn_flanc_forward.1} parent=0 // pred_check
    _
  $region35: #{cnn_flanc_forward.1} parent=0 // pred_check_branch
    %35 = sbr.rel (0) target = $region37
  $region36: #{cnn_flanc_forward.1} parent=0 // pred_region
    _
  $region37: #{cnn_flanc_forward.1} parent=0 // pred_fallthru
    _
  // Predicated region
  $region38: #{cnn_flanc_forward.1} parent=0 // pred_check
    _
  $region39: #{cnn_flanc_forward.1} parent=0 // pred_check_branch
    %37 = sbr.rel (0) target = $region41
  $region40: #{cnn_flanc_forward.1} parent=0 // pred_region
    _
  $region41: #{cnn_flanc_forward.1} parent=0 // pred_fallthru
    _
  // Predicated region
  $region42: #{cnn_flanc_forward.1} parent=0 // pred_check
    _
  $region43: #{cnn_flanc_forward.1} parent=0 // pred_check_branch
    %39 = sbr.rel (0) target = $region45
  $region44: #{cnn_flanc_forward.1} parent=0 // pred_region
    _
  $region45: #{cnn_flanc_forward.1} parent=0 // pred_fallthru
    _
  // Predicated region
  $region46: #{cnn_flanc_forward.1} parent=0 // pred_check
    _
  $region47: #{cnn_flanc_forward.1} parent=0 // pred_check_branch
    %41 = sbr.rel (0) target = $region49
  $region48: #{cnn_flanc_forward.1} parent=0 // pred_region
    _
  $region49: #{cnn_flanc_forward.1} parent=0 // pred_fallthru
    _
  // Predicated region
  $region50: #{cnn_flanc_forward.1} parent=0 // pred_check
    _
  $region51: #{cnn_flanc_forward.1} parent=0 // pred_check_branch
    %43 = sbr.rel (0) target = $region53
  $region52: #{cnn_flanc_forward.1} parent=0 // pred_region
    _
  $region53: #{cnn_flanc_forward.1} parent=0 // pred_fallthru
    _
  %v44 = vld [vmem:[%s0] sm:$0x77]
  %v45 = vld [vmem:[%s0 + $0x8] sm:$0x77]
  %v46 = vld [vmem:[%s1] sm:$0xff]
  %v47 = vld [vmem:[%s3] sm:$0xf]
  %v48 = vld [vmem:[%s3 + $0x4] sm:$0xf]
  %v49 = vld [vmem:[%s3 + $0x8] sm:$0xf]
  %v50 = vld [vmem:[%s3 + $0xc] sm:$0xf]
  %v51 = vld [vmem:[%s3 + $0x10] sm:$0xf]
  %v52 = vld [vmem:[%s3 + $0x14] sm:$0xf]
  %v53 = vld [vmem:[%s3 + $0x18] sm:$0xf]
  %v54 = vld [vmem:[%s3 + $0x1c] sm:$0xf]
  %v55 = vld [vmem:[%s3 + $0x20] sm:$0xf]
  %v58 = vcombine.high %v44, %v44
  %v59 = vcombine.high %v45, %v45
  %v63 = vlaneseq
  %v64 = vshrl.u32 %v63, 7
  %v65 = vsub.s32 0, %v64
  %v66 = vrot.slane %v47, %v65
  %v67 = vlaneseq
  %v68 = vshrl.u32 %v67, 7
  %v69 = vsub.s32 1, %v68
  %v70 = vrot.slane %v47, %v69
  %v71 = vlaneseq
  %v72 = vshrl.u32 %v71, 7
  %v73 = vsub.s32 2, %v72
  %v74 = vrot.slane %v47, %v73
  %v75 = vlaneseq
  %v76 = vshrl.u32 %v75, 7
  %v77 = vsub.s32 3, %v76
  %v78 = vrot.slane %v47, %v77
  %79 = vrot.lane.b32.xlu0 %v66, 94
  %v80 = vpop.permute.xlu0 %79
  %81 = vrot.lane.b32.xlu0 %v70, 94
  %v82 = vpop.permute.xlu0 %81
  %83 = vrot.lane.b32.xlu0 %v74, 94
  %v84 = vpop.permute.xlu0 %83
  %85 = vrot.lane.b32.xlu0 %v78, 94
  %v86 = vpop.permute.xlu0 %85
  %vm87 = vcmask 769024
  %v88 = vsel %vm87, %v80, %v82
  %v89 = vsel %vm87, %v82, %v84
  %v90 = vsel %vm87, %v84, %v86
  %v96 = vmul.f32 %v59, %v80
  %v97 = vmul.f32 %v44, %v88
  %v98 = vmul.f32 %v58, %v89
  %v99 = vmul.f32 %v45, %v90
  %v100 = vmul.f32 %v59, %v86
  %v102 = vlaneseq
  %v103 = vshrl.u32 %v102, 7
  %v104 = vsub.s32 0, %v103
  %v105 = vrot.slane %v48, %v104
  %v106 = vlaneseq
  %v107 = vshrl.u32 %v106, 7
  %v108 = vsub.s32 1, %v107
  %v109 = vrot.slane %v48, %v108
  %v110 = vlaneseq
  %v111 = vshrl.u32 %v110, 7
  %v112 = vsub.s32 2, %v111
  %v113 = vrot.slane %v48, %v112
  %v114 = vlaneseq
  %v115 = vshrl.u32 %v114, 7
  %v116 = vsub.s32 3, %v115
  %v117 = vrot.slane %v48, %v116
  %118 = vrot.lane.b32.xlu0 %v105, 96
  %v119 = vpop.permute.xlu0 %118
  %120 = vrot.lane.b32.xlu0 %v109, 96
  %v121 = vpop.permute.xlu0 %120
  %122 = vrot.lane.b32.xlu0 %v113, 96
  %v123 = vpop.permute.xlu0 %122
  %124 = vrot.lane.b32.xlu0 %v117, 96
  %v125 = vpop.permute.xlu0 %124
  %vm126 = vcmask 785408
  %v127 = vsel %vm126, %v119, %v121
  %v128 = vsel %vm126, %v121, %v123
  %v129 = vsel %vm126, %v123, %v125
  %v135 = vmul.f32 %v59, %v119
  %v136 = vmul.f32 %v44, %v127
  %v137 = vmul.f32 %v58, %v128
  %v138 = vmul.f32 %v45, %v129
  %v139 = vmul.f32 %v59, %v125
  %v141 = vlaneseq
  %v142 = vshrl.u32 %v141, 7
  %v143 = vsub.s32 0, %v142
  %v144 = vrot.slane %v49, %v143
  %v145 = vlaneseq
  %v146 = vshrl.u32 %v145, 7
  %v147 = vsub.s32 1, %v146
  %v148 = vrot.slane %v49, %v147
  %v149 = vlaneseq
  %v150 = vshrl.u32 %v149, 7
  %v151 = vsub.s32 2, %v150
  %v152 = vrot.slane %v49, %v151
  %v153 = vlaneseq
  %v154 = vshrl.u32 %v153, 7
  %v155 = vsub.s32 3, %v154
  %v156 = vrot.slane %v49, %v155
  %157 = vrot.lane.b32.xlu0 %v144, 98
  %v158 = vpop.permute.xlu0 %157
  %159 = vrot.lane.b32.xlu0 %v148, 98
  %v160 = vpop.permute.xlu0 %159
  %161 = vrot.lane.b32.xlu0 %v152, 98
  %v162 = vpop.permute.xlu0 %161
  %163 = vrot.lane.b32.xlu0 %v156, 98
  %v164 = vpop.permute.xlu0 %163
  %vm165 = vcmask 801792
  %v166 = vsel %vm165, %v158, %v160
  %v167 = vsel %vm165, %v160, %v162
  %v168 = vsel %vm165, %v162, %v164
  %v174 = vmul.f32 %v59, %v158
  %v175 = vmul.f32 %v44, %v166
  %v176 = vmul.f32 %v58, %v167
  %v177 = vmul.f32 %v45, %v168
  %v178 = vmul.f32 %v59, %v164
  %v180 = vlaneseq
  %v181 = vshrl.u32 %v180, 7
  %v182 = vsub.s32 0, %v181
  %v183 = vrot.slane %v50, %v182
  %v184 = vlaneseq
  %v185 = vshrl.u32 %v184, 7
  %v186 = vsub.s32 1, %v185
  %v187 = vrot.slane %v50, %v186
  %v188 = vlaneseq
  %v189 = vshrl.u32 %v188, 7
  %v190 = vsub.s32 2, %v189
  %v191 = vrot.slane %v50, %v190
  %v192 = vlaneseq
  %v193 = vshrl.u32 %v192, 7
  %v194 = vsub.s32 3, %v193
  %v195 = vrot.slane %v50, %v194
  %196 = vrot.lane.b32.xlu0 %v183, 126
  %v197 = vpop.permute.xlu0 %196
  %198 = vrot.lane.b32.xlu0 %v187, 126
  %v199 = vpop.permute.xlu0 %198
  %200 = vrot.lane.b32.xlu0 %v191, 126
  %v201 = vpop.permute.xlu0 %200
  %202 = vrot.lane.b32.xlu0 %v195, 126
  %v203 = vpop.permute.xlu0 %202
  %vm204 = vcmask 1031168
  %v205 = vsel %vm204, %v197, %v199
  %v206 = vsel %vm204, %v199, %v201
  %v207 = vsel %vm204, %v201, %v203
  %v213 = vmul.f32 %v59, %v197
  %v214 = vmul.f32 %v44, %v205
  %v215 = vmul.f32 %v58, %v206
  %v216 = vmul.f32 %v45, %v207
  %v217 = vmul.f32 %v59, %v203
  %v219 = vlaneseq
  %v220 = vshrl.u32 %v219, 7
  %v221 = vsub.s32 0, %v220
  %v222 = vrot.slane %v51, %v221
  %v223 = vlaneseq
  %v224 = vshrl.u32 %v223, 7
  %v225 = vsub.s32 1, %v224
  %v226 = vrot.slane %v51, %v225
  %v227 = vlaneseq
  %v228 = vshrl.u32 %v227, 7
  %v229 = vsub.s32 2, %v228
  %v230 = vrot.slane %v51, %v229
  %v231 = vlaneseq
  %v232 = vshrl.u32 %v231, 7
  %v233 = vsub.s32 3, %v232
  %v234 = vrot.slane %v51, %v233
  %v235 = vcombine.low %v222, %v226
  %v236 = vcombine.low %v230, %v234
  %v239 = vmul.f32 %v44, %v235
  %v240 = vmul.f32 %v45, %v236
  %v242 = vlaneseq
  %v243 = vshrl.u32 %v242, 7
  %v244 = vsub.s32 0, %v243
  %v245 = vrot.slane %v52, %v244
  %v246 = vlaneseq
  %v247 = vshrl.u32 %v246, 7
  %v248 = vsub.s32 1, %v247
  %v249 = vrot.slane %v52, %v248
  %v250 = vlaneseq
  %v251 = vshrl.u32 %v250, 7
  %v252 = vsub.s32 2, %v251
  %v253 = vrot.slane %v52, %v252
  %v254 = vlaneseq
  %v255 = vshrl.u32 %v254, 7
  %v256 = vsub.s32 3, %v255
  %v257 = vrot.slane %v52, %v256
  %258 = vrot.lane.b32.xlu0 %v245, 2
  %v259 = vpop.permute.xlu0 %258
  %260 = vrot.lane.b32.xlu0 %v249, 2
  %v261 = vpop.permute.xlu0 %260
  %262 = vrot.lane.b32.xlu0 %v253, 2
  %v263 = vpop.permute.xlu0 %262
  %264 = vrot.lane.b32.xlu0 %v257, 2
  %v265 = vpop.permute.xlu0 %264
  %vm266 = vcmask 15360
  %v267 = vsel %vm266, %v259, %v261
  %v268 = vsel %vm266, %v261, %v263
  %v269 = vsel %vm266, %v263, %v265
  %v275 = vmul.f32 %v44, %v259
  %v276 = vmul.f32 %v58, %v267
  %v277 = vmul.f32 %v45, %v268
  %v278 = vmul.f32 %v59, %v269
  %v279 = vmul.f32 %v44, %v265
  %v281 = vlaneseq
  %v282 = vshrl.u32 %v281, 7
  %v283 = vsub.s32 0, %v282
  %v284 = vrot.slane %v53, %v283
  %v285 = vlaneseq
  %v286 = vshrl.u32 %v285, 7
  %v287 = vsub.s32 1, %v286
  %v288 = vrot.slane %v53, %v287
  %v289 = vlaneseq
  %v290 = vshrl.u32 %v289, 7
  %v291 = vsub.s32 2, %v290
  %v292 = vrot.slane %v53, %v291
  %v293 = vlaneseq
  %v294 = vshrl.u32 %v293, 7
  %v295 = vsub.s32 3, %v294
  %v296 = vrot.slane %v53, %v295
  %297 = vrot.lane.b32.xlu0 %v284, 30
  %v298 = vpop.permute.xlu0 %297
  %299 = vrot.lane.b32.xlu0 %v288, 30
  %v300 = vpop.permute.xlu0 %299
  %301 = vrot.lane.b32.xlu0 %v292, 30
  %v302 = vpop.permute.xlu0 %301
  %303 = vrot.lane.b32.xlu0 %v296, 30
  %v304 = vpop.permute.xlu0 %303
  %vm305 = vcmask 244736
  %v306 = vsel %vm305, %v298, %v300
  %v307 = vsel %vm305, %v300, %v302
  %v308 = vsel %vm305, %v302, %v304
  %v314 = vmul.f32 %v44, %v298
  %v315 = vmul.f32 %v58, %v306
  %v316 = vmul.f32 %v45, %v307
  %v317 = vmul.f32 %v59, %v308
  %v318 = vmul.f32 %v44, %v304
  %v320 = vlaneseq
  %v321 = vshrl.u32 %v320, 7
  %v322 = vsub.s32 0, %v321
  %v323 = vrot.slane %v54, %v322
  %v324 = vlaneseq
  %v325 = vshrl.u32 %v324, 7
  %v326 = vsub.s32 1, %v325
  %v327 = vrot.slane %v54, %v326
  %v328 = vlaneseq
  %v329 = vshrl.u32 %v328, 7
  %v330 = vsub.s32 2, %v329
  %v331 = vrot.slane %v54, %v330
  %v332 = vlaneseq
  %v333 = vshrl.u32 %v332, 7
  %v334 = vsub.s32 3, %v333
  %v335 = vrot.slane %v54, %v334
  %336 = vrot.lane.b32.xlu0 %v323, 32
  %v337 = vpop.permute.xlu0 %336
  %338 = vrot.lane.b32.xlu0 %v327, 32
  %v339 = vpop.permute.xlu0 %338
  %340 = vrot.lane.b32.xlu0 %v331, 32
  %v341 = vpop.permute.xlu0 %340
  %342 = vrot.lane.b32.xlu0 %v335, 32
  %v343 = vpop.permute.xlu0 %342
  %vm344 = vcmask 261120
  %v345 = vsel %vm344, %v337, %v339
  %v346 = vsel %vm344, %v339, %v341
  %v347 = vsel %vm344, %v341, %v343
  %v353 = vmul.f32 %v44, %v337
  %v354 = vmul.f32 %v58, %v345
  %v355 = vmul.f32 %v45, %v346
  %v356 = vmul.f32 %v59, %v347
  %v357 = vmul.f32 %v44, %v343
  %v359 = vlaneseq
  %v360 = vshrl.u32 %v359, 7
  %v361 = vsub.s32 0, %v360
  %v362 = vrot.slane %v55, %v361
  %v363 = vlaneseq
  %v364 = vshrl.u32 %v363, 7
  %v365 = vsub.s32 1, %v364
  %v366 = vrot.slane %v55, %v365
  %v367 = vlaneseq
  %v368 = vshrl.u32 %v367, 7
  %v369 = vsub.s32 2, %v368
  %v370 = vrot.slane %v55, %v369
  %v371 = vlaneseq
  %v372 = vshrl.u32 %v371, 7
  %v373 = vsub.s32 3, %v372
  %v374 = vrot.slane %v55, %v373
  %375 = vrot.lane.b32.xlu0 %v362, 34
  %v376 = vpop.permute.xlu0 %375
  %377 = vrot.lane.b32.xlu0 %v366, 34
  %v378 = vpop.permute.xlu0 %377
  %379 = vrot.lane.b32.xlu0 %v370, 34
  %v380 = vpop.permute.xlu0 %379
  %381 = vrot.lane.b32.xlu0 %v374, 34
  %v382 = vpop.permute.xlu0 %381
  %vm383 = vcmask 277504
  %v384 = vsel %vm383, %v376, %v378
  %v385 = vsel %vm383, %v378, %v380
  %v386 = vsel %vm383, %v380, %v382
  %v392 = vmul.f32 %v44, %v376
  %v393 = vmul.f32 %v58, %v384
  %v394 = vmul.f32 %v45, %v385
  %v395 = vmul.f32 %v59, %v386
  %v396 = vmul.f32 %v44, %v382
  %v402 = vrot.slane %v135, 5
  %v403 = vrot.slane %v136, 5
  %v404 = vrot.slane %v137, 5
  %v405 = vrot.slane %v138, 5
  %v406 = vrot.slane %v139, 5
  %407 = vrot.lane.b32.xlu0 %v402, 126
  %v408 = vpop.permute.xlu0 %407
  %409 = vrot.lane.b32.xlu0 %v403, 126
  %v410 = vpop.permute.xlu0 %409
  %411 = vrot.lane.b32.xlu0 %v404, 126
  %v412 = vpop.permute.xlu0 %411
  %413 = vrot.lane.b32.xlu0 %v405, 126
  %v414 = vpop.permute.xlu0 %413
  %415 = vrot.lane.b32.xlu0 %v406, 126
  %v416 = vpop.permute.xlu0 %415
  %v417 = vsel %vm204, %v408, %v410
  %v418 = vsel %vm204, %v410, %v412
  %v419 = vsel %vm204, %v412, %v414
  %v420 = vsel %vm204, %v414, %v416
  %v431 = vrot.slane %v174, 2
  %v432 = vrot.slane %v175, 2
  %v433 = vrot.slane %v176, 2
  %v434 = vrot.slane %v177, 2
  %v435 = vrot.slane %v178, 2
  %436 = vrot.lane.b32.xlu0 %v431, 124
  %v437 = vpop.permute.xlu0 %436
  %438 = vrot.lane.b32.xlu0 %v432, 124
  %v439 = vpop.permute.xlu0 %438
  %440 = vrot.lane.b32.xlu0 %v433, 124
  %v441 = vpop.permute.xlu0 %440
  %442 = vrot.lane.b32.xlu0 %v434, 124
  %v443 = vpop.permute.xlu0 %442
  %444 = vrot.lane.b32.xlu0 %v435, 124
  %v445 = vpop.permute.xlu0 %444
  %vm446 = vcmask 1014784
  %v447 = vsel %vm446, %v437, %v439
  %v448 = vsel %vm446, %v439, %v441
  %v449 = vsel %vm446, %v441, %v443
  %v450 = vsel %vm446, %v443, %v445
  %v461 = vrot.slane %v213, 7
  %v462 = vrot.slane %v214, 7
  %v463 = vrot.slane %v215, 7
  %v464 = vrot.slane %v216, 7
  %v465 = vrot.slane %v217, 7
  %466 = vrot.lane.b32.xlu0 %v461, 96
  %v467 = vpop.permute.xlu0 %466
  %468 = vrot.lane.b32.xlu0 %v462, 96
  %v469 = vpop.permute.xlu0 %468
  %470 = vrot.lane.b32.xlu0 %v463, 96
  %v471 = vpop.permute.xlu0 %470
  %472 = vrot.lane.b32.xlu0 %v464, 96
  %v473 = vpop.permute.xlu0 %472
  %474 = vrot.lane.b32.xlu0 %v465, 96
  %v475 = vpop.permute.xlu0 %474
  %v476 = vsel %vm126, %v467, %v469
  %v477 = vsel %vm126, %v469, %v471
  %v478 = vsel %vm126, %v471, %v473
  %v479 = vsel %vm126, %v473, %v475
  %v487 = vcombine.low %v239, %v239
  %v488 = vcombine.low %v240, %v240
  %489 = vrot.lane.b32.xlu0 %v487, 94
  %v490 = vpop.permute.xlu0 %489
  %491 = vrot.lane.b32.xlu0 %v239, 94
  %v492 = vpop.permute.xlu0 %491
  %493 = vrot.lane.b32.xlu0 %v488, 94
  %v494 = vpop.permute.xlu0 %493
  %495 = vrot.lane.b32.xlu0 %v240, 94
  %v496 = vpop.permute.xlu0 %495
  %v497 = vsel %vm87, %v490, %v492
  %v498 = vsel %vm87, %v492, %v494
  %v499 = vsel %vm87, %v494, %v496
  %v510 = vrot.slane %v275, 1
  %v511 = vrot.slane %v276, 1
  %v512 = vrot.slane %v277, 1
  %v513 = vrot.slane %v278, 1
  %v514 = vrot.slane %v279, 1
  %515 = vrot.lane.b32.xlu0 %v510, 92
  %v516 = vpop.permute.xlu0 %515
  %517 = vrot.lane.b32.xlu0 %v511, 92
  %v518 = vpop.permute.xlu0 %517
  %519 = vrot.lane.b32.xlu0 %v512, 92
  %v520 = vpop.permute.xlu0 %519
  %521 = vrot.lane.b32.xlu0 %v513, 92
  %v522 = vpop.permute.xlu0 %521
  %523 = vrot.lane.b32.xlu0 %v514, 92
  %v524 = vpop.permute.xlu0 %523
  %vm525 = vcmask 752640
  %v526 = vsel %vm525, %v516, %v518
  %v527 = vsel %vm525, %v518, %v520
  %v528 = vsel %vm525, %v520, %v522
  %v529 = vsel %vm525, %v522, %v524
  %v540 = vrot.slane %v314, 6
  %v541 = vrot.slane %v315, 6
  %v542 = vrot.slane %v316, 6
  %v543 = vrot.slane %v317, 6
  %v544 = vrot.slane %v318, 6
  %545 = vrot.lane.b32.xlu0 %v540, 64
  %v546 = vpop.permute.xlu0 %545
  %547 = vrot.lane.b32.xlu0 %v541, 64
  %v548 = vpop.permute.xlu0 %547
  %549 = vrot.lane.b32.xlu0 %v542, 64
  %v550 = vpop.permute.xlu0 %549
  %551 = vrot.lane.b32.xlu0 %v543, 64
  %v552 = vpop.permute.xlu0 %551
  %553 = vrot.lane.b32.xlu0 %v544, 64
  %v554 = vpop.permute.xlu0 %553
  %vm555 = vcmask 523264
  %v556 = vsel %vm555, %v546, %v548
  %v557 = vsel %vm555, %v548, %v550
  %v558 = vsel %vm555, %v550, %v552
  %v559 = vsel %vm555, %v552, %v554
  %v570 = vrot.slane %v353, 3
  %v571 = vrot.slane %v354, 3
  %v572 = vrot.slane %v355, 3
  %v573 = vrot.slane %v356, 3
  %v574 = vrot.slane %v357, 3
  %575 = vrot.lane.b32.xlu0 %v570, 62
  %v576 = vpop.permute.xlu0 %575
  %577 = vrot.lane.b32.xlu0 %v571, 62
  %v578 = vpop.permute.xlu0 %577
  %579 = vrot.lane.b32.xlu0 %v572, 62
  %v580 = vpop.permute.xlu0 %579
  %581 = vrot.lane.b32.xlu0 %v573, 62
  %v582 = vpop.permute.xlu0 %581
  %583 = vrot.lane.b32.xlu0 %v574, 62
  %v584 = vpop.permute.xlu0 %583
  %vm585 = vcmask 506880
  %v586 = vsel %vm585, %v576, %v578
  %v587 = vsel %vm585, %v578, %v580
  %v588 = vsel %vm585, %v580, %v582
  %v589 = vsel %vm585, %v582, %v584
  %600 = vrot.lane.b32.xlu0 %v392, 60
  %v601 = vpop.permute.xlu0 %600
  %602 = vrot.lane.b32.xlu0 %v393, 60
  %v603 = vpop.permute.xlu0 %602
  %604 = vrot.lane.b32.xlu0 %v394, 60
  %v605 = vpop.permute.xlu0 %604
  %606 = vrot.lane.b32.xlu0 %v395, 60
  %v607 = vpop.permute.xlu0 %606
  %608 = vrot.lane.b32.xlu0 %v396, 60
  %v609 = vpop.permute.xlu0 %608
  %vm610 = vcmask 490496
  %v611 = vsel %vm610, %v601, %v603
  %v612 = vsel %vm610, %v603, %v605
  %v613 = vsel %vm610, %v605, %v607
  %v614 = vsel %vm610, %v607, %v609
  %vm615 = vcmask 1042432
  %v616 = vsel %vm615, %v96, %v417
  %v617 = vsel %vm615, %v97, %v418
  %v618 = vsel %vm615, %v98, %v419
  %v619 = vsel %vm615, %v99, %v420
  %v620 = vsel %vm615, %v100, %v416
  %vm621 = vcmask 1045504
  %v622 = vsel %vm621, %v616, %v447
  %v623 = vsel %vm621, %v617, %v448
  %v624 = vsel %vm621, %v618, %v449
  %v625 = vsel %vm621, %v619, %v450
  %v626 = vsel %vm621, %v620, %v445
  %vm627 = vcmask 1040384
  %v628 = vsel %vm627, %v447, %v476
  %v629 = vsel %vm627, %v448, %v477
  %v630 = vsel %vm627, %v449, %v478
  %v631 = vsel %vm627, %v450, %v479
  %v632 = vsel %vm627, %v445, %v475
  %vm633 = vcmask 1043456
  %v634 = vsel %vm633, %v628, %v490
  %v635 = vsel %vm633, %v629, %v497
  %v636 = vsel %vm633, %v630, %v498
  %v637 = vsel %vm633, %v631, %v499
  %v638 = vsel %vm633, %v632, %v496
  %vm639 = vcmask 1046528
  %v640 = vsel %vm639, %v634, %v516
  %v641 = vsel %vm639, %v635, %v526
  %v642 = vsel %vm639, %v636, %v527
  %v643 = vsel %vm639, %v637, %v528
  %v644 = vsel %vm639, %v638, %v529
  %vm645 = vcmask 1041408
  %v646 = vsel %vm645, %v516, %v546
  %v647 = vsel %vm645, %v526, %v556
  %v648 = vsel %vm645, %v527, %v557
  %v649 = vsel %vm645, %v528, %v558
  %v650 = vsel %vm645, %v529, %v559
  %vm651 = vcmask 1044480
  %v652 = vsel %vm651, %v646, %v576
  %v653 = vsel %vm651, %v647, %v586
  %v654 = vsel %vm651, %v648, %v587
  %v655 = vsel %vm651, %v649, %v588
  %v656 = vsel %vm651, %v650, %v589
  %v657 = vld [vmem:[%s2] sm:$0xff]
  %659 = vset.pattern.permute.xlu0 0
  %660 = vperm.xlu0 %659, %v657
  %v661 = vpop.permute.xlu0 %660
  %678 = vrot.lane.b32.xlu0 %v622, 34
  %v679 = vpop.permute.xlu0 %678
  %680 = vrot.lane.b32.xlu0 %v623, 34
  %v681 = vpop.permute.xlu0 %680
  %682 = vrot.lane.b32.xlu0 %v624, 34
  %v683 = vpop.permute.xlu0 %682
  %684 = vrot.lane.b32.xlu0 %v625, 34
  %v685 = vpop.permute.xlu0 %684
  %686 = vrot.lane.b32.xlu0 %v626, 34
  %v687 = vpop.permute.xlu0 %686
  %688 = vrot.lane.b32.xlu0 %v640, 34
  %v689 = vpop.permute.xlu0 %688
  %690 = vrot.lane.b32.xlu0 %v641, 34
  %v691 = vpop.permute.xlu0 %690
  %692 = vrot.lane.b32.xlu0 %v642, 34
  %v693 = vpop.permute.xlu0 %692
  %694 = vrot.lane.b32.xlu0 %v643, 34
  %v695 = vpop.permute.xlu0 %694
  %696 = vrot.lane.b32.xlu0 %v644, 34
  %v697 = vpop.permute.xlu0 %696
  %698 = vrot.lane.b32.xlu0 %v652, 34
  %v699 = vpop.permute.xlu0 %698
  %700 = vrot.lane.b32.xlu0 %v653, 34
  %v701 = vpop.permute.xlu0 %700
  %702 = vrot.lane.b32.xlu0 %v654, 34
  %v703 = vpop.permute.xlu0 %702
  %704 = vrot.lane.b32.xlu0 %v655, 34
  %v705 = vpop.permute.xlu0 %704
  %706 = vrot.lane.b32.xlu0 %v656, 34
  %v707 = vpop.permute.xlu0 %706
  %708 = vrot.lane.b32.xlu0 %v601, 34
  %v709 = vpop.permute.xlu0 %708
  %710 = vrot.lane.b32.xlu0 %v611, 34
  %v711 = vpop.permute.xlu0 %710
  %712 = vrot.lane.b32.xlu0 %v612, 34
  %v713 = vpop.permute.xlu0 %712
  %714 = vrot.lane.b32.xlu0 %v613, 34
  %v715 = vpop.permute.xlu0 %714
  %716 = vrot.lane.b32.xlu0 %v614, 34
  %v717 = vpop.permute.xlu0 %716
  %v718 = vsel %vm383, %v679, %v681
  %v719 = vsel %vm383, %v681, %v683
  %v720 = vsel %vm383, %v683, %v685
  %v721 = vsel %vm383, %v685, %v687
  %v722 = vsel %vm383, %v689, %v691
  %v723 = vsel %vm383, %v691, %v693
  %v724 = vsel %vm383, %v693, %v695
  %v725 = vsel %vm383, %v695, %v697
  %v726 = vsel %vm383, %v699, %v701
  %v727 = vsel %vm383, %v701, %v703
  %v728 = vsel %vm383, %v703, %v705
  %v729 = vsel %vm383, %v705, %v707
  %v730 = vsel %vm383, %v709, %v711
  %v731 = vsel %vm383, %v711, %v713
  %v732 = vsel %vm383, %v713, %v715
  %v733 = vsel %vm383, %v715, %v717
  %vm746 = vcmask 220160
  %v748 = vsel %vm746, %v46, 0
  %v750 = vsel %vm615, %v730, 0
  %v752 = vsel %vm615, %v731, 0
  %v754 = vsel %vm615, %v732, 0
  %v756 = vsel %vm615, %v733, 0
  %758 = vmatprep.subr.mxu0 %v719
  %759 = vmatpush1.msra.mxu0 %v718
  %760 = vmatprep.subr.mxu0 %v723
  %761 = vmatpush1.msra.mxu0 %v722
  %762 = vmatprep.subr.mxu0 %v727
  %763 = vmatpush1.msra.mxu0 %v726
  %764 = vmatprep.subr.mxu0 %v752
  %765 = vmatpush1.msra.mxu0 %v750
  %766 = vmatprep.subr.mxu0 0.0
  %767 = vmatpush1.msra.mxu0 0.0
  %768 = vmatprep.subr.mxu0 0.0
  %769 = vmatpush1.msra.mxu0 0.0
  %770 = vmatprep.subr.mxu0 0.0
  %771 = vmatpush1.msra.mxu0 0.0
  %772 = vmatprep.subr.mxu0 0.0
  %773 = vmatpush1.msra.mxu0 0.0
  %774 = vmatprep.subr.mxu0 0.0
  %775 = vmatpush1.msra.mxu0 0.0
  %776 = vmatprep.subr.mxu0 0.0
  %777 = vmatpush1.msra.mxu0 0.0
  %778 = vmatprep.subr.mxu0 0.0
  %779 = vmatpush1.msra.mxu0 0.0
  %780 = vmatprep.subr.mxu0 0.0
  %781 = vmatpush1.msra.mxu0 0.0
  %782 = vmatprep.subr.mxu0 0.0
  %783 = vmatpush1.msra.mxu0 0.0
  %784 = vmatprep.subr.mxu0 0.0
  %785 = vmatpush1.msra.mxu0 0.0
  %786 = vmatprep.subr.mxu0 0.0
  %787 = vmatpush1.msra.mxu0 0.0
  %788 = vmatprep.subr.mxu0 0.0
  %789 = vmatpush1.msra.mxu0 0.0
  %790 = vmatprep.subr.mxu0 0.0
  %791 = vmatpush1.msra.mxu0 0.0
  %792 = vmatprep.subr.mxu0 0.0
  %793 = vmatpush1.msra.mxu0 0.0
  %794 = vmatprep.subr.mxu0 0.0
  %795 = vmatpush1.msra.mxu0 0.0
  %796 = vmatprep.subr.mxu0 0.0
  %797 = vmatpush1.msra.mxu0 0.0
  %798 = vmatprep.subr.mxu0 0.0
  %799 = vmatpush1.msra.mxu0 0.0
  %800 = vmatprep.subr.mxu0 0.0
  %801 = vmatpush1.msra.mxu0 0.0
  %802 = vmatprep.subr.mxu0 0.0
  %803 = vmatpush1.msra.mxu0 0.0
  %804 = vmatprep.subr.mxu0 0.0
  %805 = vmatpush1.msra.mxu0 0.0
  %806 = vmatprep.subr.mxu0 0.0
  %807 = vmatpush1.msra.mxu0 0.0
  %808 = vmatprep.subr.mxu0 0.0
  %809 = vmatpush1.msra.mxu0 0.0
  %810 = vmatprep.subr.mxu0 0.0
  %811 = vmatpush1.msra.mxu0 0.0
  %812 = vmatprep.subr.mxu0 0.0
  %813 = vmatpush1.msra.mxu0 0.0
  %814 = vmatprep.subr.mxu0 0.0
  %815 = vmatpush1.msra.mxu0 0.0
  %816 = vmatprep.subr.mxu0 0.0
  %817 = vmatpush1.msra.mxu0 0.0
  %818 = vmatprep.subr.mxu0 0.0
  %819 = vmatpush1.msra.mxu0 0.0
  %820 = vmatprep.subr.mxu0 0.0
  %821 = vmatpush1.msra.mxu0 0.0
  %822 = vmatprep.mubr.f32.mxu0 0.0
  %823 = vmatmul.mubr.f32.gmra.mrb[0].mxu0 %v748
  %v824 = vpop.f32.mrb[0].mxu0
  %v825 = vadd.f32 %v661, %v824
  %v826 = vpop.f32.mrb[0].mxu0
  %v827 = vadd.f32 %v661, %v826
  %828 = vdwg.mxu0
  %829 = vmatprep.subr.mxu0 %v721
  %830 = vmatpush1.msra.mxu0 %v720
  %831 = vmatprep.subr.mxu0 %v725
  %832 = vmatpush1.msra.mxu0 %v724
  %833 = vmatprep.subr.mxu0 %v729
  %834 = vmatpush1.msra.mxu0 %v728
  %835 = vmatprep.subr.mxu0 %v756
  %836 = vmatpush1.msra.mxu0 %v754
  %837 = vmatprep.subr.mxu0 0.0
  %838 = vmatpush1.msra.mxu0 0.0
  %839 = vmatprep.subr.mxu0 0.0
  %840 = vmatpush1.msra.mxu0 0.0
  %841 = vmatprep.subr.mxu0 0.0
  %842 = vmatpush1.msra.mxu0 0.0
  %843 = vmatprep.subr.mxu0 0.0
  %844 = vmatpush1.msra.mxu0 0.0
  %845 = vmatprep.subr.mxu0 0.0
  %846 = vmatpush1.msra.mxu0 0.0
  %847 = vmatprep.subr.mxu0 0.0
  %848 = vmatpush1.msra.mxu0 0.0
  %849 = vmatprep.subr.mxu0 0.0
  %850 = vmatpush1.msra.mxu0 0.0
  %851 = vmatprep.subr.mxu0 0.0
  %852 = vmatpush1.msra.mxu0 0.0
  %853 = vmatprep.subr.mxu0 0.0
  %854 = vmatpush1.msra.mxu0 0.0
  %855 = vmatprep.subr.mxu0 0.0
  %856 = vmatpush1.msra.mxu0 0.0
  %857 = vmatprep.subr.mxu0 0.0
  %858 = vmatpush1.msra.mxu0 0.0
  %859 = vmatprep.subr.mxu0 0.0
  %860 = vmatpush1.msra.mxu0 0.0
  %861 = vmatprep.subr.mxu0 0.0
  %862 = vmatpush1.msra.mxu0 0.0
  %863 = vmatprep.subr.mxu0 0.0
  %864 = vmatpush1.msra.mxu0 0.0
  %865 = vmatprep.subr.mxu0 0.0
  %866 = vmatpush1.msra.mxu0 0.0
  %867 = vmatprep.subr.mxu0 0.0
  %868 = vmatpush1.msra.mxu0 0.0
  %869 = vmatprep.subr.mxu0 0.0
  %870 = vmatpush1.msra.mxu0 0.0
  %871 = vmatprep.subr.mxu0 0.0
  %872 = vmatpush1.msra.mxu0 0.0
  %873 = vmatprep.subr.mxu0 0.0
  %874 = vmatpush1.msra.mxu0 0.0
  %875 = vmatprep.subr.mxu0 0.0
  %876 = vmatpush1.msra.mxu0 0.0
  %877 = vmatprep.subr.mxu0 0.0
  %878 = vmatpush1.msra.mxu0 0.0
  %879 = vmatprep.subr.mxu0 0.0
  %880 = vmatpush1.msra.mxu0 0.0
  %881 = vmatprep.subr.mxu0 0.0
  %882 = vmatpush1.msra.mxu0 0.0
  %883 = vmatprep.subr.mxu0 0.0
  %884 = vmatpush1.msra.mxu0 0.0
  %885 = vmatprep.subr.mxu0 0.0
  %886 = vmatpush1.msra.mxu0 0.0
  %887 = vmatprep.subr.mxu0 0.0
  %888 = vmatpush1.msra.mxu0 0.0
  %889 = vmatprep.subr.mxu0 0.0
  %890 = vmatpush1.msra.mxu0 0.0
  %891 = vmatprep.subr.mxu0 0.0
  %892 = vmatpush1.msra.mxu0 0.0
  %893 = vmatprep.mubr.f32.mxu0 0.0
  %894 = vmatmul.mubr.f32.gmra.mrb[0].mxu0 %v748
  %v895 = vpop.f32.mrb[0].mxu0
  %v896 = vadd.f32 %v661, %v895
  %v897 = vpop.f32.mrb[0].mxu0
  %v898 = vadd.f32 %v661, %v897
  %899 = vdwg.mxu0
  %v900 = vld [vmem:[%s4] sm:$0xff]
  %v901 = vld [vmem:[%s5] sm:$0xff]
  %v902 = vld [vmem:[%s5 + $0x8] sm:$0xff]
  %v903 = vmul.f32 %v898, %v80
  %v904 = vmul.f32 %v825, %v88
  %v905 = vmul.f32 %v827, %v89
  %v906 = vmul.f32 %v896, %v90
  %v907 = vmul.f32 %v898, %v86
  %v908 = vmul.f32 %v898, %v119
  %v909 = vmul.f32 %v825, %v127
  %v910 = vmul.f32 %v827, %v128
  %v911 = vmul.f32 %v896, %v129
  %v912 = vmul.f32 %v898, %v125
  %v913 = vmul.f32 %v898, %v158
  %v914 = vmul.f32 %v825, %v166
  %v915 = vmul.f32 %v827, %v167
  %v916 = vmul.f32 %v896, %v168
  %v917 = vmul.f32 %v898, %v164
  %v918 = vmul.f32 %v898, %v197
  %v919 = vmul.f32 %v825, %v205
  %v920 = vmul.f32 %v827, %v206
  %v921 = vmul.f32 %v896, %v207
  %v922 = vmul.f32 %v898, %v203
  %v927 = vmul.f32 %v825, %v222
  %v928 = vmul.f32 %v827, %v226
  %v929 = vmul.f32 %v896, %v230
  %v930 = vmul.f32 %v898, %v234
  %v931 = vmul.f32 %v825, %v259
  %v932 = vmul.f32 %v827, %v267
  %v933 = vmul.f32 %v896, %v268
  %v934 = vmul.f32 %v898, %v269
  %v935 = vmul.f32 %v825, %v265
  %v936 = vmul.f32 %v825, %v298
  %v937 = vmul.f32 %v827, %v306
  %v938 = vmul.f32 %v896, %v307
  %v939 = vmul.f32 %v898, %v308
  %v940 = vmul.f32 %v825, %v304
  %v941 = vmul.f32 %v825, %v337
  %v942 = vmul.f32 %v827, %v345
  %v943 = vmul.f32 %v896, %v346
  %v944 = vmul.f32 %v898, %v347
  %v945 = vmul.f32 %v825, %v343
  %v946 = vmul.f32 %v825, %v376
  %v947 = vmul.f32 %v827, %v384
  %v948 = vmul.f32 %v896, %v385
  %v949 = vmul.f32 %v898, %v386
  %v950 = vmul.f32 %v825, %v382
  %v956 = vrot.slane %v908, 4
  %v957 = vrot.slane %v909, 4
  %v958 = vrot.slane %v910, 4
  %v959 = vrot.slane %v911, 4
  %v960 = vrot.slane %v912, 4
  %961 = vrot.lane.b32.xlu0 %v956, 126
  %v962 = vpop.permute.xlu0 %961
  %963 = vrot.lane.b32.xlu0 %v957, 126
  %v964 = vpop.permute.xlu0 %963
  %965 = vrot.lane.b32.xlu0 %v958, 126
  %v966 = vpop.permute.xlu0 %965
  %967 = vrot.lane.b32.xlu0 %v959, 126
  %v968 = vpop.permute.xlu0 %967
  %969 = vrot.lane.b32.xlu0 %v960, 126
  %v970 = vpop.permute.xlu0 %969
  %v971 = vsel %vm204, %v962, %v964
  %v972 = vsel %vm204, %v964, %v966
  %v973 = vsel %vm204, %v966, %v968
  %v974 = vsel %vm204, %v968, %v970
  %985 = vrot.lane.b32.xlu0 %v913, 124
  %v986 = vpop.permute.xlu0 %985
  %987 = vrot.lane.b32.xlu0 %v914, 124
  %v988 = vpop.permute.xlu0 %987
  %989 = vrot.lane.b32.xlu0 %v915, 124
  %v990 = vpop.permute.xlu0 %989
  %991 = vrot.lane.b32.xlu0 %v916, 124
  %v992 = vpop.permute.xlu0 %991
  %993 = vrot.lane.b32.xlu0 %v917, 124
  %v994 = vpop.permute.xlu0 %993
  %v995 = vsel %vm446, %v986, %v988
  %v996 = vsel %vm446, %v988, %v990
  %v997 = vsel %vm446, %v990, %v992
  %v998 = vsel %vm446, %v992, %v994
  %v1009 = vrot.slane %v918, 4
  %v1010 = vrot.slane %v919, 4
  %v1011 = vrot.slane %v920, 4
  %v1012 = vrot.slane %v921, 4
  %v1013 = vrot.slane %v922, 4
  %1014 = vrot.lane.b32.xlu0 %v1009, 96
  %v1015 = vpop.permute.xlu0 %1014
  %1016 = vrot.lane.b32.xlu0 %v1010, 96
  %v1017 = vpop.permute.xlu0 %1016
  %1018 = vrot.lane.b32.xlu0 %v1011, 96
  %v1019 = vpop.permute.xlu0 %1018
  %1020 = vrot.lane.b32.xlu0 %v1012, 96
  %v1021 = vpop.permute.xlu0 %1020
  %1022 = vrot.lane.b32.xlu0 %v1013, 96
  %v1023 = vpop.permute.xlu0 %1022
  %v1024 = vsel %vm126, %v1015, %v1017
  %v1025 = vsel %vm126, %v1017, %v1019
  %v1026 = vsel %vm126, %v1019, %v1021
  %v1027 = vsel %vm126, %v1021, %v1023
  %1037 = vrot.lane.b32.xlu0 %v927, 94
  %v1038 = vpop.permute.xlu0 %1037
  %1039 = vrot.lane.b32.xlu0 %v928, 94
  %v1040 = vpop.permute.xlu0 %1039
  %1041 = vrot.lane.b32.xlu0 %v929, 94
  %v1042 = vpop.permute.xlu0 %1041
  %1043 = vrot.lane.b32.xlu0 %v930, 94
  %v1044 = vpop.permute.xlu0 %1043
  %v1045 = vsel %vm87, %v1038, %v1040
  %v1046 = vsel %vm87, %v1040, %v1042
  %v1047 = vsel %vm87, %v1042, %v1044
  %v1058 = vrot.slane %v931, 4
  %v1059 = vrot.slane %v932, 4
  %v1060 = vrot.slane %v933, 4
  %v1061 = vrot.slane %v934, 4
  %v1062 = vrot.slane %v935, 4
  %1063 = vrot.lane.b32.xlu0 %v1058, 92
  %v1064 = vpop.permute.xlu0 %1063
  %1065 = vrot.lane.b32.xlu0 %v1059, 92
  %v1066 = vpop.permute.xlu0 %1065
  %1067 = vrot.lane.b32.xlu0 %v1060, 92
  %v1068 = vpop.permute.xlu0 %1067
  %1069 = vrot.lane.b32.xlu0 %v1061, 92
  %v1070 = vpop.permute.xlu0 %1069
  %1071 = vrot.lane.b32.xlu0 %v1062, 92
  %v1072 = vpop.permute.xlu0 %1071
  %v1073 = vsel %vm525, %v1064, %v1066
  %v1074 = vsel %vm525, %v1066, %v1068
  %v1075 = vsel %vm525, %v1068, %v1070
  %v1076 = vsel %vm525, %v1070, %v1072
  %1087 = vrot.lane.b32.xlu0 %v936, 64
  %v1088 = vpop.permute.xlu0 %1087
  %1089 = vrot.lane.b32.xlu0 %v937, 64
  %v1090 = vpop.permute.xlu0 %1089
  %1091 = vrot.lane.b32.xlu0 %v938, 64
  %v1092 = vpop.permute.xlu0 %1091
  %1093 = vrot.lane.b32.xlu0 %v939, 64
  %v1094 = vpop.permute.xlu0 %1093
  %1095 = vrot.lane.b32.xlu0 %v940, 64
  %v1096 = vpop.permute.xlu0 %1095
  %v1097 = vsel %vm555, %v1088, %v1090
  %v1098 = vsel %vm555, %v1090, %v1092
  %v1099 = vsel %vm555, %v1092, %v1094
  %v1100 = vsel %vm555, %v1094, %v1096
  %v1111 = vrot.slane %v941, 4
  %v1112 = vrot.slane %v942, 4
  %v1113 = vrot.slane %v943, 4
  %v1114 = vrot.slane %v944, 4
  %v1115 = vrot.slane %v945, 4
  %1116 = vrot.lane.b32.xlu0 %v1111, 62
  %v1117 = vpop.permute.xlu0 %1116
  %1118 = vrot.lane.b32.xlu0 %v1112, 62
  %v1119 = vpop.permute.xlu0 %1118
  %1120 = vrot.lane.b32.xlu0 %v1113, 62
  %v1121 = vpop.permute.xlu0 %1120
  %1122 = vrot.lane.b32.xlu0 %v1114, 62
  %v1123 = vpop.permute.xlu0 %1122
  %1124 = vrot.lane.b32.xlu0 %v1115, 62
  %v1125 = vpop.permute.xlu0 %1124
  %v1126 = vsel %vm585, %v1117, %v1119
  %v1127 = vsel %vm585, %v1119, %v1121
  %v1128 = vsel %vm585, %v1121, %v1123
  %v1129 = vsel %vm585, %v1123, %v1125
  %1140 = vrot.lane.b32.xlu0 %v946, 60
  %v1141 = vpop.permute.xlu0 %1140
  %1142 = vrot.lane.b32.xlu0 %v947, 60
  %v1143 = vpop.permute.xlu0 %1142
  %1144 = vrot.lane.b32.xlu0 %v948, 60
  %v1145 = vpop.permute.xlu0 %1144
  %1146 = vrot.lane.b32.xlu0 %v949, 60
  %v1147 = vpop.permute.xlu0 %1146
  %1148 = vrot.lane.b32.xlu0 %v950, 60
  %v1149 = vpop.permute.xlu0 %1148
  %v1150 = vsel %vm610, %v1141, %v1143
  %v1151 = vsel %vm610, %v1143, %v1145
  %v1152 = vsel %vm610, %v1145, %v1147
  %v1153 = vsel %vm610, %v1147, %v1149
  %v1154 = vsel %vm633, %v903, %v971
  %v1155 = vsel %vm633, %v904, %v972
  %v1156 = vsel %vm633, %v905, %v973
  %v1157 = vsel %vm633, %v906, %v974
  %v1158 = vsel %vm633, %v907, %v970
  %v1159 = vsel %vm633, %v995, %v1024
  %v1160 = vsel %vm633, %v996, %v1025
  %v1161 = vsel %vm633, %v997, %v1026
  %v1162 = vsel %vm633, %v998, %v1027
  %v1163 = vsel %vm633, %v994, %v1023
  %v1164 = vsel %vm633, %v1038, %v1064
  %v1165 = vsel %vm633, %v1045, %v1073
  %v1166 = vsel %vm633, %v1046, %v1074
  %v1167 = vsel %vm633, %v1047, %v1075
  %v1168 = vsel %vm633, %v1044, %v1076
  %v1169 = vsel %vm633, %v1088, %v1117
  %v1170 = vsel %vm633, %v1097, %v1126
  %v1171 = vsel %vm633, %v1098, %v1127
  %v1172 = vsel %vm633, %v1099, %v1128
  %v1173 = vsel %vm633, %v1100, %v1129
  %v1179 = vrot.slane %v903, 4
  %v1180 = vrot.slane %v904, 4
  %v1181 = vrot.slane %v905, 4
  %v1182 = vrot.slane %v906, 4
  %v1183 = vrot.slane %v907, 4
  %1189 = vrot.lane.b32.xlu0 %v908, 126
  %v1190 = vpop.permute.xlu0 %1189
  %1191 = vrot.lane.b32.xlu0 %v909, 126
  %v1192 = vpop.permute.xlu0 %1191
  %1193 = vrot.lane.b32.xlu0 %v910, 126
  %v1194 = vpop.permute.xlu0 %1193
  %1195 = vrot.lane.b32.xlu0 %v911, 126
  %v1196 = vpop.permute.xlu0 %1195
  %1197 = vrot.lane.b32.xlu0 %v912, 126
  %v1198 = vpop.permute.xlu0 %1197
  %v1199 = vsel %vm204, %v1190, %v1192
  %v1200 = vsel %vm204, %v1192, %v1194
  %v1201 = vsel %vm204, %v1194, %v1196
  %v1202 = vsel %vm204, %v1196, %v1198
  %v1208 = vrot.slane %v913, 4
  %v1209 = vrot.slane %v914, 4
  %v1210 = vrot.slane %v915, 4
  %v1211 = vrot.slane %v916, 4
  %v1212 = vrot.slane %v917, 4
  %1213 = vrot.lane.b32.xlu0 %v1208, 124
  %v1214 = vpop.permute.xlu0 %1213
  %1215 = vrot.lane.b32.xlu0 %v1209, 124
  %v1216 = vpop.permute.xlu0 %1215
  %1217 = vrot.lane.b32.xlu0 %v1210, 124
  %v1218 = vpop.permute.xlu0 %1217
  %1219 = vrot.lane.b32.xlu0 %v1211, 124
  %v1220 = vpop.permute.xlu0 %1219
  %1221 = vrot.lane.b32.xlu0 %v1212, 124
  %v1222 = vpop.permute.xlu0 %1221
  %v1223 = vsel %vm446, %v1214, %v1216
  %v1224 = vsel %vm446, %v1216, %v1218
  %v1225 = vsel %vm446, %v1218, %v1220
  %v1226 = vsel %vm446, %v1220, %v1222
  %1232 = vrot.lane.b32.xlu0 %v918, 96
  %v1233 = vpop.permute.xlu0 %1232
  %1234 = vrot.lane.b32.xlu0 %v919, 96
  %v1235 = vpop.permute.xlu0 %1234
  %1236 = vrot.lane.b32.xlu0 %v920, 96
  %v1237 = vpop.permute.xlu0 %1236
  %1238 = vrot.lane.b32.xlu0 %v921, 96
  %v1239 = vpop.permute.xlu0 %1238
  %1240 = vrot.lane.b32.xlu0 %v922, 96
  %v1241 = vpop.permute.xlu0 %1240
  %v1242 = vsel %vm126, %v1233, %v1235
  %v1243 = vsel %vm126, %v1235, %v1237
  %v1244 = vsel %vm126, %v1237, %v1239
  %v1245 = vsel %vm126, %v1239, %v1241
  %v1251 = vrot.slane %v927, 4
  %v1252 = vrot.slane %v928, 4
  %v1253 = vrot.slane %v929, 4
  %v1254 = vrot.slane %v930, 4
  %1255 = vrot.lane.b32.xlu0 %v1251, 94
  %v1256 = vpop.permute.xlu0 %1255
  %1257 = vrot.lane.b32.xlu0 %v1252, 94
  %v1258 = vpop.permute.xlu0 %1257
  %1259 = vrot.lane.b32.xlu0 %v1253, 94
  %v1260 = vpop.permute.xlu0 %1259
  %1261 = vrot.lane.b32.xlu0 %v1254, 94
  %v1262 = vpop.permute.xlu0 %1261
  %v1263 = vsel %vm87, %v1256, %v1258
  %v1264 = vsel %vm87, %v1258, %v1260
  %v1265 = vsel %vm87, %v1260, %v1262
  %1271 = vrot.lane.b32.xlu0 %v931, 92
  %v1272 = vpop.permute.xlu0 %1271
  %1273 = vrot.lane.b32.xlu0 %v932, 92
  %v1274 = vpop.permute.xlu0 %1273
  %1275 = vrot.lane.b32.xlu0 %v933, 92
  %v1276 = vpop.permute.xlu0 %1275
  %1277 = vrot.lane.b32.xlu0 %v934, 92
  %v1278 = vpop.permute.xlu0 %1277
  %1279 = vrot.lane.b32.xlu0 %v935, 92
  %v1280 = vpop.permute.xlu0 %1279
  %v1281 = vsel %vm525, %v1272, %v1274
  %v1282 = vsel %vm525, %v1274, %v1276
  %v1283 = vsel %vm525, %v1276, %v1278
  %v1284 = vsel %vm525, %v1278, %v1280
  %v1290 = vrot.slane %v936, 4
  %v1291 = vrot.slane %v937, 4
  %v1292 = vrot.slane %v938, 4
  %v1293 = vrot.slane %v939, 4
  %v1294 = vrot.slane %v940, 4
  %1295 = vrot.lane.b32.xlu0 %v1290, 64
  %v1296 = vpop.permute.xlu0 %1295
  %1297 = vrot.lane.b32.xlu0 %v1291, 64
  %v1298 = vpop.permute.xlu0 %1297
  %1299 = vrot.lane.b32.xlu0 %v1292, 64
  %v1300 = vpop.permute.xlu0 %1299
  %1301 = vrot.lane.b32.xlu0 %v1293, 64
  %v1302 = vpop.permute.xlu0 %1301
  %1303 = vrot.lane.b32.xlu0 %v1294, 64
  %v1304 = vpop.permute.xlu0 %1303
  %v1305 = vsel %vm555, %v1296, %v1298
  %v1306 = vsel %vm555, %v1298, %v1300
  %v1307 = vsel %vm555, %v1300, %v1302
  %v1308 = vsel %vm555, %v1302, %v1304
  %1314 = vrot.lane.b32.xlu0 %v941, 62
  %v1315 = vpop.permute.xlu0 %1314
  %1316 = vrot.lane.b32.xlu0 %v942, 62
  %v1317 = vpop.permute.xlu0 %1316
  %1318 = vrot.lane.b32.xlu0 %v943, 62
  %v1319 = vpop.permute.xlu0 %1318
  %1320 = vrot.lane.b32.xlu0 %v944, 62
  %v1321 = vpop.permute.xlu0 %1320
  %1322 = vrot.lane.b32.xlu0 %v945, 62
  %v1323 = vpop.permute.xlu0 %1322
  %v1324 = vsel %vm585, %v1315, %v1317
  %v1325 = vsel %vm585, %v1317, %v1319
  %v1326 = vsel %vm585, %v1319, %v1321
  %v1327 = vsel %vm585, %v1321, %v1323
  %v1333 = vrot.slane %v946, 4
  %v1334 = vrot.slane %v947, 4
  %v1335 = vrot.slane %v948, 4
  %v1336 = vrot.slane %v949, 4
  %v1337 = vrot.slane %v950, 4
  %1338 = vrot.lane.b32.xlu0 %v1333, 60
  %v1339 = vpop.permute.xlu0 %1338
  %1340 = vrot.lane.b32.xlu0 %v1334, 60
  %v1341 = vpop.permute.xlu0 %1340
  %1342 = vrot.lane.b32.xlu0 %v1335, 60
  %v1343 = vpop.permute.xlu0 %1342
  %1344 = vrot.lane.b32.xlu0 %v1336, 60
  %v1345 = vpop.permute.xlu0 %1344
  %1346 = vrot.lane.b32.xlu0 %v1337, 60
  %v1347 = vpop.permute.xlu0 %1346
  %v1348 = vsel %vm610, %v1339, %v1341
  %v1349 = vsel %vm610, %v1341, %v1343
  %v1350 = vsel %vm610, %v1343, %v1345
  %v1351 = vsel %vm610, %v1345, %v1347
  %v1352 = vsel %vm633, %v1179, %v1199
  %v1353 = vsel %vm633, %v1180, %v1200
  %v1354 = vsel %vm633, %v1181, %v1201
  %v1355 = vsel %vm633, %v1182, %v1202
  %v1356 = vsel %vm633, %v1183, %v1198
  %v1357 = vsel %vm633, %v1223, %v1242
  %v1358 = vsel %vm633, %v1224, %v1243
  %v1359 = vsel %vm633, %v1225, %v1244
  %v1360 = vsel %vm633, %v1226, %v1245
  %v1361 = vsel %vm633, %v1222, %v1241
  %v1362 = vsel %vm633, %v1256, %v1272
  %v1363 = vsel %vm633, %v1263, %v1281
  %v1364 = vsel %vm633, %v1264, %v1282
  %v1365 = vsel %vm633, %v1265, %v1283
  %v1366 = vsel %vm633, %v1262, %v1284
  %v1367 = vsel %vm633, %v1296, %v1315
  %v1368 = vsel %vm633, %v1305, %v1324
  %v1369 = vsel %vm633, %v1306, %v1325
  %v1370 = vsel %vm633, %v1307, %v1326
  %v1371 = vsel %vm633, %v1308, %v1327
  %1392 = vrot.lane.b32.xlu0 %v1154, 34
  %v1393 = vpop.permute.xlu0 %1392
  %1394 = vrot.lane.b32.xlu0 %v1155, 34
  %v1395 = vpop.permute.xlu0 %1394
  %1396 = vrot.lane.b32.xlu0 %v1156, 34
  %v1397 = vpop.permute.xlu0 %1396
  %1398 = vrot.lane.b32.xlu0 %v1157, 34
  %v1399 = vpop.permute.xlu0 %1398
  %1400 = vrot.lane.b32.xlu0 %v1158, 34
  %v1401 = vpop.permute.xlu0 %1400
  %1402 = vrot.lane.b32.xlu0 %v1159, 34
  %v1403 = vpop.permute.xlu0 %1402
  %1404 = vrot.lane.b32.xlu0 %v1160, 34
  %v1405 = vpop.permute.xlu0 %1404
  %1406 = vrot.lane.b32.xlu0 %v1161, 34
  %v1407 = vpop.permute.xlu0 %1406
  %1408 = vrot.lane.b32.xlu0 %v1162, 34
  %v1409 = vpop.permute.xlu0 %1408
  %1410 = vrot.lane.b32.xlu0 %v1163, 34
  %v1411 = vpop.permute.xlu0 %1410
  %1412 = vrot.lane.b32.xlu0 %v1164, 34
  %v1413 = vpop.permute.xlu0 %1412
  %1414 = vrot.lane.b32.xlu0 %v1165, 34
  %v1415 = vpop.permute.xlu0 %1414
  %1416 = vrot.lane.b32.xlu0 %v1166, 34
  %v1417 = vpop.permute.xlu0 %1416
  %1418 = vrot.lane.b32.xlu0 %v1167, 34
  %v1419 = vpop.permute.xlu0 %1418
  %1420 = vrot.lane.b32.xlu0 %v1168, 34
  %v1421 = vpop.permute.xlu0 %1420
  %1422 = vrot.lane.b32.xlu0 %v1169, 34
  %v1423 = vpop.permute.xlu0 %1422
  %1424 = vrot.lane.b32.xlu0 %v1170, 34
  %v1425 = vpop.permute.xlu0 %1424
  %1426 = vrot.lane.b32.xlu0 %v1171, 34
  %v1427 = vpop.permute.xlu0 %1426
  %1428 = vrot.lane.b32.xlu0 %v1172, 34
  %v1429 = vpop.permute.xlu0 %1428
  %1430 = vrot.lane.b32.xlu0 %v1173, 34
  %v1431 = vpop.permute.xlu0 %1430
  %1432 = vrot.lane.b32.xlu0 %v1141, 34
  %v1433 = vpop.permute.xlu0 %1432
  %1434 = vrot.lane.b32.xlu0 %v1150, 34
  %v1435 = vpop.permute.xlu0 %1434
  %1436 = vrot.lane.b32.xlu0 %v1151, 34
  %v1437 = vpop.permute.xlu0 %1436
  %1438 = vrot.lane.b32.xlu0 %v1152, 34
  %v1439 = vpop.permute.xlu0 %1438
  %1440 = vrot.lane.b32.xlu0 %v1153, 34
  %v1441 = vpop.permute.xlu0 %1440
  %v1442 = vsel %vm383, %v1393, %v1395
  %v1443 = vsel %vm383, %v1395, %v1397
  %v1444 = vsel %vm383, %v1397, %v1399
  %v1445 = vsel %vm383, %v1399, %v1401
  %v1446 = vsel %vm383, %v1403, %v1405
  %v1447 = vsel %vm383, %v1405, %v1407
  %v1448 = vsel %vm383, %v1407, %v1409
  %v1449 = vsel %vm383, %v1409, %v1411
  %v1450 = vsel %vm383, %v1413, %v1415
  %v1451 = vsel %vm383, %v1415, %v1417
  %v1452 = vsel %vm383, %v1417, %v1419
  %v1453 = vsel %vm383, %v1419, %v1421
  %v1454 = vsel %vm383, %v1423, %v1425
  %v1455 = vsel %vm383, %v1425, %v1427
  %v1456 = vsel %vm383, %v1427, %v1429
  %v1457 = vsel %vm383, %v1429, %v1431
  %v1458 = vsel %vm383, %v1433, %v1435
  %v1459 = vsel %vm383, %v1435, %v1437
  %v1460 = vsel %vm383, %v1437, %v1439
  %v1461 = vsel %vm383, %v1439, %v1441
  %1498 = vrot.lane.b32.xlu0 %v1352, 34
  %v1499 = vpop.permute.xlu0 %1498
  %1500 = vrot.lane.b32.xlu0 %v1353, 34
  %v1501 = vpop.permute.xlu0 %1500
  %1502 = vrot.lane.b32.xlu0 %v1354, 34
  %v1503 = vpop.permute.xlu0 %1502
  %1504 = vrot.lane.b32.xlu0 %v1355, 34
  %v1505 = vpop.permute.xlu0 %1504
  %1506 = vrot.lane.b32.xlu0 %v1356, 34
  %v1507 = vpop.permute.xlu0 %1506
  %1508 = vrot.lane.b32.xlu0 %v1357, 34
  %v1509 = vpop.permute.xlu0 %1508
  %1510 = vrot.lane.b32.xlu0 %v1358, 34
  %v1511 = vpop.permute.xlu0 %1510
  %1512 = vrot.lane.b32.xlu0 %v1359, 34
  %v1513 = vpop.permute.xlu0 %1512
  %1514 = vrot.lane.b32.xlu0 %v1360, 34
  %v1515 = vpop.permute.xlu0 %1514
  %1516 = vrot.lane.b32.xlu0 %v1361, 34
  %v1517 = vpop.permute.xlu0 %1516
  %1518 = vrot.lane.b32.xlu0 %v1362, 34
  %v1519 = vpop.permute.xlu0 %1518
  %1520 = vrot.lane.b32.xlu0 %v1363, 34
  %v1521 = vpop.permute.xlu0 %1520
  %1522 = vrot.lane.b32.xlu0 %v1364, 34
  %v1523 = vpop.permute.xlu0 %1522
  %1524 = vrot.lane.b32.xlu0 %v1365, 34
  %v1525 = vpop.permute.xlu0 %1524
  %1526 = vrot.lane.b32.xlu0 %v1366, 34
  %v1527 = vpop.permute.xlu0 %1526
  %1528 = vrot.lane.b32.xlu0 %v1367, 34
  %v1529 = vpop.permute.xlu0 %1528
  %1530 = vrot.lane.b32.xlu0 %v1368, 34
  %v1531 = vpop.permute.xlu0 %1530
  %1532 = vrot.lane.b32.xlu0 %v1369, 34
  %v1533 = vpop.permute.xlu0 %1532
  %1534 = vrot.lane.b32.xlu0 %v1370, 34
  %v1535 = vpop.permute.xlu0 %1534
  %1536 = vrot.lane.b32.xlu0 %v1371, 34
  %v1537 = vpop.permute.xlu0 %1536
  %1538 = vrot.lane.b32.xlu0 %v1339, 34
  %v1539 = vpop.permute.xlu0 %1538
  %1540 = vrot.lane.b32.xlu0 %v1348, 34
  %v1541 = vpop.permute.xlu0 %1540
  %1542 = vrot.lane.b32.xlu0 %v1349, 34
  %v1543 = vpop.permute.xlu0 %1542
  %1544 = vrot.lane.b32.xlu0 %v1350, 34
  %v1545 = vpop.permute.xlu0 %1544
  %1546 = vrot.lane.b32.xlu0 %v1351, 34
  %v1547 = vpop.permute.xlu0 %1546
  %v1548 = vsel %vm383, %v1499, %v1501
  %v1549 = vsel %vm383, %v1501, %v1503
  %v1550 = vsel %vm383, %v1503, %v1505
  %v1551 = vsel %vm383, %v1505, %v1507
  %v1552 = vsel %vm383, %v1509, %v1511
  %v1553 = vsel %vm383, %v1511, %v1513
  %v1554 = vsel %vm383, %v1513, %v1515
  %v1555 = vsel %vm383, %v1515, %v1517
  %v1556 = vsel %vm383, %v1519, %v1521
  %v1557 = vsel %vm383, %v1521, %v1523
  %v1558 = vsel %vm383, %v1523, %v1525
  %v1559 = vsel %vm383, %v1525, %v1527
  %v1560 = vsel %vm383, %v1529, %v1531
  %v1561 = vsel %vm383, %v1531, %v1533
  %v1562 = vsel %vm383, %v1533, %v1535
  %v1563 = vsel %vm383, %v1535, %v1537
  %v1564 = vsel %vm383, %v1539, %v1541
  %v1565 = vsel %vm383, %v1541, %v1543
  %v1566 = vsel %vm383, %v1543, %v1545
  %v1567 = vsel %vm383, %v1545, %v1547
  %vm1584 = vcmask 293888
  %v1586 = vsel %vm1584, %v900, 0
  %v1588 = vsel %vm633, %v1458, 0
  %v1590 = vsel %vm633, %v1459, 0
  %v1592 = vsel %vm633, %v1460, 0
  %v1594 = vsel %vm633, %v1461, 0
  %v1596 = vsel %vm633, %v1564, 0
  %v1598 = vsel %vm633, %v1565, 0
  %v1600 = vsel %vm633, %v1566, 0
  %v1602 = vsel %vm633, %v1567, 0
  %1604 = vmatprep.subr.mxu0 %v1443
  %1605 = vmatpush1.msra.mxu0 %v1442
  %1606 = vmatprep.subr.mxu0 %v1447
  %1607 = vmatpush1.msra.mxu0 %v1446
  %1608 = vmatprep.subr.mxu0 %v1451
  %1609 = vmatpush1.msra.mxu0 %v1450
  %1610 = vmatprep.subr.mxu0 %v1455
  %1611 = vmatpush1.msra.mxu0 %v1454
  %1612 = vmatprep.subr.mxu0 %v1590
  %1613 = vmatpush1.msra.mxu0 %v1588
  %1614 = vmatprep.subr.mxu0 0.0
  %1615 = vmatpush1.msra.mxu0 0.0
  %1616 = vmatprep.subr.mxu0 0.0
  %1617 = vmatpush1.msra.mxu0 0.0
  %1618 = vmatprep.subr.mxu0 0.0
  %1619 = vmatpush1.msra.mxu0 0.0
  %1620 = vmatprep.subr.mxu0 0.0
  %1621 = vmatpush1.msra.mxu0 0.0
  %1622 = vmatprep.subr.mxu0 0.0
  %1623 = vmatpush1.msra.mxu0 0.0
  %1624 = vmatprep.subr.mxu0 0.0
  %1625 = vmatpush1.msra.mxu0 0.0
  %1626 = vmatprep.subr.mxu0 0.0
  %1627 = vmatpush1.msra.mxu0 0.0
  %1628 = vmatprep.subr.mxu0 0.0
  %1629 = vmatpush1.msra.mxu0 0.0
  %1630 = vmatprep.subr.mxu0 0.0
  %1631 = vmatpush1.msra.mxu0 0.0
  %1632 = vmatprep.subr.mxu0 0.0
  %1633 = vmatpush1.msra.mxu0 0.0
  %1634 = vmatprep.subr.mxu0 0.0
  %1635 = vmatpush1.msra.mxu0 0.0
  %1636 = vmatprep.subr.mxu0 0.0
  %1637 = vmatpush1.msra.mxu0 0.0
  %1638 = vmatprep.subr.mxu0 0.0
  %1639 = vmatpush1.msra.mxu0 0.0
  %1640 = vmatprep.subr.mxu0 0.0
  %1641 = vmatpush1.msra.mxu0 0.0
  %1642 = vmatprep.subr.mxu0 0.0
  %1643 = vmatpush1.msra.mxu0 0.0
  %1644 = vmatprep.subr.mxu0 0.0
  %1645 = vmatpush1.msra.mxu0 0.0
  %1646 = vmatprep.subr.mxu0 0.0
  %1647 = vmatpush1.msra.mxu0 0.0
  %1648 = vmatprep.subr.mxu0 0.0
  %1649 = vmatpush1.msra.mxu0 0.0
  %1650 = vmatprep.subr.mxu0 0.0
  %1651 = vmatpush1.msra.mxu0 0.0
  %1652 = vmatprep.subr.mxu0 0.0
  %1653 = vmatpush1.msra.mxu0 0.0
  %1654 = vmatprep.subr.mxu0 0.0
  %1655 = vmatpush1.msra.mxu0 0.0
  %1656 = vmatprep.subr.mxu0 0.0
  %1657 = vmatpush1.msra.mxu0 0.0
  %1658 = vmatprep.subr.mxu0 0.0
  %1659 = vmatpush1.msra.mxu0 0.0
  %1660 = vmatprep.subr.mxu0 0.0
  %1661 = vmatpush1.msra.mxu0 0.0
  %1662 = vmatprep.subr.mxu0 0.0
  %1663 = vmatpush1.msra.mxu0 0.0
  %1664 = vmatprep.subr.mxu0 0.0
  %1665 = vmatpush1.msra.mxu0 0.0
  %1666 = vmatprep.subr.mxu0 0.0
  %1667 = vmatpush1.msra.mxu0 0.0
  %1668 = vmatprep.mubr.f32.mxu0 0.0
  %1669 = vmatmul.mubr.f32.gmra.mrb[0].mxu0 %v1586
  %v1670 = vpop.f32.mrb[0].mxu0
  %v1671 = vadd.f32 0.0, %v1670
  %v1672 = vpop.f32.mrb[0].mxu0
  %v1673 = vadd.f32 0.0, %v1672
  %1674 = vdwg.mxu0
  %1675 = vmatprep.subr.mxu0 %v1445
  %1676 = vmatpush1.msra.mxu0 %v1444
  %1677 = vmatprep.subr.mxu0 %v1449
  %1678 = vmatpush1.msra.mxu0 %v1448
  %1679 = vmatprep.subr.mxu0 %v1453
  %1680 = vmatpush1.msra.mxu0 %v1452
  %1681 = vmatprep.subr.mxu0 %v1457
  %1682 = vmatpush1.msra.mxu0 %v1456
  %1683 = vmatprep.subr.mxu0 %v1594
  %1684 = vmatpush1.msra.mxu0 %v1592
  %1685 = vmatprep.subr.mxu0 0.0
  %1686 = vmatpush1.msra.mxu0 0.0
  %1687 = vmatprep.subr.mxu0 0.0
  %1688 = vmatpush1.msra.mxu0 0.0
  %1689 = vmatprep.subr.mxu0 0.0
  %1690 = vmatpush1.msra.mxu0 0.0
  %1691 = vmatprep.subr.mxu0 0.0
  %1692 = vmatpush1.msra.mxu0 0.0
  %1693 = vmatprep.subr.mxu0 0.0
  %1694 = vmatpush1.msra.mxu0 0.0
  %1695 = vmatprep.subr.mxu0 0.0
  %1696 = vmatpush1.msra.mxu0 0.0
  %1697 = vmatprep.subr.mxu0 0.0
  %1698 = vmatpush1.msra.mxu0 0.0
  %1699 = vmatprep.subr.mxu0 0.0
  %1700 = vmatpush1.msra.mxu0 0.0
  %1701 = vmatprep.subr.mxu0 0.0
  %1702 = vmatpush1.msra.mxu0 0.0
  %1703 = vmatprep.subr.mxu0 0.0
  %1704 = vmatpush1.msra.mxu0 0.0
  %1705 = vmatprep.subr.mxu0 0.0
  %1706 = vmatpush1.msra.mxu0 0.0
  %1707 = vmatprep.subr.mxu0 0.0
  %1708 = vmatpush1.msra.mxu0 0.0
  %1709 = vmatprep.subr.mxu0 0.0
  %1710 = vmatpush1.msra.mxu0 0.0
  %1711 = vmatprep.subr.mxu0 0.0
  %1712 = vmatpush1.msra.mxu0 0.0
  %1713 = vmatprep.subr.mxu0 0.0
  %1714 = vmatpush1.msra.mxu0 0.0
  %1715 = vmatprep.subr.mxu0 0.0
  %1716 = vmatpush1.msra.mxu0 0.0
  %1717 = vmatprep.subr.mxu0 0.0
  %1718 = vmatpush1.msra.mxu0 0.0
  %1719 = vmatprep.subr.mxu0 0.0
  %1720 = vmatpush1.msra.mxu0 0.0
  %1721 = vmatprep.subr.mxu0 0.0
  %1722 = vmatpush1.msra.mxu0 0.0
  %1723 = vmatprep.subr.mxu0 0.0
  %1724 = vmatpush1.msra.mxu0 0.0
  %1725 = vmatprep.subr.mxu0 0.0
  %1726 = vmatpush1.msra.mxu0 0.0
  %1727 = vmatprep.subr.mxu0 0.0
  %1728 = vmatpush1.msra.mxu0 0.0
  %1729 = vmatprep.subr.mxu0 0.0
  %1730 = vmatpush1.msra.mxu0 0.0
  %1731 = vmatprep.subr.mxu0 0.0
  %1732 = vmatpush1.msra.mxu0 0.0
  %1733 = vmatprep.subr.mxu0 0.0
  %1734 = vmatpush1.msra.mxu0 0.0
  %1735 = vmatprep.subr.mxu0 0.0
  %1736 = vmatpush1.msra.mxu0 0.0
  %1737 = vmatprep.subr.mxu0 0.0
  %1738 = vmatpush1.msra.mxu0 0.0
  %1739 = vmatprep.mubr.f32.mxu0 0.0
  %1740 = vmatmul.mubr.f32.gmra.mrb[0].mxu0 %v1586
  %v1741 = vpop.f32.mrb[0].mxu0
  %v1742 = vadd.f32 0.0, %v1741
  %v1743 = vpop.f32.mrb[0].mxu0
  %v1744 = vadd.f32 0.0, %v1743
  %1745 = vdwg.mxu0
  %1746 = vmatprep.subr.mxu0 %v1549
  %1747 = vmatpush1.msra.mxu0 %v1548
  %1748 = vmatprep.subr.mxu0 %v1553
  %1749 = vmatpush1.msra.mxu0 %v1552
  %1750 = vmatprep.subr.mxu0 %v1557
  %1751 = vmatpush1.msra.mxu0 %v1556
  %1752 = vmatprep.subr.mxu0 %v1561
  %1753 = vmatpush1.msra.mxu0 %v1560
  %1754 = vmatprep.subr.mxu0 %v1598
  %1755 = vmatpush1.msra.mxu0 %v1596
  %1756 = vmatprep.subr.mxu0 0.0
  %1757 = vmatpush1.msra.mxu0 0.0
  %1758 = vmatprep.subr.mxu0 0.0
  %1759 = vmatpush1.msra.mxu0 0.0
  %1760 = vmatprep.subr.mxu0 0.0
  %1761 = vmatpush1.msra.mxu0 0.0
  %1762 = vmatprep.subr.mxu0 0.0
  %1763 = vmatpush1.msra.mxu0 0.0
  %1764 = vmatprep.subr.mxu0 0.0
  %1765 = vmatpush1.msra.mxu0 0.0
  %1766 = vmatprep.subr.mxu0 0.0
  %1767 = vmatpush1.msra.mxu0 0.0
  %1768 = vmatprep.subr.mxu0 0.0
  %1769 = vmatpush1.msra.mxu0 0.0
  %1770 = vmatprep.subr.mxu0 0.0
  %1771 = vmatpush1.msra.mxu0 0.0
  %1772 = vmatprep.subr.mxu0 0.0
  %1773 = vmatpush1.msra.mxu0 0.0
  %1774 = vmatprep.subr.mxu0 0.0
  %1775 = vmatpush1.msra.mxu0 0.0
  %1776 = vmatprep.subr.mxu0 0.0
  %1777 = vmatpush1.msra.mxu0 0.0
  %1778 = vmatprep.subr.mxu0 0.0
  %1779 = vmatpush1.msra.mxu0 0.0
  %1780 = vmatprep.subr.mxu0 0.0
  %1781 = vmatpush1.msra.mxu0 0.0
  %1782 = vmatprep.subr.mxu0 0.0
  %1783 = vmatpush1.msra.mxu0 0.0
  %1784 = vmatprep.subr.mxu0 0.0
  %1785 = vmatpush1.msra.mxu0 0.0
  %1786 = vmatprep.subr.mxu0 0.0
  %1787 = vmatpush1.msra.mxu0 0.0
  %1788 = vmatprep.subr.mxu0 0.0
  %1789 = vmatpush1.msra.mxu0 0.0
  %1790 = vmatprep.subr.mxu0 0.0
  %1791 = vmatpush1.msra.mxu0 0.0
  %1792 = vmatprep.subr.mxu0 0.0
  %1793 = vmatpush1.msra.mxu0 0.0
  %1794 = vmatprep.subr.mxu0 0.0
  %1795 = vmatpush1.msra.mxu0 0.0
  %1796 = vmatprep.subr.mxu0 0.0
  %1797 = vmatpush1.msra.mxu0 0.0
  %1798 = vmatprep.subr.mxu0 0.0
  %1799 = vmatpush1.msra.mxu0 0.0
  %1800 = vmatprep.subr.mxu0 0.0
  %1801 = vmatpush1.msra.mxu0 0.0
  %1802 = vmatprep.subr.mxu0 0.0
  %1803 = vmatpush1.msra.mxu0 0.0
  %1804 = vmatprep.subr.mxu0 0.0
  %1805 = vmatpush1.msra.mxu0 0.0
  %1806 = vmatprep.subr.mxu0 0.0
  %1807 = vmatpush1.msra.mxu0 0.0
  %1808 = vmatprep.subr.mxu0 0.0
  %1809 = vmatpush1.msra.mxu0 0.0
  %1810 = vmatprep.mubr.f32.mxu0 0.0
  %1811 = vmatmul.mubr.f32.gmra.mrb[0].mxu0 %v1586
  %v1812 = vpop.f32.mrb[0].mxu0
  %v1813 = vadd.f32 0.0, %v1812
  %v1814 = vpop.f32.mrb[0].mxu0
  %v1815 = vadd.f32 0.0, %v1814
  %1816 = vdwg.mxu0
  %1817 = vmatprep.subr.mxu0 %v1551
  %1818 = vmatpush1.msra.mxu0 %v1550
  %1819 = vmatprep.subr.mxu0 %v1555
  %1820 = vmatpush1.msra.mxu0 %v1554
  %1821 = vmatprep.subr.mxu0 %v1559
  %1822 = vmatpush1.msra.mxu0 %v1558
  %1823 = vmatprep.subr.mxu0 %v1563
  %1824 = vmatpush1.msra.mxu0 %v1562
  %1825 = vmatprep.subr.mxu0 %v1602
  %1826 = vmatpush1.msra.mxu0 %v1600
  %1827 = vmatprep.subr.mxu0 0.0
  %1828 = vmatpush1.msra.mxu0 0.0
  %1829 = vmatprep.subr.mxu0 0.0
  %1830 = vmatpush1.msra.mxu0 0.0
  %1831 = vmatprep.subr.mxu0 0.0
  %1832 = vmatpush1.msra.mxu0 0.0
  %1833 = vmatprep.subr.mxu0 0.0
  %1834 = vmatpush1.msra.mxu0 0.0
  %1835 = vmatprep.subr.mxu0 0.0
  %1836 = vmatpush1.msra.mxu0 0.0
  %1837 = vmatprep.subr.mxu0 0.0
  %1838 = vmatpush1.msra.mxu0 0.0
  %1839 = vmatprep.subr.mxu0 0.0
  %1840 = vmatpush1.msra.mxu0 0.0
  %1841 = vmatprep.subr.mxu0 0.0
  %1842 = vmatpush1.msra.mxu0 0.0
  %1843 = vmatprep.subr.mxu0 0.0
  %1844 = vmatpush1.msra.mxu0 0.0
  %1845 = vmatprep.subr.mxu0 0.0
  %1846 = vmatpush1.msra.mxu0 0.0
  %1847 = vmatprep.subr.mxu0 0.0
  %1848 = vmatpush1.msra.mxu0 0.0
  %1849 = vmatprep.subr.mxu0 0.0
  %1850 = vmatpush1.msra.mxu0 0.0
  %1851 = vmatprep.subr.mxu0 0.0
  %1852 = vmatpush1.msra.mxu0 0.0
  %1853 = vmatprep.subr.mxu0 0.0
  %1854 = vmatpush1.msra.mxu0 0.0
  %1855 = vmatprep.subr.mxu0 0.0
  %1856 = vmatpush1.msra.mxu0 0.0
  %1857 = vmatprep.subr.mxu0 0.0
  %1858 = vmatpush1.msra.mxu0 0.0
  %1859 = vmatprep.subr.mxu0 0.0
  %1860 = vmatpush1.msra.mxu0 0.0
  %1861 = vmatprep.subr.mxu0 0.0
  %1862 = vmatpush1.msra.mxu0 0.0
  %1863 = vmatprep.subr.mxu0 0.0
  %1864 = vmatpush1.msra.mxu0 0.0
  %1865 = vmatprep.subr.mxu0 0.0
  %1866 = vmatpush1.msra.mxu0 0.0
  %1867 = vmatprep.subr.mxu0 0.0
  %1868 = vmatpush1.msra.mxu0 0.0
  %1869 = vmatprep.subr.mxu0 0.0
  %1870 = vmatpush1.msra.mxu0 0.0
  %1871 = vmatprep.subr.mxu0 0.0
  %1872 = vmatpush1.msra.mxu0 0.0
  %1873 = vmatprep.subr.mxu0 0.0
  %1874 = vmatpush1.msra.mxu0 0.0
  %1875 = vmatprep.subr.mxu0 0.0
  %1876 = vmatpush1.msra.mxu0 0.0
  %1877 = vmatprep.subr.mxu0 0.0
  %1878 = vmatpush1.msra.mxu0 0.0
  %1879 = vmatprep.subr.mxu0 0.0
  %1880 = vmatpush1.msra.mxu0 0.0
  %1881 = vmatprep.mubr.f32.mxu0 0.0
  %1882 = vmatmul.mubr.f32.gmra.mrb[0].mxu0 %v1586
  %v1883 = vpop.f32.mrb[0].mxu0
  %v1884 = vadd.f32 0.0, %v1883
  %v1885 = vpop.f32.mrb[0].mxu0
  %v1886 = vadd.f32 0.0, %v1885
  %1887 = vdwg.mxu0
  %vm1888 = vcmask 130048
  %v1890 = vsel %vm1888, %v901, 0
  %v1893 = vsel %vm1888, %v902, 0
  %1895 = vmatprep.subr.mxu0 %v1673
  %1896 = vmatpush1.msra.mxu0 %v1671
  %1897 = vmatprep.subr.mxu0 %v1815
  %1898 = vmatpush1.msra.mxu0 %v1813
  %1899 = vmatprep.subr.mxu0 0.0
  %1900 = vmatpush1.msra.mxu0 0.0
  %1901 = vmatprep.subr.mxu0 0.0
  %1902 = vmatpush1.msra.mxu0 0.0
  %1903 = vmatprep.subr.mxu0 0.0
  %1904 = vmatpush1.msra.mxu0 0.0
  %1905 = vmatprep.subr.mxu0 0.0
  %1906 = vmatpush1.msra.mxu0 0.0
  %1907 = vmatprep.subr.mxu0 0.0
  %1908 = vmatpush1.msra.mxu0 0.0
  %1909 = vmatprep.subr.mxu0 0.0
  %1910 = vmatpush1.msra.mxu0 0.0
  %1911 = vmatprep.subr.mxu0 0.0
  %1912 = vmatpush1.msra.mxu0 0.0
  %1913 = vmatprep.subr.mxu0 0.0
  %1914 = vmatpush1.msra.mxu0 0.0
  %1915 = vmatprep.subr.mxu0 0.0
  %1916 = vmatpush1.msra.mxu0 0.0
  %1917 = vmatprep.subr.mxu0 0.0
  %1918 = vmatpush1.msra.mxu0 0.0
  %1919 = vmatprep.subr.mxu0 0.0
  %1920 = vmatpush1.msra.mxu0 0.0
  %1921 = vmatprep.subr.mxu0 0.0
  %1922 = vmatpush1.msra.mxu0 0.0
  %1923 = vmatprep.subr.mxu0 0.0
  %1924 = vmatpush1.msra.mxu0 0.0
  %1925 = vmatprep.subr.mxu0 0.0
  %1926 = vmatpush1.msra.mxu0 0.0
  %1927 = vmatprep.subr.mxu0 0.0
  %1928 = vmatpush1.msra.mxu0 0.0
  %1929 = vmatprep.subr.mxu0 0.0
  %1930 = vmatpush1.msra.mxu0 0.0
  %1931 = vmatprep.subr.mxu0 0.0
  %1932 = vmatpush1.msra.mxu0 0.0
  %1933 = vmatprep.subr.mxu0 0.0
  %1934 = vmatpush1.msra.mxu0 0.0
  %1935 = vmatprep.subr.mxu0 0.0
  %1936 = vmatpush1.msra.mxu0 0.0
  %1937 = vmatprep.subr.mxu0 0.0
  %1938 = vmatpush1.msra.mxu0 0.0
  %1939 = vmatprep.subr.mxu0 0.0
  %1940 = vmatpush1.msra.mxu0 0.0
  %1941 = vmatprep.subr.mxu0 0.0
  %1942 = vmatpush1.msra.mxu0 0.0
  %1943 = vmatprep.subr.mxu0 0.0
  %1944 = vmatpush1.msra.mxu0 0.0
  %1945 = vmatprep.subr.mxu0 0.0
  %1946 = vmatpush1.msra.mxu0 0.0
  %1947 = vmatprep.subr.mxu0 0.0
  %1948 = vmatpush1.msra.mxu0 0.0
  %1949 = vmatprep.subr.mxu0 0.0
  %1950 = vmatpush1.msra.mxu0 0.0
  %1951 = vmatprep.subr.mxu0 0.0
  %1952 = vmatpush1.msra.mxu0 0.0
  %1953 = vmatprep.subr.mxu0 0.0
  %1954 = vmatpush1.msra.mxu0 0.0
  %1955 = vmatprep.subr.mxu0 0.0
  %1956 = vmatpush1.msra.mxu0 0.0
  %1957 = vmatprep.subr.mxu0 0.0
  %1958 = vmatpush1.msra.mxu0 0.0
  %1959 = vmatprep.mubr.f32.mxu0 0.0
  %1960 = vmatmul.mubr.f32.gmra.mrb[0].mxu0 %v1890
  %v1961 = vpop.f32.mrb[0].mxu0
  %v1962 = vadd.f32 0.0, %v1961
  %v1963 = vpop.f32.mrb[0].mxu0
  %v1964 = vadd.f32 0.0, %v1963
  %1965 = vmatprep.mubr.f32.mxu0 0.0
  %1966 = vmatmul.mubr.f32.gmra.mrb[0].mxu0 %v1893
  %v1967 = vpop.f32.mrb[0].mxu0
  %v1968 = vadd.f32 0.0, %v1967
  %v1969 = vpop.f32.mrb[0].mxu0
  %v1970 = vadd.f32 0.0, %v1969
  %1971 = vdwg.mxu0
  %1972 = vmatprep.subr.mxu0 %v1744
  %1973 = vmatpush1.msra.mxu0 %v1742
  %1974 = vmatprep.subr.mxu0 %v1886
  %1975 = vmatpush1.msra.mxu0 %v1884
  %1976 = vmatprep.subr.mxu0 0.0
  %1977 = vmatpush1.msra.mxu0 0.0
  %1978 = vmatprep.subr.mxu0 0.0
  %1979 = vmatpush1.msra.mxu0 0.0
  %1980 = vmatprep.subr.mxu0 0.0
  %1981 = vmatpush1.msra.mxu0 0.0
  %1982 = vmatprep.subr.mxu0 0.0
  %1983 = vmatpush1.msra.mxu0 0.0
  %1984 = vmatprep.subr.mxu0 0.0
  %1985 = vmatpush1.msra.mxu0 0.0
  %1986 = vmatprep.subr.mxu0 0.0
  %1987 = vmatpush1.msra.mxu0 0.0
  %1988 = vmatprep.subr.mxu0 0.0
  %1989 = vmatpush1.msra.mxu0 0.0
  %1990 = vmatprep.subr.mxu0 0.0
  %1991 = vmatpush1.msra.mxu0 0.0
  %1992 = vmatprep.subr.mxu0 0.0
  %1993 = vmatpush1.msra.mxu0 0.0
  %1994 = vmatprep.subr.mxu0 0.0
  %1995 = vmatpush1.msra.mxu0 0.0
  %1996 = vmatprep.subr.mxu0 0.0
  %1997 = vmatpush1.msra.mxu0 0.0
  %1998 = vmatprep.subr.mxu0 0.0
  %1999 = vmatpush1.msra.mxu0 0.0
  %2000 = vmatprep.subr.mxu0 0.0
  %2001 = vmatpush1.msra.mxu0 0.0
  %2002 = vmatprep.subr.mxu0 0.0
  %2003 = vmatpush1.msra.mxu0 0.0
  %2004 = vmatprep.subr.mxu0 0.0
  %2005 = vmatpush1.msra.mxu0 0.0
  %2006 = vmatprep.subr.mxu0 0.0
  %2007 = vmatpush1.msra.mxu0 0.0
  %2008 = vmatprep.subr.mxu0 0.0
  %2009 = vmatpush1.msra.mxu0 0.0
  %2010 = vmatprep.subr.mxu0 0.0
  %2011 = vmatpush1.msra.mxu0 0.0
  %2012 = vmatprep.subr.mxu0 0.0
  %2013 = vmatpush1.msra.mxu0 0.0
  %2014 = vmatprep.subr.mxu0 0.0
  %2015 = vmatpush1.msra.mxu0 0.0
  %2016 = vmatprep.subr.mxu0 0.0
  %2017 = vmatpush1.msra.mxu0 0.0
  %2018 = vmatprep.subr.mxu0 0.0
  %2019 = vmatpush1.msra.mxu0 0.0
  %2020 = vmatprep.subr.mxu0 0.0
  %2021 = vmatpush1.msra.mxu0 0.0
  %2022 = vmatprep.subr.mxu0 0.0
  %2023 = vmatpush1.msra.mxu0 0.0
  %2024 = vmatprep.subr.mxu0 0.0
  %2025 = vmatpush1.msra.mxu0 0.0
  %2026 = vmatprep.subr.mxu0 0.0
  %2027 = vmatpush1.msra.mxu0 0.0
  %2028 = vmatprep.subr.mxu0 0.0
  %2029 = vmatpush1.msra.mxu0 0.0
  %2030 = vmatprep.subr.mxu0 0.0
  %2031 = vmatpush1.msra.mxu0 0.0
  %2032 = vmatprep.subr.mxu0 0.0
  %2033 = vmatpush1.msra.mxu0 0.0
  %2034 = vmatprep.subr.mxu0 0.0
  %2035 = vmatpush1.msra.mxu0 0.0
  %2036 = vmatprep.mubr.f32.mxu0 0.0
  %2037 = vmatmul.mubr.f32.gmra.mrb[0].mxu0 %v1890
  %v2038 = vpop.f32.mrb[0].mxu0
  %v2039 = vadd.f32 0.0, %v2038
  %v2040 = vpop.f32.mrb[0].mxu0
  %v2041 = vadd.f32 0.0, %v2040
  %2042 = vmatprep.mubr.f32.mxu0 0.0
  %2043 = vmatmul.mubr.f32.gmra.mrb[0].mxu0 %v1893
  %v2044 = vpop.f32.mrb[0].mxu0
  %v2045 = vadd.f32 0.0, %v2044
  %v2046 = vpop.f32.mrb[0].mxu0
  %v2047 = vadd.f32 0.0, %v2046
  %2048 = vdwg.mxu0
  %v2049 = vmax.f32 %v1962, 0.0
  %v2050 = vmax.f32 %v1964, 0.0
  %v2051 = vmax.f32 %v2039, 0.0
  %v2052 = vmax.f32 %v2041, 0.0
  %v2053 = vmax.f32 %v1968, 0.0
  %v2054 = vmax.f32 %v1970, 0.0
  %v2055 = vmax.f32 %v2045, 0.0
  %v2056 = vmax.f32 %v2047, 0.0
  %v2057 = vld [vmem:[%s6] sm:$0xff]
  %v2058 = vld [vmem:[%s6 + $0x8] sm:$0xff]
  %v2059 = vld [vmem:[%s6 + $0x10] sm:$0xff]
  %v2060 = vld [vmem:[%s6 + $0x18] sm:$0xff]
  %v2061 = vld [vmem:[%s6 + $0x20] sm:$0xff]
  %v2062 = vld [vmem:[%s6 + $0x28] sm:$0xff]
  %v2063 = vld [vmem:[%s6 + $0x30] sm:$0xff]
  %v2064 = vld [vmem:[%s6 + $0x38] sm:$0xff]
  %v2065 = vld [vmem:[%s6 + $0x40] sm:$0xff]
  %v2066 = vld [vmem:[%s6 + $0x48] sm:$0xff]
  %v2067 = vld [vmem:[%s6 + $0x50] sm:$0xff]
  %v2068 = vld [vmem:[%s6 + $0x58] sm:$0xff]
  %v2069 = vld [vmem:[%s6 + $0x60] sm:$0xff]
  %v2070 = vld [vmem:[%s6 + $0x68] sm:$0xff]
  %v2071 = vld [vmem:[%s6 + $0x70] sm:$0xff]
  %v2072 = vld [vmem:[%s6 + $0x78] sm:$0xff]
  %v2073 = vld [vmem:[%s6 + $0x80] sm:$0xff]
  %v2074 = vld [vmem:[%s6 + $0x88] sm:$0xff]
  %v2075 = vld [vmem:[%s6 + $0x90] sm:$0xff]
  %v2076 = vld [vmem:[%s6 + $0x98] sm:$0xff]
  %v2077 = vld [vmem:[%s6 + $0xa0] sm:$0xff]
  %v2078 = vld [vmem:[%s6 + $0xa8] sm:$0xff]
  %v2079 = vld [vmem:[%s6 + $0xb0] sm:$0xff]
  %v2080 = vld [vmem:[%s6 + $0xb8] sm:$0xff]
  %v2081 = vld [vmem:[%s6 + $0xc0] sm:$0xff]
  %v2082 = vld [vmem:[%s6 + $0xc8] sm:$0xff]
  %v2083 = vld [vmem:[%s6 + $0xd0] sm:$0xff]
  %v2084 = vld [vmem:[%s6 + $0xd8] sm:$0xff]
  %v2085 = vld [vmem:[%s6 + $0xe0] sm:$0xff]
  %v2086 = vld [vmem:[%s6 + $0xe8] sm:$0xff]
  %v2087 = vld [vmem:[%s6 + $0xf0] sm:$0xff]
  %v2088 = vld [vmem:[%s6 + $0xf8] sm:$0xff]
  %v2089 = vld [vmem:[%s6 + $0x100] sm:$0xff]
  %v2090 = vld [vmem:[%s6 + $0x108] sm:$0xff]
  %v2091 = vld [vmem:[%s6 + $0x110] sm:$0xff]
  %v2092 = vld [vmem:[%s6 + $0x118] sm:$0xff]
  %v2093 = vld [vmem:[%s6 + $0x120] sm:$0xff]
  %v2094 = vld [vmem:[%s6 + $0x128] sm:$0xff]
  %v2095 = vld [vmem:[%s6 + $0x130] sm:$0xff]
  %v2096 = vld [vmem:[%s6 + $0x138] sm:$0xff]
  %v2097 = vld [vmem:[%s6 + $0x140] sm:$0xff]
  %v2098 = vld [vmem:[%s6 + $0x148] sm:$0xff]
  %v2099 = vld [vmem:[%s6 + $0x150] sm:$0xff]
  %v2100 = vld [vmem:[%s6 + $0x158] sm:$0xff]
  %v2101 = vld [vmem:[%s6 + $0x160] sm:$0xff]
  %v2102 = vld [vmem:[%s6 + $0x168] sm:$0xff]
  %v2103 = vld [vmem:[%s6 + $0x170] sm:$0xff]
  %v2104 = vld [vmem:[%s6 + $0x178] sm:$0xff]
  %v2105 = vld [vmem:[%s6 + $0x180] sm:$0xff]
  %v2106 = vld [vmem:[%s6 + $0x188] sm:$0xff]
  %v2107 = vld [vmem:[%s6 + $0x190] sm:$0xff]
  %v2108 = vld [vmem:[%s6 + $0x198] sm:$0xff]
  %v2109 = vld [vmem:[%s6 + $0x1a0] sm:$0xff]
  %v2110 = vld [vmem:[%s6 + $0x1a8] sm:$0xff]
  %v2111 = vld [vmem:[%s6 + $0x1b0] sm:$0xff]
  %v2112 = vld [vmem:[%s6 + $0x1b8] sm:$0xff]
  %v2113 = vld [vmem:[%s6 + $0x1c0] sm:$0xff]
  %v2114 = vld [vmem:[%s6 + $0x1c8] sm:$0xff]
  %v2115 = vld [vmem:[%s6 + $0x1d0] sm:$0xff]
  %v2116 = vld [vmem:[%s6 + $0x1d8] sm:$0xff]
  %v2117 = vld [vmem:[%s6 + $0x1e0] sm:$0xff]
  %v2118 = vld [vmem:[%s6 + $0x1e8] sm:$0xff]
  %v2119 = vld [vmem:[%s6 + $0x1f0] sm:$0xff]
  %v2120 = vld [vmem:[%s6 + $0x1f8] sm:$0xff]
  %2129 = vrot.lane.b32.xlu0 %v2049, 126
  %v2130 = vpop.permute.xlu0 %2129
  %2131 = vrot.lane.b32.xlu0 %v2050, 126
  %v2132 = vpop.permute.xlu0 %2131
  %2133 = vrot.lane.b32.xlu0 %v2051, 126
  %v2134 = vpop.permute.xlu0 %2133
  %2135 = vrot.lane.b32.xlu0 %v2052, 126
  %v2136 = vpop.permute.xlu0 %2135
  %2137 = vrot.lane.b32.xlu0 %v2053, 126
  %v2138 = vpop.permute.xlu0 %2137
  %2139 = vrot.lane.b32.xlu0 %v2054, 126
  %v2140 = vpop.permute.xlu0 %2139
  %2141 = vrot.lane.b32.xlu0 %v2055, 126
  %v2142 = vpop.permute.xlu0 %2141
  %2143 = vrot.lane.b32.xlu0 %v2056, 126
  %v2144 = vpop.permute.xlu0 %2143
  %v2145 = vsel %vm204, %v2130, %v2132
  %v2146 = vsel %vm204, %v2132, %v2134
  %v2147 = vsel %vm204, %v2134, %v2136
  %v2148 = vsel %vm204, %v2136, %v2130
  %v2149 = vsel %vm204, %v2138, %v2140
  %v2150 = vsel %vm204, %v2140, %v2142
  %v2151 = vsel %vm204, %v2142, %v2144
  %v2152 = vsel %vm204, %v2144, %v2138
  %v2161 = vmax.f32 %v2049, %v2145
  %v2162 = vmax.f32 %v2050, %v2146
  %v2163 = vmax.f32 %v2051, %v2147
  %v2164 = vmax.f32 %v2052, %v2148
  %v2165 = vmax.f32 %v2053, %v2149
  %v2166 = vmax.f32 %v2054, %v2150
  %v2167 = vmax.f32 %v2055, %v2151
  %v2168 = vmax.f32 %v2056, %v2152
  %2169 = vrot.lane.b32.xlu0 %v2049, 96
  %v2170 = vpop.permute.xlu0 %2169
  %2171 = vrot.lane.b32.xlu0 %v2050, 96
  %v2172 = vpop.permute.xlu0 %2171
  %2173 = vrot.lane.b32.xlu0 %v2051, 96
  %v2174 = vpop.permute.xlu0 %2173
  %2175 = vrot.lane.b32.xlu0 %v2052, 96
  %v2176 = vpop.permute.xlu0 %2175
  %2177 = vrot.lane.b32.xlu0 %v2053, 96
  %v2178 = vpop.permute.xlu0 %2177
  %2179 = vrot.lane.b32.xlu0 %v2054, 96
  %v2180 = vpop.permute.xlu0 %2179
  %2181 = vrot.lane.b32.xlu0 %v2055, 96
  %v2182 = vpop.permute.xlu0 %2181
  %2183 = vrot.lane.b32.xlu0 %v2056, 96
  %v2184 = vpop.permute.xlu0 %2183
  %v2185 = vsel %vm126, %v2170, %v2172
  %v2186 = vsel %vm126, %v2172, %v2174
  %v2187 = vsel %vm126, %v2174, %v2176
  %v2188 = vsel %vm126, %v2176, %v2170
  %v2189 = vsel %vm126, %v2178, %v2180
  %v2190 = vsel %vm126, %v2180, %v2182
  %v2191 = vsel %vm126, %v2182, %v2184
  %v2192 = vsel %vm126, %v2184, %v2178
  %v2201 = vmax.f32 %v2161, %v2185
  %v2202 = vmax.f32 %v2162, %v2186
  %v2203 = vmax.f32 %v2163, %v2187
  %v2204 = vmax.f32 %v2164, %v2188
  %v2205 = vmax.f32 %v2165, %v2189
  %v2206 = vmax.f32 %v2166, %v2190
  %v2207 = vmax.f32 %v2167, %v2191
  %v2208 = vmax.f32 %v2168, %v2192
  %2209 = vrot.lane.b32.xlu0 %v2049, 94
  %v2210 = vpop.permute.xlu0 %2209
  %2211 = vrot.lane.b32.xlu0 %v2050, 94
  %v2212 = vpop.permute.xlu0 %2211
  %2213 = vrot.lane.b32.xlu0 %v2051, 94
  %v2214 = vpop.permute.xlu0 %2213
  %2215 = vrot.lane.b32.xlu0 %v2052, 94
  %v2216 = vpop.permute.xlu0 %2215
  %2217 = vrot.lane.b32.xlu0 %v2053, 94
  %v2218 = vpop.permute.xlu0 %2217
  %2219 = vrot.lane.b32.xlu0 %v2054, 94
  %v2220 = vpop.permute.xlu0 %2219
  %2221 = vrot.lane.b32.xlu0 %v2055, 94
  %v2222 = vpop.permute.xlu0 %2221
  %2223 = vrot.lane.b32.xlu0 %v2056, 94
  %v2224 = vpop.permute.xlu0 %2223
  %v2225 = vsel %vm87, %v2210, %v2212
  %v2226 = vsel %vm87, %v2212, %v2214
  %v2227 = vsel %vm87, %v2214, %v2216
  %v2228 = vsel %vm87, %v2216, %v2210
  %v2229 = vsel %vm87, %v2218, %v2220
  %v2230 = vsel %vm87, %v2220, %v2222
  %v2231 = vsel %vm87, %v2222, %v2224
  %v2232 = vsel %vm87, %v2224, %v2218
  %v2241 = vmax.f32 %v2201, %v2225
  %v2242 = vmax.f32 %v2202, %v2226
  %v2243 = vmax.f32 %v2203, %v2227
  %v2244 = vmax.f32 %v2204, %v2228
  %v2245 = vmax.f32 %v2205, %v2229
  %v2246 = vmax.f32 %v2206, %v2230
  %v2247 = vmax.f32 %v2207, %v2231
  %v2248 = vmax.f32 %v2208, %v2232
  %2249 = vmatprep.subr.mxu0 0.0
  %2250 = vmatpush1.msra.mxu0 %v2057
  %2251 = vmatprep.subr.mxu0 0.0
  %2252 = vmatpush1.msra.mxu0 %v2058
  %2253 = vmatprep.subr.mxu0 0.0
  %2254 = vmatpush1.msra.mxu0 %v2059
  %2255 = vmatprep.subr.mxu0 0.0
  %2256 = vmatpush1.msra.mxu0 %v2060
  %2257 = vmatprep.subr.mxu0 0.0
  %2258 = vmatpush1.msra.mxu0 %v2061
  %2259 = vmatprep.subr.mxu0 0.0
  %2260 = vmatpush1.msra.mxu0 %v2062
  %2261 = vmatprep.subr.mxu0 0.0
  %2262 = vmatpush1.msra.mxu0 %v2063
  %2263 = vmatprep.subr.mxu0 0.0
  %2264 = vmatpush1.msra.mxu0 %v2064
  %2265 = vmatprep.subr.mxu0 0.0
  %2266 = vmatpush1.msra.mxu0 %v2065
  %2267 = vmatprep.subr.mxu0 0.0
  %2268 = vmatpush1.msra.mxu0 %v2066
  %2269 = vmatprep.subr.mxu0 0.0
  %2270 = vmatpush1.msra.mxu0 %v2067
  %2271 = vmatprep.subr.mxu0 0.0
  %2272 = vmatpush1.msra.mxu0 %v2068
  %2273 = vmatprep.subr.mxu0 0.0
  %2274 = vmatpush1.msra.mxu0 %v2069
  %2275 = vmatprep.subr.mxu0 0.0
  %2276 = vmatpush1.msra.mxu0 %v2070
  %2277 = vmatprep.subr.mxu0 0.0
  %2278 = vmatpush1.msra.mxu0 %v2071
  %2279 = vmatprep.subr.mxu0 0.0
  %2280 = vmatpush1.msra.mxu0 %v2072
  %2281 = vmatprep.subr.mxu0 0.0
  %2282 = vmatpush1.msra.mxu0 %v2073
  %2283 = vmatprep.subr.mxu0 0.0
  %2284 = vmatpush1.msra.mxu0 %v2074
  %2285 = vmatprep.subr.mxu0 0.0
  %2286 = vmatpush1.msra.mxu0 %v2075
  %2287 = vmatprep.subr.mxu0 0.0
  %2288 = vmatpush1.msra.mxu0 %v2076
  %2289 = vmatprep.subr.mxu0 0.0
  %2290 = vmatpush1.msra.mxu0 %v2077
  %2291 = vmatprep.subr.mxu0 0.0
  %2292 = vmatpush1.msra.mxu0 %v2078
  %2293 = vmatprep.subr.mxu0 0.0
  %2294 = vmatpush1.msra.mxu0 %v2079
  %2295 = vmatprep.subr.mxu0 0.0
  %2296 = vmatpush1.msra.mxu0 %v2080
  %2297 = vmatprep.subr.mxu0 0.0
  %2298 = vmatpush1.msra.mxu0 %v2081
  %2299 = vmatprep.subr.mxu0 0.0
  %2300 = vmatpush1.msra.mxu0 %v2082
  %2301 = vmatprep.subr.mxu0 0.0
  %2302 = vmatpush1.msra.mxu0 %v2083
  %2303 = vmatprep.subr.mxu0 0.0
  %2304 = vmatpush1.msra.mxu0 %v2084
  %2305 = vmatprep.subr.mxu0 0.0
  %2306 = vmatpush1.msra.mxu0 %v2085
  %2307 = vmatprep.subr.mxu0 0.0
  %2308 = vmatpush1.msra.mxu0 %v2086
  %2309 = vmatprep.subr.mxu0 0.0
  %2310 = vmatpush1.msra.mxu0 %v2087
  %2311 = vmatprep.subr.mxu0 0.0
  %2312 = vmatpush1.msra.mxu0 %v2088
  %2313 = vmatprep.mubr.f32.mxu0 %v2242
  %2314 = vmatmul.mubr.f32.gmra.mrb[0].mxu0 %v2241
  %v2315 = vpop.f32.mrb[0].mxu0
  %v2316 = vadd.f32 0.0, %v2315
  %v2317 = vpop.f32.mrb[0].mxu0
  %2318 = vmatprep.mubr.f32.mxu0 %v2246
  %2319 = vmatmul.mubr.f32.gmra.mrb[0].mxu0 %v2245
  %v2320 = vpop.f32.mrb[0].mxu0
  %v2321 = vadd.f32 0.0, %v2320
  %v2322 = vpop.f32.mrb[0].mxu0
  %2323 = vdwg.mxu0
  %2324 = vmatprep.subr.mxu0 0.0
  %2325 = vmatpush1.msra.mxu0 %v2089
  %2326 = vmatprep.subr.mxu0 0.0
  %2327 = vmatpush1.msra.mxu0 %v2090
  %2328 = vmatprep.subr.mxu0 0.0
  %2329 = vmatpush1.msra.mxu0 %v2091
  %2330 = vmatprep.subr.mxu0 0.0
  %2331 = vmatpush1.msra.mxu0 %v2092
  %2332 = vmatprep.subr.mxu0 0.0
  %2333 = vmatpush1.msra.mxu0 %v2093
  %2334 = vmatprep.subr.mxu0 0.0
  %2335 = vmatpush1.msra.mxu0 %v2094
  %2336 = vmatprep.subr.mxu0 0.0
  %2337 = vmatpush1.msra.mxu0 %v2095
  %2338 = vmatprep.subr.mxu0 0.0
  %2339 = vmatpush1.msra.mxu0 %v2096
  %2340 = vmatprep.subr.mxu0 0.0
  %2341 = vmatpush1.msra.mxu0 %v2097
  %2342 = vmatprep.subr.mxu0 0.0
  %2343 = vmatpush1.msra.mxu0 %v2098
  %2344 = vmatprep.subr.mxu0 0.0
  %2345 = vmatpush1.msra.mxu0 %v2099
  %2346 = vmatprep.subr.mxu0 0.0
  %2347 = vmatpush1.msra.mxu0 %v2100
  %2348 = vmatprep.subr.mxu0 0.0
  %2349 = vmatpush1.msra.mxu0 %v2101
  %2350 = vmatprep.subr.mxu0 0.0
  %2351 = vmatpush1.msra.mxu0 %v2102
  %2352 = vmatprep.subr.mxu0 0.0
  %2353 = vmatpush1.msra.mxu0 %v2103
  %2354 = vmatprep.subr.mxu0 0.0
  %2355 = vmatpush1.msra.mxu0 %v2104
  %2356 = vmatprep.subr.mxu0 0.0
  %2357 = vmatpush1.msra.mxu0 %v2105
  %2358 = vmatprep.subr.mxu0 0.0
  %2359 = vmatpush1.msra.mxu0 %v2106
  %2360 = vmatprep.subr.mxu0 0.0
  %2361 = vmatpush1.msra.mxu0 %v2107
  %2362 = vmatprep.subr.mxu0 0.0
  %2363 = vmatpush1.msra.mxu0 %v2108
  %2364 = vmatprep.subr.mxu0 0.0
  %2365 = vmatpush1.msra.mxu0 %v2109
  %2366 = vmatprep.subr.mxu0 0.0
  %2367 = vmatpush1.msra.mxu0 %v2110
  %2368 = vmatprep.subr.mxu0 0.0
  %2369 = vmatpush1.msra.mxu0 %v2111
  %2370 = vmatprep.subr.mxu0 0.0
  %2371 = vmatpush1.msra.mxu0 %v2112
  %2372 = vmatprep.subr.mxu0 0.0
  %2373 = vmatpush1.msra.mxu0 %v2113
  %2374 = vmatprep.subr.mxu0 0.0
  %2375 = vmatpush1.msra.mxu0 %v2114
  %2376 = vmatprep.subr.mxu0 0.0
  %2377 = vmatpush1.msra.mxu0 %v2115
  %2378 = vmatprep.subr.mxu0 0.0
  %2379 = vmatpush1.msra.mxu0 %v2116
  %2380 = vmatprep.subr.mxu0 0.0
  %2381 = vmatpush1.msra.mxu0 %v2117
  %2382 = vmatprep.subr.mxu0 0.0
  %2383 = vmatpush1.msra.mxu0 %v2118
  %2384 = vmatprep.subr.mxu0 0.0
  %2385 = vmatpush1.msra.mxu0 %v2119
  %2386 = vmatprep.subr.mxu0 0.0
  %2387 = vmatpush1.msra.mxu0 %v2120
  %2388 = vmatprep.mubr.f32.mxu0 %v2244
  %2389 = vmatmul.mubr.f32.gmra.mrb[0].mxu0 %v2243
  %v2390 = vpop.f32.mrb[0].mxu0
  %v2391 = vadd.f32 %v2316, %v2390
  %v2392 = vpop.f32.mrb[0].mxu0
  %2393 = vmatprep.mubr.f32.mxu0 %v2248
  %2394 = vmatmul.mubr.f32.gmra.mrb[0].mxu0 %v2247
  %v2395 = vpop.f32.mrb[0].mxu0
  %v2396 = vadd.f32 %v2321, %v2395
  %v2397 = vpop.f32.mrb[0].mxu0
  %2398 = vdwg.mxu0
  %v2399 = vld [vmem:[%s8] sm:$0xff]
  %v2400 = vld [vmem:[%s8 + $0x8] sm:$0xff]
  %v2401 = vld [vmem:[%s9] sm:$0xff]
  %v2402 = vld [vmem:[%s9 + $0x8] sm:$0xff]
  %v2403 = vld [vmem:[%s9 + $0x10] sm:$0xff]
  %v2404 = vld [vmem:[%s9 + $0x18] sm:$0xff]
  %v2405 = vld [vmem:[%s7] sm:$0x1]
  %v2406 = vld [vmem:[%s7 + $0x1] sm:$0x1]
  %v2407 = vld [vmem:[%s7 + $0x2] sm:$0x1]
  %v2408 = vld [vmem:[%s7 + $0x3] sm:$0x1]
  %v2409 = vld [vmem:[%s7 + $0x4] sm:$0x1]
  %v2410 = vld [vmem:[%s7 + $0x5] sm:$0x1]
  %v2411 = vld [vmem:[%s7 + $0x6] sm:$0x1]
  %v2412 = vld [vmem:[%s7 + $0x7] sm:$0x1]
  %v2413 = vld [vmem:[%s7 + $0x8] sm:$0x1]
  %v2415 = vlaneseq
  %v2416 = vshrl.u32 %v2415, 7
  %v2417 = vsub.s32 0, %v2416
  %v2418 = vrot.slane %v2405, %v2417
  %2419 = vrot.lane.b32.xlu0 %v2418, 110
  %v2420 = vpop.permute.xlu0 %2419
  %v2422 = vmul.f32 %v2391, %v2420
  %v2424 = vlaneseq
  %v2425 = vshrl.u32 %v2424, 7
  %v2426 = vsub.s32 0, %v2425
  %v2427 = vrot.slane %v2406, %v2426
  %2428 = vrot.lane.b32.xlu0 %v2427, 112
  %v2429 = vpop.permute.xlu0 %2428
  %v2431 = vmul.f32 %v2391, %v2429
  %v2433 = vlaneseq
  %v2434 = vshrl.u32 %v2433, 7
  %v2435 = vsub.s32 0, %v2434
  %v2436 = vrot.slane %v2407, %v2435
  %2437 = vrot.lane.b32.xlu0 %v2436, 114
  %v2438 = vpop.permute.xlu0 %2437
  %v2440 = vmul.f32 %v2391, %v2438
  %v2442 = vlaneseq
  %v2443 = vshrl.u32 %v2442, 7
  %v2444 = vsub.s32 0, %v2443
  %v2445 = vrot.slane %v2408, %v2444
  %2446 = vrot.lane.b32.xlu0 %v2445, 126
  %v2447 = vpop.permute.xlu0 %2446
  %v2449 = vmul.f32 %v2391, %v2447
  %v2451 = vlaneseq
  %v2452 = vshrl.u32 %v2451, 7
  %v2453 = vsub.s32 0, %v2452
  %v2454 = vrot.slane %v2409, %v2453
  %v2456 = vmul.f32 %v2391, %v2454
  %v2458 = vlaneseq
  %v2459 = vshrl.u32 %v2458, 7
  %v2460 = vsub.s32 0, %v2459
  %v2461 = vrot.slane %v2410, %v2460
  %2462 = vrot.lane.b32.xlu0 %v2461, 2
  %v2463 = vpop.permute.xlu0 %2462
  %v2465 = vmul.f32 %v2391, %v2463
  %v2467 = vlaneseq
  %v2468 = vshrl.u32 %v2467, 7
  %v2469 = vsub.s32 0, %v2468
  %v2470 = vrot.slane %v2411, %v2469
  %2471 = vrot.lane.b32.xlu0 %v2470, 14
  %v2472 = vpop.permute.xlu0 %2471
  %v2474 = vmul.f32 %v2391, %v2472
  %v2476 = vlaneseq
  %v2477 = vshrl.u32 %v2476, 7
  %v2478 = vsub.s32 0, %v2477
  %v2479 = vrot.slane %v2412, %v2478
  %2480 = vrot.lane.b32.xlu0 %v2479, 16
  %v2481 = vpop.permute.xlu0 %2480
  %v2483 = vmul.f32 %v2391, %v2481
  %v2485 = vlaneseq
  %v2486 = vshrl.u32 %v2485, 7
  %v2487 = vsub.s32 0, %v2486
  %v2488 = vrot.slane %v2413, %v2487
  %2489 = vrot.lane.b32.xlu0 %v2488, 18
  %v2490 = vpop.permute.xlu0 %2489
  %v2492 = vmul.f32 %v2391, %v2490
  %2494 = vrot.lane.b32.xlu0 %v2431, 126
  %v2495 = vpop.permute.xlu0 %2494
  %2497 = vrot.lane.b32.xlu0 %v2440, 124
  %v2498 = vpop.permute.xlu0 %2497
  %2500 = vrot.lane.b32.xlu0 %v2449, 112
  %v2501 = vpop.permute.xlu0 %2500
  %2503 = vrot.lane.b32.xlu0 %v2456, 110
  %v2504 = vpop.permute.xlu0 %2503
  %2506 = vrot.lane.b32.xlu0 %v2465, 108
  %v2507 = vpop.permute.xlu0 %2506
  %2509 = vrot.lane.b32.xlu0 %v2474, 96
  %v2510 = vpop.permute.xlu0 %2509
  %2512 = vrot.lane.b32.xlu0 %v2483, 94
  %v2513 = vpop.permute.xlu0 %2512
  %2515 = vrot.lane.b32.xlu0 %v2492, 92
  %v2516 = vpop.permute.xlu0 %2515
  %v2517 = vmul.f32 %v2396, %v2420
  %v2518 = vmul.f32 %v2396, %v2429
  %v2519 = vmul.f32 %v2396, %v2438
  %v2520 = vmul.f32 %v2396, %v2447
  %v2521 = vmul.f32 %v2396, %v2454
  %v2522 = vmul.f32 %v2396, %v2463
  %v2523 = vmul.f32 %v2396, %v2472
  %v2524 = vmul.f32 %v2396, %v2481
  %v2525 = vmul.f32 %v2396, %v2490
  %2527 = vrot.lane.b32.xlu0 %v2518, 126
  %v2528 = vpop.permute.xlu0 %2527
  %2530 = vrot.lane.b32.xlu0 %v2519, 124
  %v2531 = vpop.permute.xlu0 %2530
  %2533 = vrot.lane.b32.xlu0 %v2520, 112
  %v2534 = vpop.permute.xlu0 %2533
  %2536 = vrot.lane.b32.xlu0 %v2521, 110
  %v2537 = vpop.permute.xlu0 %2536
  %2539 = vrot.lane.b32.xlu0 %v2522, 108
  %v2540 = vpop.permute.xlu0 %2539
  %2542 = vrot.lane.b32.xlu0 %v2523, 96
  %v2543 = vpop.permute.xlu0 %2542
  %2545 = vrot.lane.b32.xlu0 %v2524, 94
  %v2546 = vpop.permute.xlu0 %2545
  %2548 = vrot.lane.b32.xlu0 %v2525, 92
  %v2549 = vpop.permute.xlu0 %2548
  %2551 = vrot.lane.b32.xlu0 %v2422, 18
  %v2552 = vpop.permute.xlu0 %2551
  %2553 = vrot.lane.b32.xlu0 %v2495, 18
  %v2554 = vpop.permute.xlu0 %2553
  %2555 = vrot.lane.b32.xlu0 %v2498, 18
  %v2556 = vpop.permute.xlu0 %2555
  %2557 = vrot.lane.b32.xlu0 %v2501, 18
  %v2558 = vpop.permute.xlu0 %2557
  %2559 = vrot.lane.b32.xlu0 %v2504, 18
  %v2560 = vpop.permute.xlu0 %2559
  %2561 = vrot.lane.b32.xlu0 %v2507, 18
  %v2562 = vpop.permute.xlu0 %2561
  %2563 = vrot.lane.b32.xlu0 %v2510, 18
  %v2564 = vpop.permute.xlu0 %2563
  %2565 = vrot.lane.b32.xlu0 %v2513, 18
  %v2566 = vpop.permute.xlu0 %2565
  %2567 = vrot.lane.b32.xlu0 %v2516, 18
  %v2568 = vpop.permute.xlu0 %2567
  %vm2569 = vcmask 146432
  %v2570 = vsel %vm2569, %v2554, %v2554
  %v2571 = vsel %vm2569, %v2556, %v2556
  %v2572 = vsel %vm2569, %v2558, %v2558
  %v2573 = vsel %vm2569, %v2562, %v2562
  %v2574 = vsel %vm2569, %v2564, %v2564
  %v2575 = vsel %vm2569, %v2566, %v2566
  %v2576 = vsel %vm2569, %v2568, %v2568
  %2587 = vrot.lane.b32.xlu0 %v2517, 18
  %v2588 = vpop.permute.xlu0 %2587
  %2589 = vrot.lane.b32.xlu0 %v2528, 18
  %v2590 = vpop.permute.xlu0 %2589
  %2591 = vrot.lane.b32.xlu0 %v2531, 18
  %v2592 = vpop.permute.xlu0 %2591
  %2593 = vrot.lane.b32.xlu0 %v2534, 18
  %v2594 = vpop.permute.xlu0 %2593
  %2595 = vrot.lane.b32.xlu0 %v2537, 18
  %v2596 = vpop.permute.xlu0 %2595
  %2597 = vrot.lane.b32.xlu0 %v2540, 18
  %v2598 = vpop.permute.xlu0 %2597
  %2599 = vrot.lane.b32.xlu0 %v2543, 18
  %v2600 = vpop.permute.xlu0 %2599
  %2601 = vrot.lane.b32.xlu0 %v2546, 18
  %v2602 = vpop.permute.xlu0 %2601
  %2603 = vrot.lane.b32.xlu0 %v2549, 18
  %v2604 = vpop.permute.xlu0 %2603
  %v2605 = vsel %vm2569, %v2590, %v2590
  %v2606 = vsel %vm2569, %v2592, %v2592
  %v2607 = vsel %vm2569, %v2594, %v2594
  %v2608 = vsel %vm2569, %v2598, %v2598
  %v2609 = vsel %vm2569, %v2600, %v2600
  %v2610 = vsel %vm2569, %v2602, %v2602
  %v2611 = vsel %vm2569, %v2604, %v2604
  %vm2621 = vcmask 588800
  %v2623 = vsel %vm2621, %v2399, 0
  %v2626 = vsel %vm2621, %v2400, 0
  %2628 = vmatprep.subr.mxu0 %v2588
  %2629 = vmatpush1.msra.mxu0 %v2552
  %2630 = vmatprep.subr.mxu0 %v2605
  %2631 = vmatpush1.msra.mxu0 %v2570
  %2632 = vmatprep.subr.mxu0 %v2606
  %2633 = vmatpush1.msra.mxu0 %v2571
  %2634 = vmatprep.subr.mxu0 %v2607
  %2635 = vmatpush1.msra.mxu0 %v2572
  %2636 = vmatprep.subr.mxu0 %v2596
  %2637 = vmatpush1.msra.mxu0 %v2560
  %2638 = vmatprep.subr.mxu0 %v2608
  %2639 = vmatpush1.msra.mxu0 %v2573
  %2640 = vmatprep.subr.mxu0 %v2609
  %2641 = vmatpush1.msra.mxu0 %v2574
  %2642 = vmatprep.subr.mxu0 %v2610
  %2643 = vmatpush1.msra.mxu0 %v2575
  %2644 = vmatprep.subr.mxu0 %v2611
  %2645 = vmatpush1.msra.mxu0 %v2576
  %2646 = vmatprep.subr.mxu0 0.0
  %2647 = vmatpush1.msra.mxu0 0.0
  %2648 = vmatprep.subr.mxu0 0.0
  %2649 = vmatpush1.msra.mxu0 0.0
  %2650 = vmatprep.subr.mxu0 0.0
  %2651 = vmatpush1.msra.mxu0 0.0
  %2652 = vmatprep.subr.mxu0 0.0
  %2653 = vmatpush1.msra.mxu0 0.0
  %2654 = vmatprep.subr.mxu0 0.0
  %2655 = vmatpush1.msra.mxu0 0.0
  %2656 = vmatprep.subr.mxu0 0.0
  %2657 = vmatpush1.msra.mxu0 0.0
  %2658 = vmatprep.subr.mxu0 0.0
  %2659 = vmatpush1.msra.mxu0 0.0
  %2660 = vmatprep.subr.mxu0 0.0
  %2661 = vmatpush1.msra.mxu0 0.0
  %2662 = vmatprep.subr.mxu0 0.0
  %2663 = vmatpush1.msra.mxu0 0.0
  %2664 = vmatprep.subr.mxu0 0.0
  %2665 = vmatpush1.msra.mxu0 0.0
  %2666 = vmatprep.subr.mxu0 0.0
  %2667 = vmatpush1.msra.mxu0 0.0
  %2668 = vmatprep.subr.mxu0 0.0
  %2669 = vmatpush1.msra.mxu0 0.0
  %2670 = vmatprep.subr.mxu0 0.0
  %2671 = vmatpush1.msra.mxu0 0.0
  %2672 = vmatprep.subr.mxu0 0.0
  %2673 = vmatpush1.msra.mxu0 0.0
  %2674 = vmatprep.subr.mxu0 0.0
  %2675 = vmatpush1.msra.mxu0 0.0
  %2676 = vmatprep.subr.mxu0 0.0
  %2677 = vmatpush1.msra.mxu0 0.0
  %2678 = vmatprep.subr.mxu0 0.0
  %2679 = vmatpush1.msra.mxu0 0.0
  %2680 = vmatprep.subr.mxu0 0.0
  %2681 = vmatpush1.msra.mxu0 0.0
  %2682 = vmatprep.subr.mxu0 0.0
  %2683 = vmatpush1.msra.mxu0 0.0
  %2684 = vmatprep.subr.mxu0 0.0
  %2685 = vmatpush1.msra.mxu0 0.0
  %2686 = vmatprep.subr.mxu0 0.0
  %2687 = vmatpush1.msra.mxu0 0.0
  %2688 = vmatprep.subr.mxu0 0.0
  %2689 = vmatpush1.msra.mxu0 0.0
  %2690 = vmatprep.subr.mxu0 0.0
  %2691 = vmatpush1.msra.mxu0 0.0
  %2692 = vmatprep.mubr.f32.mxu0 0.0
  %2693 = vmatmul.mubr.f32.gmra.mrb[0].mxu0 %v2623
  %v2694 = vpop.f32.mrb[0].mxu0
  %v2695 = vadd.f32 0.0, %v2694
  %v2696 = vpop.f32.mrb[0].mxu0
  %v2697 = vadd.f32 0.0, %v2696
  %2698 = vmatprep.mubr.f32.mxu0 0.0
  %2699 = vmatmul.mubr.f32.gmra.mrb[0].mxu0 %v2626
  %v2700 = vpop.f32.mrb[0].mxu0
  %v2701 = vadd.f32 0.0, %v2700
  %v2702 = vpop.f32.mrb[0].mxu0
  %v2703 = vadd.f32 0.0, %v2702
  %2704 = vdwg.mxu0
  %v2706 = vsel %vm344, %v2401, 0
  %v2709 = vsel %vm344, %v2402, 0
  %v2712 = vsel %vm344, %v2403, 0
  %v2715 = vsel %vm344, %v2404, 0
  %2717 = vmatprep.subr.mxu0 0.0
  %2718 = vmatpush1.msra.mxu0 %v2695
  %2719 = vmatprep.subr.mxu0 0.0
  %2720 = vmatpush1.msra.mxu0 %v2701
  %2721 = vmatprep.subr.mxu0 0.0
  %2722 = vmatpush1.msra.mxu0 %v2697
  %2723 = vmatprep.subr.mxu0 0.0
  %2724 = vmatpush1.msra.mxu0 %v2703
  %2725 = vmatprep.subr.mxu0 0.0
  %2726 = vmatpush1.msra.mxu0 0.0
  %2727 = vmatprep.subr.mxu0 0.0
  %2728 = vmatpush1.msra.mxu0 0.0
  %2729 = vmatprep.subr.mxu0 0.0
  %2730 = vmatpush1.msra.mxu0 0.0
  %2731 = vmatprep.subr.mxu0 0.0
  %2732 = vmatpush1.msra.mxu0 0.0
  %2733 = vmatprep.subr.mxu0 0.0
  %2734 = vmatpush1.msra.mxu0 0.0
  %2735 = vmatprep.subr.mxu0 0.0
  %2736 = vmatpush1.msra.mxu0 0.0
  %2737 = vmatprep.subr.mxu0 0.0
  %2738 = vmatpush1.msra.mxu0 0.0
  %2739 = vmatprep.subr.mxu0 0.0
  %2740 = vmatpush1.msra.mxu0 0.0
  %2741 = vmatprep.subr.mxu0 0.0
  %2742 = vmatpush1.msra.mxu0 0.0
  %2743 = vmatprep.subr.mxu0 0.0
  %2744 = vmatpush1.msra.mxu0 0.0
  %2745 = vmatprep.subr.mxu0 0.0
  %2746 = vmatpush1.msra.mxu0 0.0
  %2747 = vmatprep.subr.mxu0 0.0
  %2748 = vmatpush1.msra.mxu0 0.0
  %2749 = vmatprep.subr.mxu0 0.0
  %2750 = vmatpush1.msra.mxu0 0.0
  %2751 = vmatprep.subr.mxu0 0.0
  %2752 = vmatpush1.msra.mxu0 0.0
  %2753 = vmatprep.subr.mxu0 0.0
  %2754 = vmatpush1.msra.mxu0 0.0
  %2755 = vmatprep.subr.mxu0 0.0
  %2756 = vmatpush1.msra.mxu0 0.0
  %2757 = vmatprep.subr.mxu0 0.0
  %2758 = vmatpush1.msra.mxu0 0.0
  %2759 = vmatprep.subr.mxu0 0.0
  %2760 = vmatpush1.msra.mxu0 0.0
  %2761 = vmatprep.subr.mxu0 0.0
  %2762 = vmatpush1.msra.mxu0 0.0
  %2763 = vmatprep.subr.mxu0 0.0
  %2764 = vmatpush1.msra.mxu0 0.0
  %2765 = vmatprep.subr.mxu0 0.0
  %2766 = vmatpush1.msra.mxu0 0.0
  %2767 = vmatprep.subr.mxu0 0.0
  %2768 = vmatpush1.msra.mxu0 0.0
  %2769 = vmatprep.subr.mxu0 0.0
  %2770 = vmatpush1.msra.mxu0 0.0
  %2771 = vmatprep.subr.mxu0 0.0
  %2772 = vmatpush1.msra.mxu0 0.0
  %2773 = vmatprep.subr.mxu0 0.0
  %2774 = vmatpush1.msra.mxu0 0.0
  %2775 = vmatprep.subr.mxu0 0.0
  %2776 = vmatpush1.msra.mxu0 0.0
  %2777 = vmatprep.subr.mxu0 0.0
  %2778 = vmatpush1.msra.mxu0 0.0
  %2779 = vmatprep.subr.mxu0 0.0
  %2780 = vmatpush1.msra.mxu0 0.0
  %2781 = vmatprep.mubr.f32.mxu0 0.0
  %2782 = vmatmul.mubr.f32.gmra.mrb[0].mxu0 %v2706
  %v2783 = vpop.f32.mrb[0].mxu0
  %v2784 = vadd.f32 0.0, %v2783
  %v2785 = vpop.f32.mrb[0].mxu0
  %2786 = vmatprep.mubr.f32.mxu0 0.0
  %2787 = vmatmul.mubr.f32.gmra.mrb[0].mxu0 %v2709
  %v2788 = vpop.f32.mrb[0].mxu0
  %v2789 = vadd.f32 0.0, %v2788
  %v2790 = vpop.f32.mrb[0].mxu0
  %2791 = vmatprep.mubr.f32.mxu0 0.0
  %2792 = vmatmul.mubr.f32.gmra.mrb[0].mxu0 %v2712
  %v2793 = vpop.f32.mrb[0].mxu0
  %v2794 = vadd.f32 0.0, %v2793
  %v2795 = vpop.f32.mrb[0].mxu0
  %2796 = vmatprep.mubr.f32.mxu0 0.0
  %2797 = vmatmul.mubr.f32.gmra.mrb[0].mxu0 %v2715
  %v2798 = vpop.f32.mrb[0].mxu0
  %v2799 = vadd.f32 0.0, %v2798
  %v2800 = vpop.f32.mrb[0].mxu0
  %2801 = vdwg.mxu0
  %v2802 = vmax.f32 %v2784, 0.0
  %v2803 = vmax.f32 %v2789, 0.0
  %v2804 = vmax.f32 %v2794, 0.0
  %v2805 = vmax.f32 %v2799, 0.0
  %v2806 = vld [vmem:[%s10] sm:$0xff]
  %v2807 = vld [vmem:[%s10 + $0x8] sm:$0xff]
  %v2808 = vld [vmem:[%s10 + $0x10] sm:$0xff]
  %v2809 = vld [vmem:[%s10 + $0x18] sm:$0xff]
  %v2810 = vld [vmem:[%s10 + $0x20] sm:$0xff]
  %v2811 = vld [vmem:[%s10 + $0x28] sm:$0xff]
  %v2812 = vld [vmem:[%s10 + $0x30] sm:$0xff]
  %v2813 = vld [vmem:[%s10 + $0x38] sm:$0xff]
  %v2814 = vld [vmem:[%s10 + $0x40] sm:$0xff]
  %v2815 = vld [vmem:[%s10 + $0x48] sm:$0xff]
  %v2816 = vld [vmem:[%s10 + $0x50] sm:$0xff]
  %v2817 = vld [vmem:[%s10 + $0x58] sm:$0xff]
  %v2818 = vld [vmem:[%s10 + $0x60] sm:$0xff]
  %v2819 = vld [vmem:[%s10 + $0x68] sm:$0xff]
  %v2820 = vld [vmem:[%s10 + $0x70] sm:$0xff]
  %v2821 = vld [vmem:[%s10 + $0x78] sm:$0xff]
  %2826 = vrot.lane.b32.xlu0 %v2802, 126
  %v2827 = vpop.permute.xlu0 %2826
  %2828 = vrot.lane.b32.xlu0 %v2803, 126
  %v2829 = vpop.permute.xlu0 %2828
  %2830 = vrot.lane.b32.xlu0 %v2804, 126
  %v2831 = vpop.permute.xlu0 %2830
  %2832 = vrot.lane.b32.xlu0 %v2805, 126
  %v2833 = vpop.permute.xlu0 %2832
  %v2838 = vmax.f32 %v2802, %v2827
  %v2839 = vmax.f32 %v2803, %v2829
  %v2840 = vmax.f32 %v2804, %v2831
  %v2841 = vmax.f32 %v2805, %v2833
  %2842 = vrot.lane.b32.xlu0 %v2802, 112
  %v2843 = vpop.permute.xlu0 %2842
  %2844 = vrot.lane.b32.xlu0 %v2803, 112
  %v2845 = vpop.permute.xlu0 %2844
  %2846 = vrot.lane.b32.xlu0 %v2804, 112
  %v2847 = vpop.permute.xlu0 %2846
  %2848 = vrot.lane.b32.xlu0 %v2805, 112
  %v2849 = vpop.permute.xlu0 %2848
  %v2854 = vmax.f32 %v2838, %v2843
  %v2855 = vmax.f32 %v2839, %v2845
  %v2856 = vmax.f32 %v2840, %v2847
  %v2857 = vmax.f32 %v2841, %v2849
  %2858 = vrot.lane.b32.xlu0 %v2802, 110
  %v2859 = vpop.permute.xlu0 %2858
  %2860 = vrot.lane.b32.xlu0 %v2803, 110
  %v2861 = vpop.permute.xlu0 %2860
  %2862 = vrot.lane.b32.xlu0 %v2804, 110
  %v2863 = vpop.permute.xlu0 %2862
  %2864 = vrot.lane.b32.xlu0 %v2805, 110
  %v2865 = vpop.permute.xlu0 %2864
  %v2870 = vmax.f32 %v2854, %v2859
  %v2871 = vmax.f32 %v2855, %v2861
  %v2872 = vmax.f32 %v2856, %v2863
  %v2873 = vmax.f32 %v2857, %v2865
  %2874 = vmatprep.subr.mxu0 0.0
  %2875 = vmatpush1.msra.mxu0 %v2806
  %2876 = vmatprep.subr.mxu0 0.0
  %2877 = vmatpush1.msra.mxu0 %v2807
  %2878 = vmatprep.subr.mxu0 0.0
  %2879 = vmatpush1.msra.mxu0 %v2808
  %2880 = vmatprep.subr.mxu0 0.0
  %2881 = vmatpush1.msra.mxu0 %v2809
  %2882 = vmatprep.subr.mxu0 0.0
  %2883 = vmatpush1.msra.mxu0 %v2810
  %2884 = vmatprep.subr.mxu0 0.0
  %2885 = vmatpush1.msra.mxu0 %v2811
  %2886 = vmatprep.subr.mxu0 0.0
  %2887 = vmatpush1.msra.mxu0 %v2812
  %2888 = vmatprep.subr.mxu0 0.0
  %2889 = vmatpush1.msra.mxu0 %v2813
  %2890 = vmatprep.subr.mxu0 0.0
  %2891 = vmatpush1.msra.mxu0 %v2814
  %2892 = vmatprep.subr.mxu0 0.0
  %2893 = vmatpush1.msra.mxu0 %v2815
  %2894 = vmatprep.subr.mxu0 0.0
  %2895 = vmatpush1.msra.mxu0 %v2816
  %2896 = vmatprep.subr.mxu0 0.0
  %2897 = vmatpush1.msra.mxu0 %v2817
  %2898 = vmatprep.subr.mxu0 0.0
  %2899 = vmatpush1.msra.mxu0 %v2818
  %2900 = vmatprep.subr.mxu0 0.0
  %2901 = vmatpush1.msra.mxu0 %v2819
  %2902 = vmatprep.subr.mxu0 0.0
  %2903 = vmatpush1.msra.mxu0 %v2820
  %2904 = vmatprep.subr.mxu0 0.0
  %2905 = vmatpush1.msra.mxu0 %v2821
  %2906 = vmatprep.subr.mxu0 0.0
  %2907 = vmatpush1.msra.mxu0 0.0
  %2908 = vmatprep.subr.mxu0 0.0
  %2909 = vmatpush1.msra.mxu0 0.0
  %2910 = vmatprep.subr.mxu0 0.0
  %2911 = vmatpush1.msra.mxu0 0.0
  %2912 = vmatprep.subr.mxu0 0.0
  %2913 = vmatpush1.msra.mxu0 0.0
  %2914 = vmatprep.subr.mxu0 0.0
  %2915 = vmatpush1.msra.mxu0 0.0
  %2916 = vmatprep.subr.mxu0 0.0
  %2917 = vmatpush1.msra.mxu0 0.0
  %2918 = vmatprep.subr.mxu0 0.0
  %2919 = vmatpush1.msra.mxu0 0.0
  %2920 = vmatprep.subr.mxu0 0.0
  %2921 = vmatpush1.msra.mxu0 0.0
  %2922 = vmatprep.subr.mxu0 0.0
  %2923 = vmatpush1.msra.mxu0 0.0
  %2924 = vmatprep.subr.mxu0 0.0
  %2925 = vmatpush1.msra.mxu0 0.0
  %2926 = vmatprep.subr.mxu0 0.0
  %2927 = vmatpush1.msra.mxu0 0.0
  %2928 = vmatprep.subr.mxu0 0.0
  %2929 = vmatpush1.msra.mxu0 0.0
  %2930 = vmatprep.subr.mxu0 0.0
  %2931 = vmatpush1.msra.mxu0 0.0
  %2932 = vmatprep.subr.mxu0 0.0
  %2933 = vmatpush1.msra.mxu0 0.0
  %2934 = vmatprep.subr.mxu0 0.0
  %2935 = vmatpush1.msra.mxu0 0.0
  %2936 = vmatprep.subr.mxu0 0.0
  %2937 = vmatpush1.msra.mxu0 0.0
  %2938 = vmatprep.mubr.f32.mxu0 0.0
  %2939 = vmatmul.mubr.f32.gmra.mrb[0].mxu0 %v2870
  %v2940 = vpop.f32.mrb[0].mxu0
  %v2941 = vadd.f32 0.0, %v2940
  %v2942 = vpop.f32.mrb[0].mxu0
  %2943 = vmatprep.mubr.f32.mxu0 0.0
  %2944 = vmatmul.mubr.f32.gmra.mrb[0].mxu0 %v2871
  %v2945 = vpop.f32.mrb[0].mxu0
  %v2946 = vadd.f32 0.0, %v2945
  %v2947 = vpop.f32.mrb[0].mxu0
  %2948 = vmatprep.mubr.f32.mxu0 0.0
  %2949 = vmatmul.mubr.f32.gmra.mrb[0].mxu0 %v2872
  %v2950 = vpop.f32.mrb[0].mxu0
  %v2951 = vadd.f32 0.0, %v2950
  %v2952 = vpop.f32.mrb[0].mxu0
  %2953 = vmatprep.mubr.f32.mxu0 0.0
  %2954 = vmatmul.mubr.f32.gmra.mrb[0].mxu0 %v2873
  %v2955 = vpop.f32.mrb[0].mxu0
  %v2956 = vadd.f32 0.0, %v2955
  %v2957 = vpop.f32.mrb[0].mxu0
  %2958 = vdwg.mxu0
  %2963 = vrot.lane.b32.xlu0 %v2941, 126
  %v2964 = vpop.permute.xlu0 %2963
  %2965 = vrot.lane.b32.xlu0 %v2946, 126
  %v2966 = vpop.permute.xlu0 %2965
  %2967 = vrot.lane.b32.xlu0 %v2951, 126
  %v2968 = vpop.permute.xlu0 %2967
  %2969 = vrot.lane.b32.xlu0 %v2956, 126
  %v2970 = vpop.permute.xlu0 %2969
  %2975 = vrot.lane.b32.xlu0 %v2941, 124
  %v2976 = vpop.permute.xlu0 %2975
  %2977 = vrot.lane.b32.xlu0 %v2946, 124
  %v2978 = vpop.permute.xlu0 %2977
  %2979 = vrot.lane.b32.xlu0 %v2951, 124
  %v2980 = vpop.permute.xlu0 %2979
  %2981 = vrot.lane.b32.xlu0 %v2956, 124
  %v2982 = vpop.permute.xlu0 %2981
  %2987 = vrot.lane.b32.xlu0 %v2941, 122
  %v2988 = vpop.permute.xlu0 %2987
  %2989 = vrot.lane.b32.xlu0 %v2946, 122
  %v2990 = vpop.permute.xlu0 %2989
  %2991 = vrot.lane.b32.xlu0 %v2951, 122
  %v2992 = vpop.permute.xlu0 %2991
  %2993 = vrot.lane.b32.xlu0 %v2956, 122
  %v2994 = vpop.permute.xlu0 %2993
  %2999 = vrot.lane.b32.xlu0 %v2941, 120
  %v3000 = vpop.permute.xlu0 %2999
  %3001 = vrot.lane.b32.xlu0 %v2946, 120
  %v3002 = vpop.permute.xlu0 %3001
  %3003 = vrot.lane.b32.xlu0 %v2951, 120
  %v3004 = vpop.permute.xlu0 %3003
  %3005 = vrot.lane.b32.xlu0 %v2956, 120
  %v3006 = vpop.permute.xlu0 %3005
  %3011 = vrot.lane.b32.xlu0 %v2941, 118
  %v3012 = vpop.permute.xlu0 %3011
  %3013 = vrot.lane.b32.xlu0 %v2946, 118
  %v3014 = vpop.permute.xlu0 %3013
  %3015 = vrot.lane.b32.xlu0 %v2951, 118
  %v3016 = vpop.permute.xlu0 %3015
  %3017 = vrot.lane.b32.xlu0 %v2956, 118
  %v3018 = vpop.permute.xlu0 %3017
  %3023 = vrot.lane.b32.xlu0 %v2941, 116
  %v3024 = vpop.permute.xlu0 %3023
  %3025 = vrot.lane.b32.xlu0 %v2946, 116
  %v3026 = vpop.permute.xlu0 %3025
  %3027 = vrot.lane.b32.xlu0 %v2951, 116
  %v3028 = vpop.permute.xlu0 %3027
  %3029 = vrot.lane.b32.xlu0 %v2956, 116
  %v3030 = vpop.permute.xlu0 %3029
  %3035 = vrot.lane.b32.xlu0 %v2941, 114
  %v3036 = vpop.permute.xlu0 %3035
  %3037 = vrot.lane.b32.xlu0 %v2946, 114
  %v3038 = vpop.permute.xlu0 %3037
  %3039 = vrot.lane.b32.xlu0 %v2951, 114
  %v3040 = vpop.permute.xlu0 %3039
  %3041 = vrot.lane.b32.xlu0 %v2956, 114
  %v3042 = vpop.permute.xlu0 %3041
  %3047 = vrot.lane.b32.xlu0 %v2941, 112
  %v3048 = vpop.permute.xlu0 %3047
  %3049 = vrot.lane.b32.xlu0 %v2946, 112
  %v3050 = vpop.permute.xlu0 %3049
  %3051 = vrot.lane.b32.xlu0 %v2951, 112
  %v3052 = vpop.permute.xlu0 %3051
  %3053 = vrot.lane.b32.xlu0 %v2956, 112
  %v3054 = vpop.permute.xlu0 %3053
  %3059 = vrot.lane.b32.xlu0 %v2941, 110
  %v3060 = vpop.permute.xlu0 %3059
  %3061 = vrot.lane.b32.xlu0 %v2946, 110
  %v3062 = vpop.permute.xlu0 %3061
  %3063 = vrot.lane.b32.xlu0 %v2951, 110
  %v3064 = vpop.permute.xlu0 %3063
  %3065 = vrot.lane.b32.xlu0 %v2956, 110
  %v3066 = vpop.permute.xlu0 %3065
  %3071 = vrot.lane.b32.xlu0 %v2941, 108
  %v3072 = vpop.permute.xlu0 %3071
  %3073 = vrot.lane.b32.xlu0 %v2946, 108
  %v3074 = vpop.permute.xlu0 %3073
  %3075 = vrot.lane.b32.xlu0 %v2951, 108
  %v3076 = vpop.permute.xlu0 %3075
  %3077 = vrot.lane.b32.xlu0 %v2956, 108
  %v3078 = vpop.permute.xlu0 %3077
  %3083 = vrot.lane.b32.xlu0 %v2941, 106
  %v3084 = vpop.permute.xlu0 %3083
  %3085 = vrot.lane.b32.xlu0 %v2946, 106
  %v3086 = vpop.permute.xlu0 %3085
  %3087 = vrot.lane.b32.xlu0 %v2951, 106
  %v3088 = vpop.permute.xlu0 %3087
  %3089 = vrot.lane.b32.xlu0 %v2956, 106
  %v3090 = vpop.permute.xlu0 %3089
  %3095 = vrot.lane.b32.xlu0 %v2941, 104
  %v3096 = vpop.permute.xlu0 %3095
  %3097 = vrot.lane.b32.xlu0 %v2946, 104
  %v3098 = vpop.permute.xlu0 %3097
  %3099 = vrot.lane.b32.xlu0 %v2951, 104
  %v3100 = vpop.permute.xlu0 %3099
  %3101 = vrot.lane.b32.xlu0 %v2956, 104
  %v3102 = vpop.permute.xlu0 %3101
  %3107 = vrot.lane.b32.xlu0 %v2941, 102
  %v3108 = vpop.permute.xlu0 %3107
  %3109 = vrot.lane.b32.xlu0 %v2946, 102
  %v3110 = vpop.permute.xlu0 %3109
  %3111 = vrot.lane.b32.xlu0 %v2951, 102
  %v3112 = vpop.permute.xlu0 %3111
  %3113 = vrot.lane.b32.xlu0 %v2956, 102
  %v3114 = vpop.permute.xlu0 %3113
  %3119 = vrot.lane.b32.xlu0 %v2941, 100
  %v3120 = vpop.permute.xlu0 %3119
  %3121 = vrot.lane.b32.xlu0 %v2946, 100
  %v3122 = vpop.permute.xlu0 %3121
  %3123 = vrot.lane.b32.xlu0 %v2951, 100
  %v3124 = vpop.permute.xlu0 %3123
  %3125 = vrot.lane.b32.xlu0 %v2956, 100
  %v3126 = vpop.permute.xlu0 %3125
  %3131 = vrot.lane.b32.xlu0 %v2941, 98
  %v3132 = vpop.permute.xlu0 %3131
  %3133 = vrot.lane.b32.xlu0 %v2946, 98
  %v3134 = vpop.permute.xlu0 %3133
  %3135 = vrot.lane.b32.xlu0 %v2951, 98
  %v3136 = vpop.permute.xlu0 %3135
  %3137 = vrot.lane.b32.xlu0 %v2956, 98
  %v3138 = vpop.permute.xlu0 %3137
  %v3143 = vld [vmem:[%s11] sm:$0xff]
  %v3144 = vld [vmem:[%s11 + $0x8] sm:$0xff]
  %v3145 = vld [vmem:[%s11 + $0x10] sm:$0xff]
  %v3146 = vld [vmem:[%s11 + $0x18] sm:$0xff]
  %v3147 = vld [vmem:[%s11 + $0x20] sm:$0x3]
  %v3148 = vld [vmem:[%s11 + $0x28] sm:$0x3]
  %v3149 = vld [vmem:[%s11 + $0x30] sm:$0x3]
  %v3150 = vld [vmem:[%s11 + $0x38] sm:$0x3]
  %v3151 = vld [vmem:[%s12] sm:$0xff]
  %v3152 = vld [vmem:[%s12 + $0x8] sm:$0x3]
  %3154 = vset.pattern.permute.xlu0 0
  %3155 = vperm.xlu0 %3154, %v3151
  %v3156 = vpop.permute.xlu0 %3155
  %3159 = vset.pattern.permute.xlu0 0
  %3160 = vperm.xlu0 %3159, %v3152
  %v3161 = vpop.permute.xlu0 %3160
  %3163 = vmatprep.subr.mxu0 0.0
  %3164 = vmatpush1.msra.mxu0 %v2941
  %3165 = vmatprep.subr.mxu0 0.0
  %3166 = vmatpush1.msra.mxu0 %v2946
  %3167 = vmatprep.subr.mxu0 0.0
  %3168 = vmatpush1.msra.mxu0 %v2951
  %3169 = vmatprep.subr.mxu0 0.0
  %3170 = vmatpush1.msra.mxu0 %v2956
  %3171 = vmatprep.subr.mxu0 0.0
  %3172 = vmatpush1.msra.mxu0 %v2964
  %3173 = vmatprep.subr.mxu0 0.0
  %3174 = vmatpush1.msra.mxu0 %v2966
  %3175 = vmatprep.subr.mxu0 0.0
  %3176 = vmatpush1.msra.mxu0 %v2968
  %3177 = vmatprep.subr.mxu0 0.0
  %3178 = vmatpush1.msra.mxu0 %v2970
  %3179 = vmatprep.subr.mxu0 0.0
  %3180 = vmatpush1.msra.mxu0 %v2976
  %3181 = vmatprep.subr.mxu0 0.0
  %3182 = vmatpush1.msra.mxu0 %v2978
  %3183 = vmatprep.subr.mxu0 0.0
  %3184 = vmatpush1.msra.mxu0 %v2980
  %3185 = vmatprep.subr.mxu0 0.0
  %3186 = vmatpush1.msra.mxu0 %v2982
  %3187 = vmatprep.subr.mxu0 0.0
  %3188 = vmatpush1.msra.mxu0 %v2988
  %3189 = vmatprep.subr.mxu0 0.0
  %3190 = vmatpush1.msra.mxu0 %v2990
  %3191 = vmatprep.subr.mxu0 0.0
  %3192 = vmatpush1.msra.mxu0 %v2992
  %3193 = vmatprep.subr.mxu0 0.0
  %3194 = vmatpush1.msra.mxu0 %v2994
  %3195 = vmatprep.subr.mxu0 0.0
  %3196 = vmatpush1.msra.mxu0 %v3000
  %3197 = vmatprep.subr.mxu0 0.0
  %3198 = vmatpush1.msra.mxu0 %v3002
  %3199 = vmatprep.subr.mxu0 0.0
  %3200 = vmatpush1.msra.mxu0 %v3004
  %3201 = vmatprep.subr.mxu0 0.0
  %3202 = vmatpush1.msra.mxu0 %v3006
  %3203 = vmatprep.subr.mxu0 0.0
  %3204 = vmatpush1.msra.mxu0 %v3012
  %3205 = vmatprep.subr.mxu0 0.0
  %3206 = vmatpush1.msra.mxu0 %v3014
  %3207 = vmatprep.subr.mxu0 0.0
  %3208 = vmatpush1.msra.mxu0 %v3016
  %3209 = vmatprep.subr.mxu0 0.0
  %3210 = vmatpush1.msra.mxu0 %v3018
  %3211 = vmatprep.subr.mxu0 0.0
  %3212 = vmatpush1.msra.mxu0 %v3024
  %3213 = vmatprep.subr.mxu0 0.0
  %3214 = vmatpush1.msra.mxu0 %v3026
  %3215 = vmatprep.subr.mxu0 0.0
  %3216 = vmatpush1.msra.mxu0 %v3028
  %3217 = vmatprep.subr.mxu0 0.0
  %3218 = vmatpush1.msra.mxu0 %v3030
  %3219 = vmatprep.subr.mxu0 0.0
  %3220 = vmatpush1.msra.mxu0 %v3036
  %3221 = vmatprep.subr.mxu0 0.0
  %3222 = vmatpush1.msra.mxu0 %v3038
  %3223 = vmatprep.subr.mxu0 0.0
  %3224 = vmatpush1.msra.mxu0 %v3040
  %3225 = vmatprep.subr.mxu0 0.0
  %3226 = vmatpush1.msra.mxu0 %v3042
  %3227 = vmatprep.mubr.f32.mxu0 %v3144
  %3228 = vmatmul.mubr.f32.gmra.mrb[0].mxu0 %v3143
  %v3229 = vpop.f32.mrb[0].mxu0
  %v3230 = vadd.f32 %v3156, %v3229
  %v3231 = vpop.f32.mrb[0].mxu0
  %3232 = vmatprep.mubr.f32.mxu0 %v3148
  %3233 = vmatmul.mubr.f32.gmra.mrb[0].mxu0 %v3147
  %v3234 = vpop.f32.mrb[0].mxu0
  %v3235 = vadd.f32 %v3161, %v3234
  %v3236 = vpop.f32.mrb[0].mxu0
  %3237 = vdwg.mxu0
  %3238 = vmatprep.subr.mxu0 0.0
  %3239 = vmatpush1.msra.mxu0 %v3048
  %3240 = vmatprep.subr.mxu0 0.0
  %3241 = vmatpush1.msra.mxu0 %v3050
  %3242 = vmatprep.subr.mxu0 0.0
  %3243 = vmatpush1.msra.mxu0 %v3052
  %3244 = vmatprep.subr.mxu0 0.0
  %3245 = vmatpush1.msra.mxu0 %v3054
  %3246 = vmatprep.subr.mxu0 0.0
  %3247 = vmatpush1.msra.mxu0 %v3060
  %3248 = vmatprep.subr.mxu0 0.0
  %3249 = vmatpush1.msra.mxu0 %v3062
  %3250 = vmatprep.subr.mxu0 0.0
  %3251 = vmatpush1.msra.mxu0 %v3064
  %3252 = vmatprep.subr.mxu0 0.0
  %3253 = vmatpush1.msra.mxu0 %v3066
  %3254 = vmatprep.subr.mxu0 0.0
  %3255 = vmatpush1.msra.mxu0 %v3072
  %3256 = vmatprep.subr.mxu0 0.0
  %3257 = vmatpush1.msra.mxu0 %v3074
  %3258 = vmatprep.subr.mxu0 0.0
  %3259 = vmatpush1.msra.mxu0 %v3076
  %3260 = vmatprep.subr.mxu0 0.0
  %3261 = vmatpush1.msra.mxu0 %v3078
  %3262 = vmatprep.subr.mxu0 0.0
  %3263 = vmatpush1.msra.mxu0 %v3084
  %3264 = vmatprep.subr.mxu0 0.0
  %3265 = vmatpush1.msra.mxu0 %v3086
  %3266 = vmatprep.subr.mxu0 0.0
  %3267 = vmatpush1.msra.mxu0 %v3088
  %3268 = vmatprep.subr.mxu0 0.0
  %3269 = vmatpush1.msra.mxu0 %v3090
  %3270 = vmatprep.subr.mxu0 0.0
  %3271 = vmatpush1.msra.mxu0 %v3096
  %3272 = vmatprep.subr.mxu0 0.0
  %3273 = vmatpush1.msra.mxu0 %v3098
  %3274 = vmatprep.subr.mxu0 0.0
  %3275 = vmatpush1.msra.mxu0 %v3100
  %3276 = vmatprep.subr.mxu0 0.0
  %3277 = vmatpush1.msra.mxu0 %v3102
  %3278 = vmatprep.subr.mxu0 0.0
  %3279 = vmatpush1.msra.mxu0 %v3108
  %3280 = vmatprep.subr.mxu0 0.0
  %3281 = vmatpush1.msra.mxu0 %v3110
  %3282 = vmatprep.subr.mxu0 0.0
  %3283 = vmatpush1.msra.mxu0 %v3112
  %3284 = vmatprep.subr.mxu0 0.0
  %3285 = vmatpush1.msra.mxu0 %v3114
  %3286 = vmatprep.subr.mxu0 0.0
  %3287 = vmatpush1.msra.mxu0 %v3120
  %3288 = vmatprep.subr.mxu0 0.0
  %3289 = vmatpush1.msra.mxu0 %v3122
  %3290 = vmatprep.subr.mxu0 0.0
  %3291 = vmatpush1.msra.mxu0 %v3124
  %3292 = vmatprep.subr.mxu0 0.0
  %3293 = vmatpush1.msra.mxu0 %v3126
  %3294 = vmatprep.subr.mxu0 0.0
  %3295 = vmatpush1.msra.mxu0 %v3132
  %3296 = vmatprep.subr.mxu0 0.0
  %3297 = vmatpush1.msra.mxu0 %v3134
  %3298 = vmatprep.subr.mxu0 0.0
  %3299 = vmatpush1.msra.mxu0 %v3136
  %3300 = vmatprep.subr.mxu0 0.0
  %3301 = vmatpush1.msra.mxu0 %v3138
  %3302 = vmatprep.mubr.f32.mxu0 %v3146
  %3303 = vmatmul.mubr.f32.gmra.mrb[0].mxu0 %v3145
  %v3304 = vpop.f32.mrb[0].mxu0
  %v3305 = vadd.f32 %v3230, %v3304
  %v3306 = vpop.f32.mrb[0].mxu0
  %3307 = vmatprep.mubr.f32.mxu0 %v3150
  %3308 = vmatmul.mubr.f32.gmra.mrb[0].mxu0 %v3149
  %v3309 = vpop.f32.mrb[0].mxu0
  %v3310 = vadd.f32 %v3235, %v3309
  %v3311 = vpop.f32.mrb[0].mxu0
  %3312 = vdwg.mxu0
  %3313 = vst.msk [vmem:[%s13] sm:$0xff] %vm266, %v3305
  %vm3314 = vcmask 9216
  %3315 = vst.msk [vmem:[%s13 + $0x8] sm:$0x3] %vm3314, %v3310
  // Predicated region
  $region54: #{cnn_flanc_forward.1} parent=0 // pred_check
    _
  $region55: #{cnn_flanc_forward.1} parent=0 // pred_check_branch
    %3317 = sbr.rel (0) target = $region57
  $region56: #{cnn_flanc_forward.1} parent=0 // pred_region
    _
  $region57: #{cnn_flanc_forward.1} parent=0 // pred_fallthru
    _
  // Predicated region
  $region58: #{cnn_flanc_forward.1} parent=0 // pred_check
    _
  $region59: #{cnn_flanc_forward.1} parent=0 // pred_check_branch
    %3319 = sbr.rel (0) target = $region61
  $region60: #{cnn_flanc_forward.1} parent=0 // pred_region
    _
  $region61: #{cnn_flanc_forward.1} parent=0 // pred_fallthru
    _

</llo_original>
